<compile_context>
chip_gen: v6e
topology: v6e:2x2x1
jax: 0.10.0
libtpu: 0.0.40
codegen_flags: <defaults>
</compile_context>

<pallas_src>
import jax
import jax.numpy as jnp
from jax import lax
from jax.experimental import pallas as pl
from jax.experimental.pallas import tpu as pltpu


# ----------------------------------------------------------------------------
# Fused kernel: conv3x3+ReLU -> conv3x3+ReLU -> dual 1x1 heads + infer
# ----------------------------------------------------------------------------
def _segmentor_fused_kernel(x_ref, xprev_ref, xnext_ref,
                            w1_ref, b1_ref, w2_ref, b2_ref,
                            wh_ref, bh_ref, thr_ref,
                            out_ref, xpad1_ref, xpad2_ref):
    """One (batch, row-strip) tile per grid step.

    x_ref     : (1, R, W, Cin)    f32   current strip of the NHWC input
    xprev_ref : (1, 2, W, Cin)    f32   last 2 rows of the strip above (clamped)
    xnext_ref : (1, 2, W, Cin)    f32   first 2 rows of the strip below (clamped)
    w1_ref    : (9, Cin, Chid)    bf16  conv1 taps, (dy*3 + dx) major
    b1_ref    : (1, Chid)         f32
    w2_ref    : (9, Chid, Chid)   bf16  conv2 taps
    b2_ref    : (1, Chid)         f32
    wh_ref    : (2, Chid)         f32   head weights [seg, endp]
    bh_ref    : (2,)              f32   SMEM head biases
    thr_ref   : (2,)              f32   SMEM thresholds (logit space)
    out_ref   : (1, 6, R*W)       f32   channel-first lane-dense planes:
                                        [seg_logit, endp_logit, seg_prob,
                                         endp_prob, seg_mask, endp_mask]
    xpad1_ref : (R+4, W+2, Cin)   bf16  input strip + 2-row / 1-col halo
    xpad2_ref : (R+2, W+2, Chid)  bf16  h1 strip  + 1-row / 1-col halo
    """
    s = pl.program_id(1)
    last = pl.num_programs(1) - 1
    R = x_ref.shape[1]
    W = x_ref.shape[2]
    Cin = xpad1_ref.shape[2]
    Chid = xpad2_ref.shape[2]
    bf16 = jnp.bfloat16

    # --- Stage the input strip (+ 2-row halos) into the bf16 padded scratch.
    # Only the 1-element borders are zeroed; interiors are fully overwritten
    # every step (no full-scratch memset).
    zc1 = jnp.zeros((R + 4, 1, Cin), bf16)
    xpad1_ref[:, 0:1, :] = zc1
    xpad1_ref[:, W + 1:W + 2, :] = zc1
    xpad1_ref[0:2, 1:W + 1, :] = xprev_ref[0].astype(bf16)
    xpad1_ref[2:R + 2, 1:W + 1, :] = x_ref[0].astype(bf16)
    xpad1_ref[R + 2:R + 4, 1:W + 1, :] = xnext_ref[0].astype(bf16)

    @pl.when(s == 0)
    def _():                                    # rows above the image are zero
        xpad1_ref[0:2, :, :] = jnp.zeros((2, W + 2, Cin), bf16)

    @pl.when(s == last)
    def _():                                    # rows below the image are zero
        xpad1_ref[R + 2:R + 4, :, :] = jnp.zeros((2, W + 2, Cin), bf16)

    def conv3x3_relu(xpad_ref, w_ref, b_ref, n_rows):
        # 9 accumulating MXU dots over shifted views (no 9x im2col slab).
        # dy shifts are leading-dim slices (free); only the 3 dx column views
        # touch the sublane axis.
        xp = xpad_ref[...]                      # (n_rows+2, W+2, C) bf16
        acc = None
        for dx in range(3):
            xcol = xp[:, dx:dx + W, :]          # (n_rows+2, W, C)
            for dy in range(3):
                t = lax.dot_general(
                    xcol[dy:dy + n_rows], w_ref[dy * 3 + dx],
                    dimension_numbers=(((2,), (0,)), ((), ())),
                    preferred_element_type=jnp.float32)
                acc = t if acc is None else acc + t
        return jnp.maximum(acc + b_ref[...], 0.0)        # f32 epilogue

    # conv1 over R+2 rows: recompute the 1-row h1 halo on each side so conv2
    # never needs neighbouring strips' activations.
    h1 = conv3x3_relu(xpad1_ref, w1_ref, b1_ref, R + 2)   # (R+2, W, Chid) f32

    zc2 = jnp.zeros((R + 2, 1, Chid), bf16)
    xpad2_ref[:, 0:1, :] = zc2
    xpad2_ref[:, W + 1:W + 2, :] = zc2
    xpad2_ref[:, 1:W + 1, :] = h1.astype(bf16)

    # h1 outside the image is conv2's ZERO padding, not conv1 evaluated on a
    # zero-padded row (that would carry the conv1 bias through the ReLU).
    @pl.when(s == 0)
    def _():
        xpad2_ref[0:1, :, :] = jnp.zeros((1, W + 2, Chid), bf16)

    @pl.when(s == last)
    def _():
        xpad2_ref[R + 1:R + 2, :, :] = jnp.zeros((1, W + 2, Chid), bf16)

    h2 = conv3x3_relu(xpad2_ref, w2_ref, b2_ref, R)       # (R, W, Chid) f32

    # --- Both heads in one MXU matmul, channel-first (2, R*W) so the output
    # stores are full lane-dense planes (no XLU cross-lane channel reduce).
    h2_flat = h2.reshape(R * W, Chid)
    raw = lax.dot_general(wh_ref[...], h2_flat,
                          dimension_numbers=(((1,), (1,)), ((), ())),
                          preferred_element_type=jnp.float32)   # (2, R*W)

    # sigmoid on the EUP; mask in logit space (sigmoid(z) > t <=> z > logit(t)).
    for head in range(2):
        logit = raw[head:head + 1] + bh_ref[head]                # (1, R*W)
        out_ref[0, head:head + 1, :] = logit
        out_ref[0, 2 + head:3 + head, :] = jax.nn.sigmoid(logit)
        out_ref[0, 4 + head:5 + head, :] = (
            logit > thr_ref[head]).astype(jnp.float32)


# ----------------------------------------------------------------------------
# Pallas wrapper
# ----------------------------------------------------------------------------
def _pick_strip_rows(H, W, max_rows=64):
    """Largest even divisor of H (capped) whose flattened output block is a
    multiple of 128 lanes; falls back to the whole image."""
    for strip in range(min(max_rows, H), 1, -1):
        if H % strip == 0 and strip % 2 == 0 and (strip * W) % 128 == 0:
            return strip
    return H


def _segmentor_pallas(x_nhwc, params, seg_thre, endp_thre, strip_rows=None):
    B, H, W, Cin = x_nhwc.shape
    Chid = params["w1"].shape[-1]
    assert 0.0 < seg_thre < 1.0 and 0.0 < endp_thre < 1.0, \
        "thresholds must lie strictly in (0, 1) for logit-space comparison"
    assert H % 2 == 0, "2-row halo blocks require an even image height"
    # TODO(synk): odd image heights would need 1-row halo blocks instead.

    strip = _pick_strip_rows(H, W) if strip_rows is None else strip_rows
    assert H % strip == 0 and strip % 2 == 0
    assert (strip * W) % 128 == 0 or strip == H
    n_strips = H // strip
    hs = strip // 2                      # strip size in 2-row halo blocks
    n_hblk = H // 2                      # number of 2-row blocks along H

    # Per-tap weight layout (9, Cin, Chid) / (9, Chid, Chid); bf16 MXU operands.
    w1 = params["w1"].reshape(9, Cin, Chid).astype(jnp.bfloat16)
    w2 = params["w2"].reshape(9, Chid, Chid).astype(jnp.bfloat16)
    b1 = params["b1"].reshape(1, Chid).astype(jnp.float32)
    b2 = params["b2"].reshape(1, Chid).astype(jnp.float32)
    wh = jnp.transpose(params["w_heads"]).astype(jnp.float32)      # (2, Chid)
    bh = params["b_heads"].reshape(2).astype(jnp.float32)
    thr_p = jnp.array([seg_thre, endp_thre], jnp.float32)
    thr_logit = jnp.log(thr_p) - jnp.log1p(-thr_p)                 # logit(t)

    out_flat = pl.pallas_call(
        _segmentor_fused_kernel,
        out_shape=jax.ShapeDtypeStruct((B, 6, H * W), jnp.float32),
        grid_spec=pltpu.PrefetchScalarGridSpec(
            num_scalar_prefetch=0,
            grid=(B, n_strips),
            in_specs=[
                # current strip
                pl.BlockSpec((1, strip, W, Cin), lambda b, s: (b, s, 0, 0)),
                # 2-row halo above (clamped at the top boundary, zeroed in-kernel)
                pl.BlockSpec((1, 2, W, Cin),
                             lambda b, s: (b, jnp.maximum(s * hs - 1, 0), 0, 0)),
                # 2-row halo below (clamped at the bottom boundary, zeroed in-kernel)
                pl.BlockSpec((1, 2, W, Cin),
                             lambda b, s: (b, jnp.minimum((s + 1) * hs,
                                                          n_hblk - 1), 0, 0)),
                pl.BlockSpec((9, Cin, Chid), lambda b, s: (0, 0, 0)),
                pl.BlockSpec((1, Chid), lambda b, s: (0, 0)),
                pl.BlockSpec((9, Chid, Chid), lambda b, s: (0, 0, 0)),
                pl.BlockSpec((1, Chid), lambda b, s: (0, 0)),
                pl.BlockSpec((2, Chid), lambda b, s: (0, 0)),
                pl.BlockSpec(memory_space=pltpu.MemorySpace.SMEM),
                pl.BlockSpec(memory_space=pltpu.MemorySpace.SMEM),
            ],
            out_specs=pl.BlockSpec((1, 6, strip * W), lambda b, s: (b, 0, s)),
            scratch_shapes=[
                pltpu.VMEM((strip + 4, W + 2, Cin), jnp.bfloat16),
                pltpu.VMEM((strip + 2, W + 2, Chid), jnp.bfloat16),
            ],
        ),
        # Strip size + this limit must be re-derived per generation: keep the
        # resident footprint (double-buffered blocks + both bf16 halo
        # scratches) under ~48-56 MiB on v7x; v5e/v6e can take ~2x larger
        # strips under their 128 MiB ceiling.
        compiler_params=pltpu.CompilerParams(
            dimension_semantics=("parallel", "parallel"),
            vmem_limit_bytes=48 * 1024 * 1024),
    )(x_nhwc, x_nhwc, x_nhwc, w1, b1, w2, b2, wh, bh, thr_logit)

    return out_flat.reshape(B, 6, H, W)


# ----------------------------------------------------------------------------
# Segmentor forward (eval / inference path)
# ----------------------------------------------------------------------------
def segmentor_forward(x_nchw, params, seg_thre=0.5, endp_thre=0.5,
                      strip_rows=None):
    # Only the tiny raw input gets a layout change; all intermediates stay in
    # VMEM inside the fused kernel and the outputs come out channel-first.
    x = jnp.transpose(x_nchw, (0, 2, 3, 1)).astype(jnp.float32)
    out = _segmentor_pallas(x, params, seg_thre, endp_thre, strip_rows)
    output = {
        "bi_seg": out[:, 0:1],      # pred['seg'] logits
        "endp_est": out[:, 1:2],    # pred['endp'] logits
        "seg_prob": out[:, 2:3],    # infer_validate: sigmoid
        "endp_prob": out[:, 3:4],
        "seg_mask": out[:, 4:5],    # infer_validate: > seg_thre
        "endp_mask": out[:, 5:6],   # infer_validate: > endp_thre
    }
    # TODO(synk): training branch (pcencoder.loss) and cfg.view display
    # rendering (get_pred_seg_endp_displays) are loss/plotting glue with no
    # Pallas kernel equivalent.
    return output


# ----------------------------------------------------------------------------
# Pure-JAX f32 reference for validation
# ----------------------------------------------------------------------------
def reference_forward(x_nchw, params, seg_thre=0.5, endp_thre=0.5):
    x = jnp.transpose(x_nchw, (0, 2, 3, 1)).astype(jnp.float32)
    dn = ("NHWC", "HWIO", "NHWC")
    h1 = jnp.maximum(
        lax.conv_general_dilated(x, params["w1"], (1, 1), "SAME",
                                 dimension_numbers=dn) + params["b1"], 0.0)
    h2 = jnp.maximum(
        lax.conv_general_dilated(h1, params["w2"], (1, 1), "SAME",
                                 dimension_numbers=dn) + params["b2"], 0.0)
    logits = jnp.einsum("bhwc,co->bhwo", h2, params["w_heads"]) \
        + params["b_heads"]
    prob = jax.nn.sigmoid(logits)
    thr = jnp.array([seg_thre, endp_thre], jnp.float32)
    mask = (prob > thr).astype(jnp.float32)
    return logits, prob, mask


def init_params(key, c_in, hidden, std=0.2):
    ks = jax.random.split(key, 6)
    return {
        "w1": jax.random.normal(ks[0], (3, 3, c_in, hidden), jnp.float32) * std,
        "b1": jax.random.normal(ks[1], (hidden,), jnp.float32) * 0.1,
        "w2": jax.random.normal(ks[2], (3, 3, hidden, hidden), jnp.float32) * std,
        "b2": jax.random.normal(ks[3], (hidden,), jnp.float32) * 0.1,
        "w_heads": jax.random.normal(ks[4], (hidden, 2), jnp.float32) * std,
        "b_heads": jax.random.normal(ks[5], (2,), jnp.float32) * 0.1,
    }


if __name__ == "__main__":
    B, C, H, W = 2, 4, 16, 16
    HIDDEN = 32
    key = jax.random.PRNGKey(0)
    kx, kp = jax.random.split(key)
    x = jax.random.normal(kx, (B, C, H, W), jnp.float32)
    params = init_params(kp, C, HIDDEN)

    # strip_rows=8 -> 2 row strips, so the inter-strip halo-recompute path is
    # exercised even at the toy 16x16 size (out block = 8*16 = 128 lanes).
    out = segmentor_forward(x, params, seg_thre=0.5, endp_thre=0.5,
                            strip_rows=8)
    jax.block_until_ready(out)

    # Correctness check vs. the pure-f32 JAX reference.  Kernel matmuls use
    # bf16 operands with f32 accumulation, so tolerances are loosened and the
    # mask check ignores pixels whose reference probability sits right on the
    # 0.5 threshold (where bf16 rounding can legitimately flip the strict '>').
    ref_logits, ref_prob, ref_mask = reference_forward(x, params)
    got_logits = jnp.stack([out["bi_seg"][:, 0], out["endp_est"][:, 0]], -1)
    got_prob = jnp.stack([out["seg_prob"][:, 0], out["endp_prob"][:, 0]], -1)
    got_mask = jnp.stack([out["seg_mask"][:, 0], out["endp_mask"][:, 0]], -1)

    assert jnp.allclose(got_logits, ref_logits, atol=3e-1, rtol=1e-1), \
        float(jnp.max(jnp.abs(got_logits - ref_logits)))
    assert jnp.allclose(got_prob, ref_prob, atol=8e-2, rtol=8e-2), \
        float(jnp.max(jnp.abs(got_prob - ref_prob)))
    near_threshold = jnp.abs(ref_prob - 0.5) < 8e-2
    assert bool(jnp.all((got_mask == ref_mask) | near_threshold))

    print("KERNEL_OK")
</pallas_src>

<mosaic_0001>
module attributes {stable_mosaic.version = 11 : i64} {
  func.func @_segmentor_fused_kernel(%arg0: i32, %arg1: i32, %arg2: memref<1x8x16x4xf32, #tpu.memory_space<vmem>>, %arg3: memref<1x2x16x4xf32, #tpu.memory_space<vmem>>, %arg4: memref<1x2x16x4xf32, #tpu.memory_space<vmem>>, %arg5: memref<9x4x32xbf16, #tpu.memory_space<vmem>>, %arg6: memref<1x32xf32, #tpu.memory_space<vmem>>, %arg7: memref<9x32x32xbf16, #tpu.memory_space<vmem>>, %arg8: memref<1x32xf32, #tpu.memory_space<vmem>>, %arg9: memref<2x32xf32, #tpu.memory_space<vmem>>, %arg10: memref<2xf32, #tpu.memory_space<smem>>, %arg11: memref<2xf32, #tpu.memory_space<smem>>, %arg12: memref<1x6x128xf32, #tpu.memory_space<vmem>>, %arg13: memref<12x18x4xbf16, #tpu.memory_space<vmem>>, %arg14: memref<10x18x32xbf16, #tpu.memory_space<vmem>>) attributes {dimension_semantics = [#tpu.dimension_semantics<parallel>, #tpu.dimension_semantics<parallel>], iteration_bounds = array<i64: 2, 2>, scalar_prefetch = 0 : i64, scratch_operands = 2 : i64, tpu.core_type = #tpu.core_type<tc>, window_params = [{transform_indices = @transform_0, window_bounds = array<i64: 1, 8, 16, 4>}, {transform_indices = @transform_1, window_bounds = array<i64: 1, 2, 16, 4>}, {transform_indices = @transform_2, window_bounds = array<i64: 1, 2, 16, 4>}, {pipeline_mode = #tpu.pipeline_mode<synchronous>, transform_indices = @transform_3, window_bounds = array<i64: 9, 4, 32>}, {pipeline_mode = #tpu.pipeline_mode<synchronous>, transform_indices = @transform_4, window_bounds = array<i64: 1, 32>}, {pipeline_mode = #tpu.pipeline_mode<synchronous>, transform_indices = @transform_5, window_bounds = array<i64: 9, 32, 32>}, {pipeline_mode = #tpu.pipeline_mode<synchronous>, transform_indices = @transform_6, window_bounds = array<i64: 1, 32>}, {pipeline_mode = #tpu.pipeline_mode<synchronous>, transform_indices = @transform_7, window_bounds = array<i64: 2, 32>}, {transform_indices = @transform_8, window_bounds = array<i64: 2>}, {transform_indices = @transform_9, window_bounds = array<i64: 2>}, {transform_indices = @transform_10, window_bounds = array<i64: 1, 6, 128>}]} {
    %cst = arith.constant 0.000000e+00 : bf16
    %0 = vector.broadcast %cst : bf16 to vector<12x1x4xbf16>
    %c0 = arith.constant 0 : index
    %c0_0 = arith.constant 0 : index
    %c0_1 = arith.constant 0 : index
    %1 = vector.load %arg13[%c0, %c0_0, %c0_1] : memref<12x18x4xbf16, #tpu.memory_space<vmem>>, vector<12x1x4xbf16>
    tpu.vector_store %arg13[%c0, %c0_0, %c0_1], %0 {strides = array<i32>} : memref<12x18x4xbf16, #tpu.memory_space<vmem>>, vector<12x1x4xbf16>,
    %c0_2 = arith.constant 0 : index
    %c17 = arith.constant 17 : index
    %c0_3 = arith.constant 0 : index
    %2 = vector.load %arg13[%c0_2, %c17, %c0_3] : memref<12x18x4xbf16, #tpu.memory_space<vmem>>, vector<12x1x4xbf16>
    tpu.vector_store %arg13[%c0_2, %c17, %c0_3], %0 {strides = array<i32>} : memref<12x18x4xbf16, #tpu.memory_space<vmem>>, vector<12x1x4xbf16>,
    %c0_4 = arith.constant 0 : index
    %c0_5 = arith.constant 0 : index
    %c0_6 = arith.constant 0 : index
    %c0_7 = arith.constant 0 : index
    %3 = vector.load %arg3[%c0_4, %c0_5, %c0_6, %c0_7] : memref<1x2x16x4xf32, #tpu.memory_space<vmem>>, vector<1x2x16x4xf32>
    %4 = vector.shape_cast %3 : vector<1x2x16x4xf32> to vector<2x16x4xf32>
    %5 = arith.truncf %4 : vector<2x16x4xf32> to vector<2x16x4xbf16>
    %c0_8 = arith.constant 0 : index
    %c1 = arith.constant 1 : index
    %c0_9 = arith.constant 0 : index
    %6 = vector.load %arg13[%c0_8, %c1, %c0_9] : memref<12x18x4xbf16, #tpu.memory_space<vmem>>, vector<2x16x4xbf16>
    tpu.vector_store %arg13[%c0_8, %c1, %c0_9], %5 {strides = array<i32>} : memref<12x18x4xbf16, #tpu.memory_space<vmem>>, vector<2x16x4xbf16>,
    %c0_10 = arith.constant 0 : index
    %c0_11 = arith.constant 0 : index
    %c0_12 = arith.constant 0 : index
    %c0_13 = arith.constant 0 : index
    %7 = vector.load %arg2[%c0_10, %c0_11, %c0_12, %c0_13] : memref<1x8x16x4xf32, #tpu.memory_space<vmem>>, vector<1x8x16x4xf32>
    %8 = vector.shape_cast %7 : vector<1x8x16x4xf32> to vector<8x16x4xf32>
    %9 = arith.truncf %8 : vector<8x16x4xf32> to vector<8x16x4xbf16>
    %c2 = arith.constant 2 : index
    %c1_14 = arith.constant 1 : index
    %c0_15 = arith.constant 0 : index
    %10 = vector.load %arg13[%c2, %c1_14, %c0_15] : memref<12x18x4xbf16, #tpu.memory_space<vmem>>, vector<8x16x4xbf16>
    tpu.vector_store %arg13[%c2, %c1_14, %c0_15], %9 {strides = array<i32>} : memref<12x18x4xbf16, #tpu.memory_space<vmem>>, vector<8x16x4xbf16>,
    %c0_16 = arith.constant 0 : index
    %c0_17 = arith.constant 0 : index
    %c0_18 = arith.constant 0 : index
    %c0_19 = arith.constant 0 : index
    %11 = vector.load %arg4[%c0_16, %c0_17, %c0_18, %c0_19] : memref<1x2x16x4xf32, #tpu.memory_space<vmem>>, vector<1x2x16x4xf32>
    %12 = vector.shape_cast %11 : vector<1x2x16x4xf32> to vector<2x16x4xf32>
    %13 = arith.truncf %12 : vector<2x16x4xf32> to vector<2x16x4xbf16>
    %c10 = arith.constant 10 : index
    %c1_20 = arith.constant 1 : index
    %c0_21 = arith.constant 0 : index
    %14 = vector.load %arg13[%c10, %c1_20, %c0_21] : memref<12x18x4xbf16, #tpu.memory_space<vmem>>, vector<2x16x4xbf16>
    tpu.vector_store %arg13[%c10, %c1_20, %c0_21], %13 {strides = array<i32>} : memref<12x18x4xbf16, #tpu.memory_space<vmem>>, vector<2x16x4xbf16>,
    %c0_i32 = arith.constant 0 : i32
    %15 = arith.cmpi eq, %arg1, %c0_i32 : i32
    %16 = arith.extui %15 : i1 to i32
    %c0_i32_22 = arith.constant 0 : i32
    %17 = arith.cmpi ne, %16, %c0_i32_22 : i32
    scf.if %17 {
      %cst_143 = arith.constant 0.000000e+00 : bf16
      %189 = vector.broadcast %cst_143 : bf16 to vector<2x18x4xbf16>
      %c0_144 = arith.constant 0 : index
      %c0_145 = arith.constant 0 : index
      %c0_146 = arith.constant 0 : index
      %190 = vector.load %arg13[%c0_144, %c0_145, %c0_146] : memref<12x18x4xbf16, #tpu.memory_space<vmem>>, vector<2x18x4xbf16>
      tpu.vector_store %arg13[%c0_144, %c0_145, %c0_146], %189 {strides = array<i32>} : memref<12x18x4xbf16, #tpu.memory_space<vmem>>, vector<2x18x4xbf16>,
    } else {
    }
    %c1_i32 = arith.constant 1 : i32
    %18 = arith.cmpi eq, %arg1, %c1_i32 : i32
    %19 = arith.extui %18 : i1 to i32
    %c0_i32_23 = arith.constant 0 : i32
    %20 = arith.cmpi ne, %19, %c0_i32_23 : i32
    scf.if %20 {
      %cst_143 = arith.constant 0.000000e+00 : bf16
      %189 = vector.broadcast %cst_143 : bf16 to vector<2x18x4xbf16>
      %c10_144 = arith.constant 10 : index
      %c0_145 = arith.constant 0 : index
      %c0_146 = arith.constant 0 : index
      %190 = vector.load %arg13[%c10_144, %c0_145, %c0_146] : memref<12x18x4xbf16, #tpu.memory_space<vmem>>, vector<2x18x4xbf16>
      tpu.vector_store %arg13[%c10_144, %c0_145, %c0_146], %189 {strides = array<i32>} : memref<12x18x4xbf16, #tpu.memory_space<vmem>>, vector<2x18x4xbf16>,
    } else {
    }
    %c0_24 = arith.constant 0 : index
    %c0_25 = arith.constant 0 : index
    %c0_26 = arith.constant 0 : index
    %21 = vector.load %arg13[%c0_24, %c0_25, %c0_26] : memref<12x18x4xbf16, #tpu.memory_space<vmem>>, vector<12x18x4xbf16>
    %22 = vector.extract_strided_slice %21 {offsets = [0, 0, 0], sizes = [12, 16, 4], strides = [1, 1, 1]} : vector<12x18x4xbf16> to vector<12x16x4xbf16>
    %23 = vector.extract_strided_slice %22 {offsets = [0, 0, 0], sizes = [10, 16, 4], strides = [1, 1, 1]} : vector<12x16x4xbf16> to vector<10x16x4xbf16>
    %c0_27 = arith.constant 0 : index
    %c0_28 = arith.constant 0 : index
    %c0_29 = arith.constant 0 : index
    %24 = vector.load %arg5[%c0_27, %c0_28, %c0_29] : memref<9x4x32xbf16, #tpu.memory_space<vmem>>, vector<1x4x32xbf16>
    %25 = vector.shape_cast %24 : vector<1x4x32xbf16> to vector<4x32xbf16>
    %cst_30 = arith.constant dense<0.000000e+00> : vector<10x16x32xf32>
    %26 = tpu.matmul %23, %25, %cst_30 {dimension_numbers = #tpu.dot_dimension_numbers<[2], [0], [0, 1], [1], [0, 0, 0, 1, 1, 1], [], []>} : vector<10x16x4xbf16>, vector<4x32xbf16>, vector<10x16x32xf32> -> vector<10x16x32xf32>
    %27 = vector.extract_strided_slice %22 {offsets = [1, 0, 0], sizes = [10, 16, 4], strides = [1, 1, 1]} : vector<12x16x4xbf16> to vector<10x16x4xbf16>
    %c3 = arith.constant 3 : index
    %c0_31 = arith.constant 0 : index
    %c0_32 = arith.constant 0 : index
    %28 = vector.load %arg5[%c3, %c0_31, %c0_32] : memref<9x4x32xbf16, #tpu.memory_space<vmem>>, vector<1x4x32xbf16>
    %29 = vector.shape_cast %28 : vector<1x4x32xbf16> to vector<4x32xbf16>
    %cst_33 = arith.constant dense<0.000000e+00> : vector<10x16x32xf32>
    %30 = tpu.matmul %27, %29, %cst_33 {dimension_numbers = #tpu.dot_dimension_numbers<[2], [0], [0, 1], [1], [0, 0, 0, 1, 1, 1], [], []>} : vector<10x16x4xbf16>, vector<4x32xbf16>, vector<10x16x32xf32> -> vector<10x16x32xf32>
    %31 = arith.addf %26, %30 : vector<10x16x32xf32>
    %32 = vector.extract_strided_slice %22 {offsets = [2, 0, 0], sizes = [10, 16, 4], strides = [1, 1, 1]} : vector<12x16x4xbf16> to vector<10x16x4xbf16>
    %c6 = arith.constant 6 : index
    %c0_34 = arith.constant 0 : index
    %c0_35 = arith.constant 0 : index
    %33 = vector.load %arg5[%c6, %c0_34, %c0_35] : memref<9x4x32xbf16, #tpu.memory_space<vmem>>, vector<1x4x32xbf16>
    %34 = vector.shape_cast %33 : vector<1x4x32xbf16> to vector<4x32xbf16>
    %cst_36 = arith.constant dense<0.000000e+00> : vector<10x16x32xf32>
    %35 = tpu.matmul %32, %34, %cst_36 {dimension_numbers = #tpu.dot_dimension_numbers<[2], [0], [0, 1], [1], [0, 0, 0, 1, 1, 1], [], []>} : vector<10x16x4xbf16>, vector<4x32xbf16>, vector<10x16x32xf32> -> vector<10x16x32xf32>
    %36 = arith.addf %31, %35 : vector<10x16x32xf32>
    %37 = vector.extract_strided_slice %21 {offsets = [0, 1, 0], sizes = [12, 16, 4], strides = [1, 1, 1]} : vector<12x18x4xbf16> to vector<12x16x4xbf16>
    %38 = vector.extract_strided_slice %37 {offsets = [0, 0, 0], sizes = [10, 16, 4], strides = [1, 1, 1]} : vector<12x16x4xbf16> to vector<10x16x4xbf16>
    %c1_37 = arith.constant 1 : index
    %c0_38 = arith.constant 0 : index
    %c0_39 = arith.constant 0 : index
    %39 = vector.load %arg5[%c1_37, %c0_38, %c0_39] : memref<9x4x32xbf16, #tpu.memory_space<vmem>>, vector<1x4x32xbf16>
    %40 = vector.shape_cast %39 : vector<1x4x32xbf16> to vector<4x32xbf16>
    %cst_40 = arith.constant dense<0.000000e+00> : vector<10x16x32xf32>
    %41 = tpu.matmul %38, %40, %cst_40 {dimension_numbers = #tpu.dot_dimension_numbers<[2], [0], [0, 1], [1], [0, 0, 0, 1, 1, 1], [], []>} : vector<10x16x4xbf16>, vector<4x32xbf16>, vector<10x16x32xf32> -> vector<10x16x32xf32>
    %42 = arith.addf %36, %41 : vector<10x16x32xf32>
    %43 = vector.extract_strided_slice %37 {offsets = [1, 0, 0], sizes = [10, 16, 4], strides = [1, 1, 1]} : vector<12x16x4xbf16> to vector<10x16x4xbf16>
    %c4 = arith.constant 4 : index
    %c0_41 = arith.constant 0 : index
    %c0_42 = arith.constant 0 : index
    %44 = vector.load %arg5[%c4, %c0_41, %c0_42] : memref<9x4x32xbf16, #tpu.memory_space<vmem>>, vector<1x4x32xbf16>
    %45 = vector.shape_cast %44 : vector<1x4x32xbf16> to vector<4x32xbf16>
    %cst_43 = arith.constant dense<0.000000e+00> : vector<10x16x32xf32>
    %46 = tpu.matmul %43, %45, %cst_43 {dimension_numbers = #tpu.dot_dimension_numbers<[2], [0], [0, 1], [1], [0, 0, 0, 1, 1, 1], [], []>} : vector<10x16x4xbf16>, vector<4x32xbf16>, vector<10x16x32xf32> -> vector<10x16x32xf32>
    %47 = arith.addf %42, %46 : vector<10x16x32xf32>
    %48 = vector.extract_strided_slice %37 {offsets = [2, 0, 0], sizes = [10, 16, 4], strides = [1, 1, 1]} : vector<12x16x4xbf16> to vector<10x16x4xbf16>
    %c7 = arith.constant 7 : index
    %c0_44 = arith.constant 0 : index
    %c0_45 = arith.constant 0 : index
    %49 = vector.load %arg5[%c7, %c0_44, %c0_45] : memref<9x4x32xbf16, #tpu.memory_space<vmem>>, vector<1x4x32xbf16>
    %50 = vector.shape_cast %49 : vector<1x4x32xbf16> to vector<4x32xbf16>
    %cst_46 = arith.constant dense<0.000000e+00> : vector<10x16x32xf32>
    %51 = tpu.matmul %48, %50, %cst_46 {dimension_numbers = #tpu.dot_dimension_numbers<[2], [0], [0, 1], [1], [0, 0, 0, 1, 1, 1], [], []>} : vector<10x16x4xbf16>, vector<4x32xbf16>, vector<10x16x32xf32> -> vector<10x16x32xf32>
    %52 = arith.addf %47, %51 : vector<10x16x32xf32>
    %53 = vector.extract_strided_slice %21 {offsets = [0, 2, 0], sizes = [12, 16, 4], strides = [1, 1, 1]} : vector<12x18x4xbf16> to vector<12x16x4xbf16>
    %54 = vector.extract_strided_slice %53 {offsets = [0, 0, 0], sizes = [10, 16, 4], strides = [1, 1, 1]} : vector<12x16x4xbf16> to vector<10x16x4xbf16>
    %c2_47 = arith.constant 2 : index
    %c0_48 = arith.constant 0 : index
    %c0_49 = arith.constant 0 : index
    %55 = vector.load %arg5[%c2_47, %c0_48, %c0_49] : memref<9x4x32xbf16, #tpu.memory_space<vmem>>, vector<1x4x32xbf16>
    %56 = vector.shape_cast %55 : vector<1x4x32xbf16> to vector<4x32xbf16>
    %cst_50 = arith.constant dense<0.000000e+00> : vector<10x16x32xf32>
    %57 = tpu.matmul %54, %56, %cst_50 {dimension_numbers = #tpu.dot_dimension_numbers<[2], [0], [0, 1], [1], [0, 0, 0, 1, 1, 1], [], []>} : vector<10x16x4xbf16>, vector<4x32xbf16>, vector<10x16x32xf32> -> vector<10x16x32xf32>
    %58 = arith.addf %52, %57 : vector<10x16x32xf32>
    %59 = vector.extract_strided_slice %53 {offsets = [1, 0, 0], sizes = [10, 16, 4], strides = [1, 1, 1]} : vector<12x16x4xbf16> to vector<10x16x4xbf16>
    %c5 = arith.constant 5 : index
    %c0_51 = arith.constant 0 : index
    %c0_52 = arith.constant 0 : index
    %60 = vector.load %arg5[%c5, %c0_51, %c0_52] : memref<9x4x32xbf16, #tpu.memory_space<vmem>>, vector<1x4x32xbf16>
    %61 = vector.shape_cast %60 : vector<1x4x32xbf16> to vector<4x32xbf16>
    %cst_53 = arith.constant dense<0.000000e+00> : vector<10x16x32xf32>
    %62 = tpu.matmul %59, %61, %cst_53 {dimension_numbers = #tpu.dot_dimension_numbers<[2], [0], [0, 1], [1], [0, 0, 0, 1, 1, 1], [], []>} : vector<10x16x4xbf16>, vector<4x32xbf16>, vector<10x16x32xf32> -> vector<10x16x32xf32>
    %63 = arith.addf %58, %62 : vector<10x16x32xf32>
    %64 = vector.extract_strided_slice %53 {offsets = [2, 0, 0], sizes = [10, 16, 4], strides = [1, 1, 1]} : vector<12x16x4xbf16> to vector<10x16x4xbf16>
    %c8 = arith.constant 8 : index
    %c0_54 = arith.constant 0 : index
    %c0_55 = arith.constant 0 : index
    %65 = vector.load %arg5[%c8, %c0_54, %c0_55] : memref<9x4x32xbf16, #tpu.memory_space<vmem>>, vector<1x4x32xbf16>
    %66 = vector.shape_cast %65 : vector<1x4x32xbf16> to vector<4x32xbf16>
    %cst_56 = arith.constant dense<0.000000e+00> : vector<10x16x32xf32>
    %67 = tpu.matmul %64, %66, %cst_56 {dimension_numbers = #tpu.dot_dimension_numbers<[2], [0], [0, 1], [1], [0, 0, 0, 1, 1, 1], [], []>} : vector<10x16x4xbf16>, vector<4x32xbf16>, vector<10x16x32xf32> -> vector<10x16x32xf32>
    %68 = arith.addf %63, %67 : vector<10x16x32xf32>
    %c0_57 = arith.constant 0 : index
    %c0_58 = arith.constant 0 : index
    %69 = vector.load %arg6[%c0_57, %c0_58] : memref<1x32xf32, #tpu.memory_space<vmem>>, vector<1x32xf32>
    %70 = vector.shape_cast %69 : vector<1x32xf32> to vector<1x1x32xf32>
    %71 = vector.broadcast %70 : vector<1x1x32xf32> to vector<10x16x32xf32>
    %72 = arith.addf %68, %71 : vector<10x16x32xf32>
    %cst_59 = arith.constant 0.000000e+00 : f32
    %73 = vector.broadcast %cst_59 : f32 to vector<10x16x32xf32>
    %74 = arith.maximumf %72, %73 : vector<10x16x32xf32>
    %cst_60 = arith.constant 0.000000e+00 : bf16
    %75 = vector.broadcast %cst_60 : bf16 to vector<10x1x32xbf16>
    %c0_61 = arith.constant 0 : index
    %c0_62 = arith.constant 0 : index
    %c0_63 = arith.constant 0 : index
    %76 = vector.load %arg14[%c0_61, %c0_62, %c0_63] : memref<10x18x32xbf16, #tpu.memory_space<vmem>>, vector<10x1x32xbf16>
    tpu.vector_store %arg14[%c0_61, %c0_62, %c0_63], %75 {strides = array<i32>} : memref<10x18x32xbf16, #tpu.memory_space<vmem>>, vector<10x1x32xbf16>,
    %c0_64 = arith.constant 0 : index
    %c17_65 = arith.constant 17 : index
    %c0_66 = arith.constant 0 : index
    %77 = vector.load %arg14[%c0_64, %c17_65, %c0_66] : memref<10x18x32xbf16, #tpu.memory_space<vmem>>, vector<10x1x32xbf16>
    tpu.vector_store %arg14[%c0_64, %c17_65, %c0_66], %75 {strides = array<i32>} : memref<10x18x32xbf16, #tpu.memory_space<vmem>>, vector<10x1x32xbf16>,
    %78 = arith.truncf %74 : vector<10x16x32xf32> to vector<10x16x32xbf16>
    %c0_67 = arith.constant 0 : index
    %c1_68 = arith.constant 1 : index
    %c0_69 = arith.constant 0 : index
    %79 = vector.load %arg14[%c0_67, %c1_68, %c0_69] : memref<10x18x32xbf16, #tpu.memory_space<vmem>>, vector<10x16x32xbf16>
    tpu.vector_store %arg14[%c0_67, %c1_68, %c0_69], %78 {strides = array<i32>} : memref<10x18x32xbf16, #tpu.memory_space<vmem>>, vector<10x16x32xbf16>,
    %c0_i32_70 = arith.constant 0 : i32
    %80 = arith.cmpi eq, %arg1, %c0_i32_70 : i32
    %81 = arith.extui %80 : i1 to i32
    %c0_i32_71 = arith.constant 0 : i32
    %82 = arith.cmpi ne, %81, %c0_i32_71 : i32
    scf.if %82 {
      %cst_143 = arith.constant 0.000000e+00 : bf16
      %189 = vector.broadcast %cst_143 : bf16 to vector<1x18x32xbf16>
      %c0_144 = arith.constant 0 : index
      %c0_145 = arith.constant 0 : index
      %c0_146 = arith.constant 0 : index
      %190 = vector.load %arg14[%c0_144, %c0_145, %c0_146] : memref<10x18x32xbf16, #tpu.memory_space<vmem>>, vector<1x18x32xbf16>
      tpu.vector_store %arg14[%c0_144, %c0_145, %c0_146], %189 {strides = array<i32>} : memref<10x18x32xbf16, #tpu.memory_space<vmem>>, vector<1x18x32xbf16>,
    } else {
    }
    %c1_i32_72 = arith.constant 1 : i32
    %83 = arith.cmpi eq, %arg1, %c1_i32_72 : i32
    %84 = arith.extui %83 : i1 to i32
    %c0_i32_73 = arith.constant 0 : i32
    %85 = arith.cmpi ne, %84, %c0_i32_73 : i32
    scf.if %85 {
      %cst_143 = arith.constant 0.000000e+00 : bf16
      %189 = vector.broadcast %cst_143 : bf16 to vector<1x18x32xbf16>
      %c9 = arith.constant 9 : index
      %c0_144 = arith.constant 0 : index
      %c0_145 = arith.constant 0 : index
      %190 = vector.load %arg14[%c9, %c0_144, %c0_145] : memref<10x18x32xbf16, #tpu.memory_space<vmem>>, vector<1x18x32xbf16>
      tpu.vector_store %arg14[%c9, %c0_144, %c0_145], %189 {strides = array<i32>} : memref<10x18x32xbf16, #tpu.memory_space<vmem>>, vector<1x18x32xbf16>,
    } else {
    }
    %c0_74 = arith.constant 0 : index
    %c0_75 = arith.constant 0 : index
    %c0_76 = arith.constant 0 : index
    %86 = vector.load %arg14[%c0_74, %c0_75, %c0_76] : memref<10x18x32xbf16, #tpu.memory_space<vmem>>, vector<10x18x32xbf16>
    %87 = vector.extract_strided_slice %86 {offsets = [0, 0, 0], sizes = [10, 16, 32], strides = [1, 1, 1]} : vector<10x18x32xbf16> to vector<10x16x32xbf16>
    %88 = vector.extract_strided_slice %87 {offsets = [0, 0, 0], sizes = [8, 16, 32], strides = [1, 1, 1]} : vector<10x16x32xbf16> to vector<8x16x32xbf16>
    %c0_77 = arith.constant 0 : index
    %c0_78 = arith.constant 0 : index
    %c0_79 = arith.constant 0 : index
    %89 = vector.load %arg7[%c0_77, %c0_78, %c0_79] : memref<9x32x32xbf16, #tpu.memory_space<vmem>>, vector<1x32x32xbf16>
    %90 = vector.shape_cast %89 : vector<1x32x32xbf16> to vector<32x32xbf16>
    %cst_80 = arith.constant dense<0.000000e+00> : vector<8x16x32xf32>
    %91 = tpu.matmul %88, %90, %cst_80 {dimension_numbers = #tpu.dot_dimension_numbers<[2], [0], [0, 1], [1], [0, 0, 0, 1, 1, 1], [], []>} : vector<8x16x32xbf16>, vector<32x32xbf16>, vector<8x16x32xf32> -> vector<8x16x32xf32>
    %92 = vector.extract_strided_slice %87 {offsets = [1, 0, 0], sizes = [8, 16, 32], strides = [1, 1, 1]} : vector<10x16x32xbf16> to vector<8x16x32xbf16>
    %c3_81 = arith.constant 3 : index
    %c0_82 = arith.constant 0 : index
    %c0_83 = arith.constant 0 : index
    %93 = vector.load %arg7[%c3_81, %c0_82, %c0_83] : memref<9x32x32xbf16, #tpu.memory_space<vmem>>, vector<1x32x32xbf16>
    %94 = vector.shape_cast %93 : vector<1x32x32xbf16> to vector<32x32xbf16>
    %cst_84 = arith.constant dense<0.000000e+00> : vector<8x16x32xf32>
    %95 = tpu.matmul %92, %94, %cst_84 {dimension_numbers = #tpu.dot_dimension_numbers<[2], [0], [0, 1], [1], [0, 0, 0, 1, 1, 1], [], []>} : vector<8x16x32xbf16>, vector<32x32xbf16>, vector<8x16x32xf32> -> vector<8x16x32xf32>
    %96 = arith.addf %91, %95 : vector<8x16x32xf32>
    %97 = vector.extract_strided_slice %87 {offsets = [2, 0, 0], sizes = [8, 16, 32], strides = [1, 1, 1]} : vector<10x16x32xbf16> to vector<8x16x32xbf16>
    %c6_85 = arith.constant 6 : index
    %c0_86 = arith.constant 0 : index
    %c0_87 = arith.constant 0 : index
    %98 = vector.load %arg7[%c6_85, %c0_86, %c0_87] : memref<9x32x32xbf16, #tpu.memory_space<vmem>>, vector<1x32x32xbf16>
    %99 = vector.shape_cast %98 : vector<1x32x32xbf16> to vector<32x32xbf16>
    %cst_88 = arith.constant dense<0.000000e+00> : vector<8x16x32xf32>
    %100 = tpu.matmul %97, %99, %cst_88 {dimension_numbers = #tpu.dot_dimension_numbers<[2], [0], [0, 1], [1], [0, 0, 0, 1, 1, 1], [], []>} : vector<8x16x32xbf16>, vector<32x32xbf16>, vector<8x16x32xf32> -> vector<8x16x32xf32>
    %101 = arith.addf %96, %100 : vector<8x16x32xf32>
    %102 = vector.extract_strided_slice %86 {offsets = [0, 1, 0], sizes = [10, 16, 32], strides = [1, 1, 1]} : vector<10x18x32xbf16> to vector<10x16x32xbf16>
    %103 = vector.extract_strided_slice %102 {offsets = [0, 0, 0], sizes = [8, 16, 32], strides = [1, 1, 1]} : vector<10x16x32xbf16> to vector<8x16x32xbf16>
    %c1_89 = arith.constant 1 : index
    %c0_90 = arith.constant 0 : index
    %c0_91 = arith.constant 0 : index
    %104 = vector.load %arg7[%c1_89, %c0_90, %c0_91] : memref<9x32x32xbf16, #tpu.memory_space<vmem>>, vector<1x32x32xbf16>
    %105 = vector.shape_cast %104 : vector<1x32x32xbf16> to vector<32x32xbf16>
    %cst_92 = arith.constant dense<0.000000e+00> : vector<8x16x32xf32>
    %106 = tpu.matmul %103, %105, %cst_92 {dimension_numbers = #tpu.dot_dimension_numbers<[2], [0], [0, 1], [1], [0, 0, 0, 1, 1, 1], [], []>} : vector<8x16x32xbf16>, vector<32x32xbf16>, vector<8x16x32xf32> -> vector<8x16x32xf32>
    %107 = arith.addf %101, %106 : vector<8x16x32xf32>
    %108 = vector.extract_strided_slice %102 {offsets = [1, 0, 0], sizes = [8, 16, 32], strides = [1, 1, 1]} : vector<10x16x32xbf16> to vector<8x16x32xbf16>
    %c4_93 = arith.constant 4 : index
    %c0_94 = arith.constant 0 : index
    %c0_95 = arith.constant 0 : index
    %109 = vector.load %arg7[%c4_93, %c0_94, %c0_95] : memref<9x32x32xbf16, #tpu.memory_space<vmem>>, vector<1x32x32xbf16>
    %110 = vector.shape_cast %109 : vector<1x32x32xbf16> to vector<32x32xbf16>
    %cst_96 = arith.constant dense<0.000000e+00> : vector<8x16x32xf32>
    %111 = tpu.matmul %108, %110, %cst_96 {dimension_numbers = #tpu.dot_dimension_numbers<[2], [0], [0, 1], [1], [0, 0, 0, 1, 1, 1], [], []>} : vector<8x16x32xbf16>, vector<32x32xbf16>, vector<8x16x32xf32> -> vector<8x16x32xf32>
    %112 = arith.addf %107, %111 : vector<8x16x32xf32>
    %113 = vector.extract_strided_slice %102 {offsets = [2, 0, 0], sizes = [8, 16, 32], strides = [1, 1, 1]} : vector<10x16x32xbf16> to vector<8x16x32xbf16>
    %c7_97 = arith.constant 7 : index
    %c0_98 = arith.constant 0 : index
    %c0_99 = arith.constant 0 : index
    %114 = vector.load %arg7[%c7_97, %c0_98, %c0_99] : memref<9x32x32xbf16, #tpu.memory_space<vmem>>, vector<1x32x32xbf16>
    %115 = vector.shape_cast %114 : vector<1x32x32xbf16> to vector<32x32xbf16>
    %cst_100 = arith.constant dense<0.000000e+00> : vector<8x16x32xf32>
    %116 = tpu.matmul %113, %115, %cst_100 {dimension_numbers = #tpu.dot_dimension_numbers<[2], [0], [0, 1], [1], [0, 0, 0, 1, 1, 1], [], []>} : vector<8x16x32xbf16>, vector<32x32xbf16>, vector<8x16x32xf32> -> vector<8x16x32xf32>
    %117 = arith.addf %112, %116 : vector<8x16x32xf32>
    %118 = vector.extract_strided_slice %86 {offsets = [0, 2, 0], sizes = [10, 16, 32], strides = [1, 1, 1]} : vector<10x18x32xbf16> to vector<10x16x32xbf16>
    %119 = vector.extract_strided_slice %118 {offsets = [0, 0, 0], sizes = [8, 16, 32], strides = [1, 1, 1]} : vector<10x16x32xbf16> to vector<8x16x32xbf16>
    %c2_101 = arith.constant 2 : index
    %c0_102 = arith.constant 0 : index
    %c0_103 = arith.constant 0 : index
    %120 = vector.load %arg7[%c2_101, %c0_102, %c0_103] : memref<9x32x32xbf16, #tpu.memory_space<vmem>>, vector<1x32x32xbf16>
    %121 = vector.shape_cast %120 : vector<1x32x32xbf16> to vector<32x32xbf16>
    %cst_104 = arith.constant dense<0.000000e+00> : vector<8x16x32xf32>
    %122 = tpu.matmul %119, %121, %cst_104 {dimension_numbers = #tpu.dot_dimension_numbers<[2], [0], [0, 1], [1], [0, 0, 0, 1, 1, 1], [], []>} : vector<8x16x32xbf16>, vector<32x32xbf16>, vector<8x16x32xf32> -> vector<8x16x32xf32>
    %123 = arith.addf %117, %122 : vector<8x16x32xf32>
    %124 = vector.extract_strided_slice %118 {offsets = [1, 0, 0], sizes = [8, 16, 32], strides = [1, 1, 1]} : vector<10x16x32xbf16> to vector<8x16x32xbf16>
    %c5_105 = arith.constant 5 : index
    %c0_106 = arith.constant 0 : index
    %c0_107 = arith.constant 0 : index
    %125 = vector.load %arg7[%c5_105, %c0_106, %c0_107] : memref<9x32x32xbf16, #tpu.memory_space<vmem>>, vector<1x32x32xbf16>
    %126 = vector.shape_cast %125 : vector<1x32x32xbf16> to vector<32x32xbf16>
    %cst_108 = arith.constant dense<0.000000e+00> : vector<8x16x32xf32>
    %127 = tpu.matmul %124, %126, %cst_108 {dimension_numbers = #tpu.dot_dimension_numbers<[2], [0], [0, 1], [1], [0, 0, 0, 1, 1, 1], [], []>} : vector<8x16x32xbf16>, vector<32x32xbf16>, vector<8x16x32xf32> -> vector<8x16x32xf32>
    %128 = arith.addf %123, %127 : vector<8x16x32xf32>
    %129 = vector.extract_strided_slice %118 {offsets = [2, 0, 0], sizes = [8, 16, 32], strides = [1, 1, 1]} : vector<10x16x32xbf16> to vector<8x16x32xbf16>
    %c8_109 = arith.constant 8 : index
    %c0_110 = arith.constant 0 : index
    %c0_111 = arith.constant 0 : index
    %130 = vector.load %arg7[%c8_109, %c0_110, %c0_111] : memref<9x32x32xbf16, #tpu.memory_space<vmem>>, vector<1x32x32xbf16>
    %131 = vector.shape_cast %130 : vector<1x32x32xbf16> to vector<32x32xbf16>
    %cst_112 = arith.constant dense<0.000000e+00> : vector<8x16x32xf32>
    %132 = tpu.matmul %129, %131, %cst_112 {dimension_numbers = #tpu.dot_dimension_numbers<[2], [0], [0, 1], [1], [0, 0, 0, 1, 1, 1], [], []>} : vector<8x16x32xbf16>, vector<32x32xbf16>, vector<8x16x32xf32> -> vector<8x16x32xf32>
    %133 = arith.addf %128, %132 : vector<8x16x32xf32>
    %c0_113 = arith.constant 0 : index
    %c0_114 = arith.constant 0 : index
    %134 = vector.load %arg8[%c0_113, %c0_114] : memref<1x32xf32, #tpu.memory_space<vmem>>, vector<1x32xf32>
    %135 = vector.shape_cast %134 : vector<1x32xf32> to vector<1x1x32xf32>
    %136 = vector.broadcast %135 : vector<1x1x32xf32> to vector<8x16x32xf32>
    %137 = arith.addf %133, %136 : vector<8x16x32xf32>
    %cst_115 = arith.constant 0.000000e+00 : f32
    %138 = vector.broadcast %cst_115 : f32 to vector<8x16x32xf32>
    %139 = arith.maximumf %137, %138 : vector<8x16x32xf32>
    %140 = vector.shape_cast %139 : vector<8x16x32xf32> to vector<128x32xf32>
    %c0_116 = arith.constant 0 : index
    %c0_117 = arith.constant 0 : index
    %141 = vector.load %arg9[%c0_116, %c0_117] : memref<2x32xf32, #tpu.memory_space<vmem>>, vector<2x32xf32>
    %cst_118 = arith.constant dense<0.000000e+00> : vector<2x128xf32>
    %142 = tpu.matmul %141, %140, %cst_118 {dimension_numbers = #tpu.dot_dimension_numbers<[1], [1], [0], [0], [0, 0, 1, 0], [], []>} : vector<2x32xf32>, vector<128x32xf32>, vector<2x128xf32> -> vector<2x128xf32>
    %143 = vector.extract_strided_slice %142 {offsets = [0, 0], sizes = [1, 128], strides = [1, 1]} : vector<2x128xf32> to vector<1x128xf32>
    %c0_119 = arith.constant 0 : index
    %144 = memref.load %arg10[%c0_119] : memref<2xf32, #tpu.memory_space<smem>>
    %145 = vector.broadcast %144 : f32 to vector<1x128xf32>
    %146 = arith.addf %143, %145 : vector<1x128xf32>
    %c0_120 = arith.constant 0 : index
    %c0_121 = arith.constant 0 : index
    %c0_122 = arith.constant 0 : index
    %147 = vector.load %arg12[%c0_120, %c0_121, %c0_122] : memref<1x6x128xf32, #tpu.memory_space<vmem>>, vector<1x1x128xf32>
    %148 = vector.shape_cast %147 : vector<1x1x128xf32> to vector<1x128xf32>
    %149 = vector.shape_cast %146 : vector<1x128xf32> to vector<1x1x128xf32>
    tpu.vector_store %arg12[%c0_120, %c0_121, %c0_122], %149 {strides = array<i32>} : memref<1x6x128xf32, #tpu.memory_space<vmem>>, vector<1x1x128xf32>,
    %150 = arith.negf %146 : vector<1x128xf32>
    %151 = math.exp %150 : vector<1x128xf32>
    %cst_123 = arith.constant 1.000000e+00 : f32
    %152 = vector.broadcast %cst_123 : f32 to vector<1x128xf32>
    %153 = arith.addf %152, %151 : vector<1x128xf32>
    %154 = arith.divf %152, %153 : vector<1x128xf32>
    %c0_124 = arith.constant 0 : index
    %c2_125 = arith.constant 2 : index
    %c0_126 = arith.constant 0 : index
    %155 = vector.load %arg12[%c0_124, %c2_125, %c0_126] : memref<1x6x128xf32, #tpu.memory_space<vmem>>, vector<1x1x128xf32>
    %156 = vector.shape_cast %155 : vector<1x1x128xf32> to vector<1x128xf32>
    %157 = vector.shape_cast %154 : vector<1x128xf32> to vector<1x1x128xf32>
    tpu.vector_store %arg12[%c0_124, %c2_125, %c0_126], %157 {strides = array<i32>} : memref<1x6x128xf32, #tpu.memory_space<vmem>>, vector<1x1x128xf32>,
    %c0_127 = arith.constant 0 : index
    %158 = memref.load %arg11[%c0_127] : memref<2xf32, #tpu.memory_space<smem>>
    %159 = vector.broadcast %158 : f32 to vector<1x128xf32>
    %160 = arith.cmpf ogt, %146, %159 : vector<1x128xf32>
    %161 = arith.extui %160 : vector<1x128xi1> to vector<1x128xi32>
    %162 = arith.sitofp %161 : vector<1x128xi32> to vector<1x128xf32>
    %c0_128 = arith.constant 0 : index
    %c4_129 = arith.constant 4 : index
    %c0_130 = arith.constant 0 : index
    %163 = vector.load %arg12[%c0_128, %c4_129, %c0_130] : memref<1x6x128xf32, #tpu.memory_space<vmem>>, vector<1x1x128xf32>
    %164 = vector.shape_cast %163 : vector<1x1x128xf32> to vector<1x128xf32>
    %165 = vector.shape_cast %162 : vector<1x128xf32> to vector<1x1x128xf32>
    tpu.vector_store %arg12[%c0_128, %c4_129, %c0_130], %165 {strides = array<i32>} : memref<1x6x128xf32, #tpu.memory_space<vmem>>, vector<1x1x128xf32>,
    %166 = vector.extract_strided_slice %142 {offsets = [1, 0], sizes = [1, 128], strides = [1, 1]} : vector<2x128xf32> to vector<1x128xf32>
    %c1_131 = arith.constant 1 : index
    %167 = memref.load %arg10[%c1_131] : memref<2xf32, #tpu.memory_space<smem>>
    %168 = vector.broadcast %167 : f32 to vector<1x128xf32>
    %169 = arith.addf %166, %168 : vector<1x128xf32>
    %c0_132 = arith.constant 0 : index
    %c1_133 = arith.constant 1 : index
    %c0_134 = arith.constant 0 : index
    %170 = vector.load %arg12[%c0_132, %c1_133, %c0_134] : memref<1x6x128xf32, #tpu.memory_space<vmem>>, vector<1x1x128xf32>
    %171 = vector.shape_cast %170 : vector<1x1x128xf32> to vector<1x128xf32>
    %172 = vector.shape_cast %169 : vector<1x128xf32> to vector<1x1x128xf32>
    tpu.vector_store %arg12[%c0_132, %c1_133, %c0_134], %172 {strides = array<i32>} : memref<1x6x128xf32, #tpu.memory_space<vmem>>, vector<1x1x128xf32>,
    %173 = arith.negf %169 : vector<1x128xf32>
    %174 = math.exp %173 : vector<1x128xf32>
    %cst_135 = arith.constant 1.000000e+00 : f32
    %175 = vector.broadcast %cst_135 : f32 to vector<1x128xf32>
    %176 = arith.addf %175, %174 : vector<1x128xf32>
    %177 = arith.divf %175, %176 : vector<1x128xf32>
    %c0_136 = arith.constant 0 : index
    %c3_137 = arith.constant 3 : index
    %c0_138 = arith.constant 0 : index
    %178 = vector.load %arg12[%c0_136, %c3_137, %c0_138] : memref<1x6x128xf32, #tpu.memory_space<vmem>>, vector<1x1x128xf32>
    %179 = vector.shape_cast %178 : vector<1x1x128xf32> to vector<1x128xf32>
    %180 = vector.shape_cast %177 : vector<1x128xf32> to vector<1x1x128xf32>
    tpu.vector_store %arg12[%c0_136, %c3_137, %c0_138], %180 {strides = array<i32>} : memref<1x6x128xf32, #tpu.memory_space<vmem>>, vector<1x1x128xf32>,
    %c1_139 = arith.constant 1 : index
    %181 = memref.load %arg11[%c1_139] : memref<2xf32, #tpu.memory_space<smem>>
    %182 = vector.broadcast %181 : f32 to vector<1x128xf32>
    %183 = arith.cmpf ogt, %169, %182 : vector<1x128xf32>
    %184 = arith.extui %183 : vector<1x128xi1> to vector<1x128xi32>
    %185 = arith.sitofp %184 : vector<1x128xi32> to vector<1x128xf32>
    %c0_140 = arith.constant 0 : index
    %c5_141 = arith.constant 5 : index
    %c0_142 = arith.constant 0 : index
    %186 = vector.load %arg12[%c0_140, %c5_141, %c0_142] : memref<1x6x128xf32, #tpu.memory_space<vmem>>, vector<1x1x128xf32>
    %187 = vector.shape_cast %186 : vector<1x1x128xf32> to vector<1x128xf32>
    %188 = vector.shape_cast %185 : vector<1x128xf32> to vector<1x1x128xf32>
    tpu.vector_store %arg12[%c0_140, %c5_141, %c0_142], %188 {strides = array<i32>} : memref<1x6x128xf32, #tpu.memory_space<vmem>>, vector<1x1x128xf32>,
    return
  }
  func.func @transform_0(%arg0: i32, %arg1: i32) -> (i32, i32, i32, i32) {
    %c0_i32 = arith.constant 0 : i32
    %c0_i32_0 = arith.constant 0 : i32
    %c0_i32_1 = arith.constant 0 : i32
    return %arg0, %arg1, %c0_i32, %c0_i32_0 : i32, i32, i32, i32
  }
  func.func @transform_1(%arg0: i32, %arg1: i32) -> (i32, i32, i32, i32) {
    %c4_i32 = arith.constant 4 : i32
    %0 = arith.muli %arg1, %c4_i32 : i32
    %c1_i32 = arith.constant 1 : i32
    %1 = arith.subi %0, %c1_i32 : i32
    %c0_i32 = arith.constant 0 : i32
    %2 = arith.maxsi %1, %c0_i32 : i32
    %c0_i32_0 = arith.constant 0 : i32
    %c0_i32_1 = arith.constant 0 : i32
    %c0_i32_2 = arith.constant 0 : i32
    return %arg0, %2, %c0_i32_0, %c0_i32_1 : i32, i32, i32, i32
  }
  func.func @transform_2(%arg0: i32, %arg1: i32) -> (i32, i32, i32, i32) {
    %c1_i32 = arith.constant 1 : i32
    %0 = arith.addi %arg1, %c1_i32 : i32
    %c4_i32 = arith.constant 4 : i32
    %1 = arith.muli %0, %c4_i32 : i32
    %c7_i32 = arith.constant 7 : i32
    %2 = arith.minsi %1, %c7_i32 : i32
    %c0_i32 = arith.constant 0 : i32
    %c0_i32_0 = arith.constant 0 : i32
    %c0_i32_1 = arith.constant 0 : i32
    return %arg0, %2, %c0_i32, %c0_i32_0 : i32, i32, i32, i32
  }
  func.func @transform_3(%arg0: i32, %arg1: i32) -> (i32, i32, i32) {
    %c0_i32 = arith.constant 0 : i32
    %c0_i32_0 = arith.constant 0 : i32
    %c0_i32_1 = arith.constant 0 : i32
    %c0_i32_2 = arith.constant 0 : i32
    return %c0_i32, %c0_i32_0, %c0_i32_1 : i32, i32, i32
  }
  func.func @transform_4(%arg0: i32, %arg1: i32) -> (i32, i32) {
    %c0_i32 = arith.constant 0 : i32
    %c0_i32_0 = arith.constant 0 : i32
    %c0_i32_1 = arith.constant 0 : i32
    return %c0_i32, %c0_i32_0 : i32, i32
  }
  func.func @transform_5(%arg0: i32, %arg1: i32) -> (i32, i32, i32) {
    %c0_i32 = arith.constant 0 : i32
    %c0_i32_0 = arith.constant 0 : i32
    %c0_i32_1 = arith.constant 0 : i32
    %c0_i32_2 = arith.constant 0 : i32
    return %c0_i32, %c0_i32_0, %c0_i32_1 : i32, i32, i32
  }
  func.func @transform_6(%arg0: i32, %arg1: i32) -> (i32, i32) {
    %c0_i32 = arith.constant 0 : i32
    %c0_i32_0 = arith.constant 0 : i32
    %c0_i32_1 = arith.constant 0 : i32
    return %c0_i32, %c0_i32_0 : i32, i32
  }
  func.func @transform_7(%arg0: i32, %arg1: i32) -> (i32, i32) {
    %c0_i32 = arith.constant 0 : i32
    %c0_i32_0 = arith.constant 0 : i32
    %c0_i32_1 = arith.constant 0 : i32
    return %c0_i32, %c0_i32_0 : i32, i32
  }
  func.func @transform_8(%arg0: i32, %arg1: i32) -> i32 {
    %c0_i32 = arith.constant 0 : i32
    %c0_i32_0 = arith.constant 0 : i32
    return %c0_i32 : i32
  }
  func.func @transform_9(%arg0: i32, %arg1: i32) -> i32 {
    %c0_i32 = arith.constant 0 : i32
    %c0_i32_0 = arith.constant 0 : i32
    return %c0_i32 : i32
  }
  func.func @transform_10(%arg0: i32, %arg1: i32) -> (i32, i32, i32) {
    %c0_i32 = arith.constant 0 : i32
    %c0_i32_0 = arith.constant 0 : i32
    return %arg0, %c0_i32, %arg1 : i32, i32, i32
  }
}

</mosaic_0001>

<llo_original>
// kernel: tpu_custom_call.1
$region0: #{tpu_custom_call.1}
  #allocation0 [shape = 'u32[]', space=smem, size = 0x4, offset = 0x4, fixed_abs, tag = 'smem constant byte address 0x4 - core index']
  #allocation1 [shape = 'u32[144,128]{1,0:T(1,128)}', space=vmem, size = 0x12000, scoped, tag = 'internal scratch']
  #allocation2 [shape = 'bf16[12,18,4]{2,1,0:T(8,128)(2,1)}', space=vmem, size = 0x12000, scoped, tag = 'scratch operand']
  #allocation3 [shape = 'bf16[10,18,32]{2,1,0:T(8,128)(2,1)}', space=vmem, size = 0xf000, scoped, tag = 'scratch operand']
  %s0 = inlined_call_operand.vmem [shape: f32[2,16,16,4], index: 0, kind: input, shape index: {}]
  %s1 = inlined_call_operand.vmem [shape: f32[2,16,16,4], index: 1, kind: input, shape index: {}]
  %s2 = inlined_call_operand.vmem [shape: f32[2,16,16,4], index: 2, kind: input, shape index: {}]
  %s3 = inlined_call_operand.vmem [shape: bf16[9,4,32], index: 3, kind: input, shape index: {}]
  %s4 = inlined_call_operand.vmem [shape: f32[1,32], index: 4, kind: input, shape index: {}]
  %s5 = inlined_call_operand.vmem [shape: bf16[9,32,32], index: 5, kind: input, shape index: {}]
  %s6 = inlined_call_operand.vmem [shape: f32[1,32], index: 6, kind: input, shape index: {}]
  %s7 = inlined_call_operand.vmem [shape: f32[2,32], index: 7, kind: input, shape index: {}]
  %s8 = inlined_call_operand.vmem [shape: f32[2], index: 8, kind: input, shape index: {}]
  %s9 = inlined_call_operand.vmem [shape: f32[2], index: 9, kind: input, shape index: {}]
  %s10 = inlined_call_operand.vmem [shape: f32[2,6,256], index: 10, kind: output, shape index: {}]
  %s11 = sld [smem:[#allocation0]]
  $region97: #{tpu_custom_call.1} parent=0
    _
  %s13 = ssub.s32 1, %s11
  %s14 = scalar_select 0, %s13, %s11
  $region1: #{tpu_custom_call.1} parent=0
    #allocation4 [shape = 'u8[512]{0}', space=smem, size = 0x200, scoped, tag = 'input window, operand 8, single buffered']
    #allocation5 [shape = 's32[2]{0}', space=sflag, size = 0x8, scoped, tag = 'scoped memory for tpu_custom_call.1']
    #allocation6 [shape = 'u8[512]{0}', space=smem, size = 0x200, scoped, tag = 'input window, operand 9, single buffered']
    #allocation7 [shape = 's32[1]{0}', space=sflag, size = 0x4, scoped, tag = 'scoped memory for tpu_custom_call.1']
    %15 = vsyncpa [#allocation5], 0
    %16 = vsyncpa [#allocation7], 0
    loop: start=0, step=1, limit=6
    $region2: #{tpu_custom_call.1} parent=1 // loop_pre_header
      _
    $region3: #{tpu_custom_call.1} parent=1 // loop_header
      %s18 = sphi 0, %s22
      %p19 = scmp.ge.s32.totalorder %s18, 6
      %s25 = sphi 0, %s37
      %s26 = sphi 0, %s33
      %s27 = sphi 0, %s25
      %s28 = sphi 0, %s26
      %s29 = sphi 0, %s27
      %s30 = sphi 0, %s28
      %s42 = sphi 0, %s44
      %s45 = sphi 0, %s42
      %s46 = sphi 0, %s45
      %s62 = sphi 0, %s46
      %s78 = sphi 0, %s80
      %s81 = sphi 0, %s78
      %s82 = sphi 0, %s81
      %s98 = sphi 0, %s82
      %s114 = sphi 0, %s116
      %s117 = sphi 0, %s114
      %s118 = sphi 0, %s117
      %s134 = sphi 0, %s118
      %s138 = sphi 0, %s138
      %s140 = sphi 0, %s138
      %s141 = sphi 0, %s140
      %s155 = sphi 0, %s141
      %s159 = sphi 0, %s159
      %s161 = sphi 0, %s159
      %s162 = sphi 0, %s161
      %s176 = sphi 0, %s162
      %s180 = sphi 0, %s180
      %s182 = sphi 0, %s180
      %s183 = sphi 0, %s182
      %s197 = sphi 0, %s183
      %s201 = sphi 0, %s201
      %s203 = sphi 0, %s201
      %s204 = sphi 0, %s203
      %s218 = sphi 0, %s204
      %s222 = sphi 0, %s222
      %s224 = sphi 0, %s222
      %s225 = sphi 0, %s224
      %s239 = sphi 0, %s225
      %s243 = sphi 0, %s243
      %s245 = sphi 0, %s243
      %s246 = sphi 0, %s245
      %s260 = sphi 0, %s246
      %s264 = sphi 0, %s264
      %s266 = sphi 0, %s264
      %s267 = sphi 0, %s266
      %s281 = sphi 0, %s267
      %s289 = sphi 0, %s291
      %s292 = sphi 0, %s289
      %s293 = sphi 0, %s292
      %s309 = sphi 0, %s293
    $region4: #{tpu_custom_call.1} parent=1 // loop_header_branch
      %21 = sbr.rel (%p19) target = $region8
    $region5: #{tpu_custom_call.1} parent=1 // loop_body
      %s23 = ssub.s32 %s18, 1
      %s24 = ssub.s32 %s18, 2
      %s31 = sadd.s32 1, %s26
      %p32 = scmp.ge.s32.totalorder %s31, 2
      %s33 = scalar_select %p32, 0, %s31
      %s34 = sadd.s32 1, %s25
      %s35 = scalar_select %p32, %s34, %s25
      %p36 = scmp.ge.s32.totalorder %s35, 2
      %s37 = scalar_select %p36, 0, %s35
      %s38 = ssub.s32 %s25, %s37
      %s39 = ssub.s32 %s26, %s33
      %s40 = sor.u32 %s38, %s39
      %p41 = scmp.eq.s32.totalorder %s40, 0
      %s43 = sadd.s32 %s42, 1
      %s44 = scalar_select %p41, %s42, %s43
      %p47 = pneg %p41
      %p48 = scmp.eq.s32.totalorder %s18, 3
      %p49 = por %p47, %p48
      %p50 = scmp.ne.s32.totalorder %s42, %s45
      %p51 = scmp.eq.s32.totalorder %s18, 0
      %p52 = por %p50, %p51
      %p53 = scmp.ne.s32.totalorder %s42, %s45
      %p54 = scmp.eq.s32.totalorder %s23, 3
      %p55 = por %p53, %p54
      %p56 = scmp.ne.s32.totalorder %s45, %s46
      %p57 = scmp.eq.s32.totalorder %s23, 0
      %p58 = por %p56, %p57
      %p59 = scmp.ne.s32.totalorder %s45, %s46
      %p60 = scmp.eq.s32.totalorder %s24, 3
      %p61 = por %p59, %p60
      %p63 = scmp.ne.s32.totalorder %s46, %s62
      %p64 = scmp.eq.s32.totalorder %s24, 0
      %p65 = por %p63, %p64
      %s66 = smul.u32 %s26, 4
      %s67 = ssub.s32 %s66, 1
      %p68 = scmp.gt.s32.totalorder %s67, 0
      %s69 = scalar_select %p68, %s67, 0
      %s70 = smul.u32 %s33, 4
      %s71 = ssub.s32 %s70, 1
      %p72 = scmp.gt.s32.totalorder %s71, 0
      %s73 = scalar_select %p72, %s71, 0
      %s74 = ssub.s32 %s25, %s37
      %s75 = ssub.s32 %s69, %s73
      %s76 = sor.u32 %s74, %s75
      %p77 = scmp.eq.s32.totalorder %s76, 0
      %s79 = sadd.s32 %s78, 1
      %s80 = scalar_select %p77, %s78, %s79
      %p83 = pneg %p77
      %p84 = scmp.eq.s32.totalorder %s18, 3
      %p85 = por %p83, %p84
      %p86 = scmp.ne.s32.totalorder %s78, %s81
      %p87 = scmp.eq.s32.totalorder %s18, 0
      %p88 = por %p86, %p87
      %p89 = scmp.ne.s32.totalorder %s78, %s81
      %p90 = scmp.eq.s32.totalorder %s23, 3
      %p91 = por %p89, %p90
      %p92 = scmp.ne.s32.totalorder %s81, %s82
      %p93 = scmp.eq.s32.totalorder %s23, 0
      %p94 = por %p92, %p93
      %p95 = scmp.ne.s32.totalorder %s81, %s82
      %p96 = scmp.eq.s32.totalorder %s24, 3
      %p97 = por %p95, %p96
      %p99 = scmp.ne.s32.totalorder %s82, %s98
      %p100 = scmp.eq.s32.totalorder %s24, 0
      %p101 = por %p99, %p100
      %s102 = sadd.s32 %s26, 1
      %s103 = smul.u32 %s102, 4
      %p104 = scmp.lt.s32.totalorder %s103, 7
      %s105 = scalar_select %p104, %s103, 7
      %s106 = sadd.s32 %s33, 1
      %s107 = smul.u32 %s106, 4
      %p108 = scmp.lt.s32.totalorder %s107, 7
      %s109 = scalar_select %p108, %s107, 7
      %s110 = ssub.s32 %s25, %s37
      %s111 = ssub.s32 %s105, %s109
      %s112 = sor.u32 %s110, %s111
      %p113 = scmp.eq.s32.totalorder %s112, 0
      %s115 = sadd.s32 %s114, 1
      %s116 = scalar_select %p113, %s114, %s115
      %p119 = pneg %p113
      %p120 = scmp.eq.s32.totalorder %s18, 3
      %p121 = por %p119, %p120
      %p122 = scmp.ne.s32.totalorder %s114, %s117
      %p123 = scmp.eq.s32.totalorder %s18, 0
      %p124 = por %p122, %p123
      %p125 = scmp.ne.s32.totalorder %s114, %s117
      %p126 = scmp.eq.s32.totalorder %s23, 3
      %p127 = por %p125, %p126
      %p128 = scmp.ne.s32.totalorder %s117, %s118
      %p129 = scmp.eq.s32.totalorder %s23, 0
      %p130 = por %p128, %p129
      %p131 = scmp.ne.s32.totalorder %s117, %s118
      %p132 = scmp.eq.s32.totalorder %s24, 3
      %p133 = por %p131, %p132
      %p135 = scmp.ne.s32.totalorder %s118, %s134
      %p136 = scmp.eq.s32.totalorder %s24, 0
      %p137 = por %p135, %p136
      %s139 = sadd.s32 %s138, 1
      %p142 = scmp.eq.s32.totalorder %s18, 3
      %p143 = scmp.ne.s32.totalorder %s138, %s140
      %p144 = scmp.eq.s32.totalorder %s18, 0
      %p145 = por %p143, %p144
      %p146 = scmp.ne.s32.totalorder %s138, %s140
      %p147 = scmp.eq.s32.totalorder %s23, 3
      %p148 = por %p146, %p147
      %p149 = scmp.ne.s32.totalorder %s140, %s141
      %p150 = scmp.eq.s32.totalorder %s23, 0
      %p151 = por %p149, %p150
      %p152 = scmp.ne.s32.totalorder %s140, %s141
      %p153 = scmp.eq.s32.totalorder %s24, 3
      %p154 = por %p152, %p153
      %p156 = scmp.ne.s32.totalorder %s141, %s155
      %p157 = scmp.eq.s32.totalorder %s24, 0
      %p158 = por %p156, %p157
      %s160 = sadd.s32 %s159, 1
      %p163 = scmp.eq.s32.totalorder %s18, 3
      %p164 = scmp.ne.s32.totalorder %s159, %s161
      %p165 = scmp.eq.s32.totalorder %s18, 0
      %p166 = por %p164, %p165
      %p167 = scmp.ne.s32.totalorder %s159, %s161
      %p168 = scmp.eq.s32.totalorder %s23, 3
      %p169 = por %p167, %p168
      %p170 = scmp.ne.s32.totalorder %s161, %s162
      %p171 = scmp.eq.s32.totalorder %s23, 0
      %p172 = por %p170, %p171
      %p173 = scmp.ne.s32.totalorder %s161, %s162
      %p174 = scmp.eq.s32.totalorder %s24, 3
      %p175 = por %p173, %p174
      %p177 = scmp.ne.s32.totalorder %s162, %s176
      %p178 = scmp.eq.s32.totalorder %s24, 0
      %p179 = por %p177, %p178
      %s181 = sadd.s32 %s180, 1
      %p184 = scmp.eq.s32.totalorder %s18, 3
      %p185 = scmp.ne.s32.totalorder %s180, %s182
      %p186 = scmp.eq.s32.totalorder %s18, 0
      %p187 = por %p185, %p186
      %p188 = scmp.ne.s32.totalorder %s180, %s182
      %p189 = scmp.eq.s32.totalorder %s23, 3
      %p190 = por %p188, %p189
      %p191 = scmp.ne.s32.totalorder %s182, %s183
      %p192 = scmp.eq.s32.totalorder %s23, 0
      %p193 = por %p191, %p192
      %p194 = scmp.ne.s32.totalorder %s182, %s183
      %p195 = scmp.eq.s32.totalorder %s24, 3
      %p196 = por %p194, %p195
      %p198 = scmp.ne.s32.totalorder %s183, %s197
      %p199 = scmp.eq.s32.totalorder %s24, 0
      %p200 = por %p198, %p199
      %s202 = sadd.s32 %s201, 1
      %p205 = scmp.eq.s32.totalorder %s18, 3
      %p206 = scmp.ne.s32.totalorder %s201, %s203
      %p207 = scmp.eq.s32.totalorder %s18, 0
      %p208 = por %p206, %p207
      %p209 = scmp.ne.s32.totalorder %s201, %s203
      %p210 = scmp.eq.s32.totalorder %s23, 3
      %p211 = por %p209, %p210
      %p212 = scmp.ne.s32.totalorder %s203, %s204
      %p213 = scmp.eq.s32.totalorder %s23, 0
      %p214 = por %p212, %p213
      %p215 = scmp.ne.s32.totalorder %s203, %s204
      %p216 = scmp.eq.s32.totalorder %s24, 3
      %p217 = por %p215, %p216
      %p219 = scmp.ne.s32.totalorder %s204, %s218
      %p220 = scmp.eq.s32.totalorder %s24, 0
      %p221 = por %p219, %p220
      %s223 = sadd.s32 %s222, 1
      %p226 = scmp.eq.s32.totalorder %s18, 3
      %p227 = scmp.ne.s32.totalorder %s222, %s224
      %p228 = scmp.eq.s32.totalorder %s18, 0
      %p229 = por %p227, %p228
      %p230 = scmp.ne.s32.totalorder %s222, %s224
      %p231 = scmp.eq.s32.totalorder %s23, 3
      %p232 = por %p230, %p231
      %p233 = scmp.ne.s32.totalorder %s224, %s225
      %p234 = scmp.eq.s32.totalorder %s23, 0
      %p235 = por %p233, %p234
      %p236 = scmp.ne.s32.totalorder %s224, %s225
      %p237 = scmp.eq.s32.totalorder %s24, 3
      %p238 = por %p236, %p237
      %p240 = scmp.ne.s32.totalorder %s225, %s239
      %p241 = scmp.eq.s32.totalorder %s24, 0
      %p242 = por %p240, %p241
      %s244 = sadd.s32 %s243, 1
      %p247 = scmp.eq.s32.totalorder %s18, 3
      %p248 = scmp.ne.s32.totalorder %s243, %s245
      %p249 = scmp.eq.s32.totalorder %s18, 0
      %p250 = por %p248, %p249
      %p251 = scmp.ne.s32.totalorder %s243, %s245
      %p252 = scmp.eq.s32.totalorder %s23, 3
      %p253 = por %p251, %p252
      %p254 = scmp.ne.s32.totalorder %s245, %s246
      %p255 = scmp.eq.s32.totalorder %s23, 0
      %p256 = por %p254, %p255
      %p257 = scmp.ne.s32.totalorder %s245, %s246
      %p258 = scmp.eq.s32.totalorder %s24, 3
      %p259 = por %p257, %p258
      %p261 = scmp.ne.s32.totalorder %s246, %s260
      %p262 = scmp.eq.s32.totalorder %s24, 0
      %p263 = por %p261, %p262
      %s265 = sadd.s32 %s264, 1
      %p268 = scmp.eq.s32.totalorder %s18, 3
      %p269 = scmp.ne.s32.totalorder %s264, %s266
      %p270 = scmp.eq.s32.totalorder %s18, 0
      %p271 = por %p269, %p270
      %p272 = scmp.ne.s32.totalorder %s264, %s266
      %p273 = scmp.eq.s32.totalorder %s23, 3
      %p274 = por %p272, %p273
      %p275 = scmp.ne.s32.totalorder %s266, %s267
      %p276 = scmp.eq.s32.totalorder %s23, 0
      %p277 = por %p275, %p276
      %p278 = scmp.ne.s32.totalorder %s266, %s267
      %p279 = scmp.eq.s32.totalorder %s24, 3
      %p280 = por %p278, %p279
      %p282 = scmp.ne.s32.totalorder %s267, %s281
      %p283 = scmp.eq.s32.totalorder %s24, 0
      %p284 = por %p282, %p283
      %s285 = ssub.s32 %s25, %s37
      %s286 = ssub.s32 %s26, %s33
      %s287 = sor.u32 %s285, %s286
      %p288 = scmp.eq.s32.totalorder %s287, 0
      %s290 = sadd.s32 %s289, 1
      %s291 = scalar_select %p288, %s289, %s290
      %p294 = pneg %p288
      %p295 = scmp.eq.s32.totalorder %s18, 3
      %p296 = por %p294, %p295
      %p297 = scmp.ne.s32.totalorder %s289, %s292
      %p298 = scmp.eq.s32.totalorder %s18, 0
      %p299 = por %p297, %p298
      %p300 = scmp.ne.s32.totalorder %s289, %s292
      %p301 = scmp.eq.s32.totalorder %s23, 3
      %p302 = por %p300, %p301
      %p303 = scmp.ne.s32.totalorder %s292, %s293
      %p304 = scmp.eq.s32.totalorder %s23, 0
      %p305 = por %p303, %p304
      %p306 = scmp.ne.s32.totalorder %s292, %s293
      %p307 = scmp.eq.s32.totalorder %s24, 3
      %p308 = por %p306, %p307
      %p310 = scmp.ne.s32.totalorder %s293, %s309
      %p311 = scmp.eq.s32.totalorder %s24, 0
      %p312 = por %p310, %p311
      %p313 = scmp.le.s32.totalorder 1, %s18
      %p314 = scmp.lt.s32.totalorder %s18, 5
      %p315 = pnand %p313, %p314
      %p316 = pneg %p315
      // Predicated region
      $region9: #{tpu_custom_call.1} parent=5 // pred_check
        _
      $region10: #{tpu_custom_call.1} parent=5 // pred_check_branch
        %318 = sbr.rel (%p315) target = $region12
      $region11: #{tpu_custom_call.1} parent=5 // pred_region
        %s319 = ssub.s32 %s18, 1
        // Predicated region
        $region13: #{tpu_custom_call.1} parent=11 // pred_check
          %p320 = pneg %p151
        $region14: #{tpu_custom_call.1} parent=11 // pred_check_branch
          %322 = sbr.rel (%p320) target = $region16
        $region15: #{tpu_custom_call.1} parent=11 // pred_region
          _
        $region16: #{tpu_custom_call.1} parent=11 // pred_fallthru
          _
        // Predicated region
        $region17: #{tpu_custom_call.1} parent=11 // pred_check
          %p323 = pneg %p172
        $region18: #{tpu_custom_call.1} parent=11 // pred_check_branch
          %325 = sbr.rel (%p323) target = $region20
        $region19: #{tpu_custom_call.1} parent=11 // pred_region
          _
        $region20: #{tpu_custom_call.1} parent=11 // pred_fallthru
          _
        // Predicated region
        $region21: #{tpu_custom_call.1} parent=11 // pred_check
          %p326 = pneg %p193
        $region22: #{tpu_custom_call.1} parent=11 // pred_check_branch
          %328 = sbr.rel (%p326) target = $region24
        $region23: #{tpu_custom_call.1} parent=11 // pred_region
          _
        $region24: #{tpu_custom_call.1} parent=11 // pred_fallthru
          _
        // Predicated region
        $region25: #{tpu_custom_call.1} parent=11 // pred_check
          %p329 = pneg %p214
        $region26: #{tpu_custom_call.1} parent=11 // pred_check_branch
          %331 = sbr.rel (%p329) target = $region28
        $region27: #{tpu_custom_call.1} parent=11 // pred_region
          _
        $region28: #{tpu_custom_call.1} parent=11 // pred_fallthru
          _
        // Predicated region
        $region29: #{tpu_custom_call.1} parent=11 // pred_check
          %p332 = pneg %p235
        $region30: #{tpu_custom_call.1} parent=11 // pred_check_branch
          %334 = sbr.rel (%p332) target = $region32
        $region31: #{tpu_custom_call.1} parent=11 // pred_region
          _
        $region32: #{tpu_custom_call.1} parent=11 // pred_fallthru
          _
        // Predicated region
        $region33: #{tpu_custom_call.1} parent=11 // pred_check
          %p335 = pneg %p256
        $region34: #{tpu_custom_call.1} parent=11 // pred_check_branch
          %337 = sbr.rel (%p335) target = $region36
        $region35: #{tpu_custom_call.1} parent=11 // pred_region
          %s339 = ssub.s32 16, 16
          %340 = vsyncadd [#allocation5], %s339
          %s342 = sshll.u32 %s8, 4
          %s343 = int_to_ptr.vmem [resolvable:$true] %s342
          %345 = dma.vmem_to_smem %s343, 16, [#allocation4], [#allocation5]
        $region36: #{tpu_custom_call.1} parent=11 // pred_fallthru
          _
        // Predicated region
        $region37: #{tpu_custom_call.1} parent=11 // pred_check
          %p346 = pneg %p277
        $region38: #{tpu_custom_call.1} parent=11 // pred_check_branch
          %348 = sbr.rel (%p346) target = $region40
        $region39: #{tpu_custom_call.1} parent=11 // pred_region
          %s350 = ssub.s32 16, 16
          %351 = vsyncadd [#allocation7], %s350
          %s353 = sshll.u32 %s9, 4
          %s354 = int_to_ptr.vmem [resolvable:$true] %s353
          %356 = dma.vmem_to_smem %s354, 16, [#allocation6], [#allocation7]
        $region40: #{tpu_custom_call.1} parent=11 // pred_fallthru
          _
      $region12: #{tpu_custom_call.1} parent=5 // pred_fallthru
        _
      %p357 = scmp.lt.s32.totalorder %s18, 4
      // Predicated region
      $region41: #{tpu_custom_call.1} parent=5 // pred_check
        %p358 = pneg %p357
      $region42: #{tpu_custom_call.1} parent=5 // pred_check_branch
        %360 = sbr.rel (%p358) target = $region44
      $region43: #{tpu_custom_call.1} parent=5 // pred_region
        // Predicated region
        $region45: #{tpu_custom_call.1} parent=43 // pred_check
          %p361 = pneg %p52
        $region46: #{tpu_custom_call.1} parent=43 // pred_check_branch
          %363 = sbr.rel (%p361) target = $region48
        $region47: #{tpu_custom_call.1} parent=43 // pred_region
          %s364 = smul.u32 8, %s26
          %p365 = scmp.lt.s32.totalorder %s25, 1
          %s366 = scalar_select %p365, %s25, 1
          %p367 = scmp.lt.s32.totalorder %s364, 15
          %s368 = scalar_select %p367, %s364, 15
          %s369 = smul.addr %s368, 2
          %s370 = smul.addr %s366, 32
          %s371 = sadd.s32 %s369, %s370
          %s372 = smul.addr %s371, 8
          %s373 = scalar_lea.vmem %s0, %s372
          %s374 = smul.u32 8, %s26
        $region48: #{tpu_custom_call.1} parent=43 // pred_fallthru
          _
        // Predicated region
        $region49: #{tpu_custom_call.1} parent=43 // pred_check
          %p375 = pneg %p88
        $region50: #{tpu_custom_call.1} parent=43 // pred_check_branch
          %377 = sbr.rel (%p375) target = $region52
        $region51: #{tpu_custom_call.1} parent=43 // pred_region
          %s378 = smul.u32 %s26, 4
          %s379 = ssub.s32 %s378, 1
          %p380 = scmp.gt.s32.totalorder %s379, 0
          %s381 = scalar_select %p380, %s379, 0
          %s382 = smul.u32 2, %s381
          %p383 = scmp.lt.s32.totalorder %s25, 1
          %s384 = scalar_select %p383, %s25, 1
          %p385 = scmp.lt.s32.totalorder %s382, 15
          %s386 = scalar_select %p385, %s382, 15
          %s387 = smul.addr %s386, 2
          %s388 = smul.addr %s384, 32
          %s389 = sadd.s32 %s387, %s388
          %s390 = smul.addr %s389, 8
          %s391 = scalar_lea.vmem %s1, %s390
          %s392 = smul.u32 %s26, 4
          %s393 = ssub.s32 %s392, 1
          %p394 = scmp.gt.s32.totalorder %s393, 0
          %s395 = scalar_select %p394, %s393, 0
          %s396 = smul.u32 2, %s395
        $region52: #{tpu_custom_call.1} parent=43 // pred_fallthru
          _
        // Predicated region
        $region53: #{tpu_custom_call.1} parent=43 // pred_check
          %p397 = pneg %p124
        $region54: #{tpu_custom_call.1} parent=43 // pred_check_branch
          %399 = sbr.rel (%p397) target = $region56
        $region55: #{tpu_custom_call.1} parent=43 // pred_region
          %s400 = sadd.s32 %s26, 1
          %s401 = smul.u32 %s400, 4
          %p402 = scmp.lt.s32.totalorder %s401, 7
          %s403 = scalar_select %p402, %s401, 7
          %s404 = smul.u32 2, %s403
          %p405 = scmp.lt.s32.totalorder %s25, 1
          %s406 = scalar_select %p405, %s25, 1
          %p407 = scmp.lt.s32.totalorder %s404, 15
          %s408 = scalar_select %p407, %s404, 15
          %s409 = smul.addr %s408, 2
          %s410 = smul.addr %s406, 32
          %s411 = sadd.s32 %s409, %s410
          %s412 = smul.addr %s411, 8
          %s413 = scalar_lea.vmem %s2, %s412
          %s414 = sadd.s32 %s26, 1
          %s415 = smul.u32 %s414, 4
          %p416 = scmp.lt.s32.totalorder %s415, 7
          %s417 = scalar_select %p416, %s415, 7
          %s418 = smul.u32 2, %s417
        $region56: #{tpu_custom_call.1} parent=43 // pred_fallthru
          _
      $region44: #{tpu_custom_call.1} parent=5 // pred_fallthru
        _
      %p419 = scmp.le.s32.totalorder 1, %s18
      %p420 = scmp.lt.s32.totalorder %s18, 5
      %p421 = pnand %p419, %p420
      %p422 = pneg %p421
      // Predicated region
      $region57: #{tpu_custom_call.1} parent=5 // pred_check
        _
      $region58: #{tpu_custom_call.1} parent=5 // pred_check_branch
        %424 = sbr.rel (%p421) target = $region60
      $region59: #{tpu_custom_call.1} parent=5 // pred_region
        %s425 = ssub.s32 %s18, 1
        // Predicated region
        $region61: #{tpu_custom_call.1} parent=59 // pred_check
          %p426 = pneg %p256
        $region62: #{tpu_custom_call.1} parent=59 // pred_check_branch
          %428 = sbr.rel (%p426) target = $region64
        $region63: #{tpu_custom_call.1} parent=59 // pred_region
          %429 = dma.done [#allocation5], 16
        $region64: #{tpu_custom_call.1} parent=59 // pred_fallthru
          _
        // Predicated region
        $region65: #{tpu_custom_call.1} parent=59 // pred_check
          %p430 = pneg %p277
        $region66: #{tpu_custom_call.1} parent=59 // pred_check_branch
          %432 = sbr.rel (%p430) target = $region68
        $region67: #{tpu_custom_call.1} parent=59 // pred_region
          %433 = dma.done [#allocation7], 16
        $region68: #{tpu_custom_call.1} parent=59 // pred_fallthru
          _
        %434 = sfence
        %s435 = smul.u32 8, %s28
        %p436 = scmp.lt.s32.totalorder %s27, 1
        %s437 = scalar_select %p436, %s27, 1
        %p438 = scmp.lt.s32.totalorder %s435, 15
        %s439 = scalar_select %p438, %s435, 15
        %s440 = smul.addr %s439, 2
        %s441 = smul.addr %s437, 32
        %s442 = sadd.s32 %s440, %s441
        %s443 = smul.addr %s442, 8
        %s444 = scalar_lea.vmem %s0, %s443
        %p445 = pneg %p58
        %p446 = pneg %p55
        %s447 = smul.u32 %s28, 4
        %s448 = ssub.s32 %s447, 1
        %p449 = scmp.gt.s32.totalorder %s448, 0
        %s450 = scalar_select %p449, %s448, 0
        %s451 = smul.u32 2, %s450
        %p452 = scmp.lt.s32.totalorder %s27, 1
        %s453 = scalar_select %p452, %s27, 1
        %p454 = scmp.lt.s32.totalorder %s451, 15
        %s455 = scalar_select %p454, %s451, 15
        %s456 = smul.addr %s455, 2
        %s457 = smul.addr %s453, 32
        %s458 = sadd.s32 %s456, %s457
        %s459 = smul.addr %s458, 8
        %s460 = scalar_lea.vmem %s1, %s459
        %p461 = pneg %p94
        %p462 = pneg %p91
        %s463 = sadd.s32 %s28, 1
        %s464 = smul.u32 %s463, 4
        %p465 = scmp.lt.s32.totalorder %s464, 7
        %s466 = scalar_select %p465, %s464, 7
        %s467 = smul.u32 2, %s466
        %p468 = scmp.lt.s32.totalorder %s27, 1
        %s469 = scalar_select %p468, %s27, 1
        %p470 = scmp.lt.s32.totalorder %s467, 15
        %s471 = scalar_select %p470, %s467, 15
        %s472 = smul.addr %s471, 2
        %s473 = smul.addr %s469, 32
        %s474 = sadd.s32 %s472, %s473
        %s475 = smul.addr %s474, 8
        %s476 = scalar_lea.vmem %s2, %s475
        %p477 = pneg %p130
        %p478 = pneg %p127
        %p479 = pneg %p151
        %p480 = pneg %p148
        %p481 = pneg %p172
        %p482 = pneg %p169
        %p483 = pneg %p193
        %p484 = pneg %p190
        %p485 = pneg %p214
        %p486 = pneg %p211
        %p487 = pneg %p235
        %p488 = pneg %p232
        %p489 = pneg %p256
        %p490 = pneg %p253
        %p491 = pneg %p277
        %p492 = pneg %p274
        %p493 = pneg %p305
        %p494 = pneg %p302
        %p495 = scmp.lt.s32.totalorder %s27, 1
        %s496 = scalar_select %p495, %s27, 1
        %p497 = scmp.lt.s32.totalorder %s28, 1
        %s498 = scalar_select %p497, %s28, 1
        %s499 = smul.addr %s496, 2
        %s500 = sadd.s32 %s498, %s499
        %s501 = smul.addr %s500, 8
        %s502 = scalar_lea.vmem %s10, %s501
        %s503 = smul.u32 8, %s28
        %p504 = scmp.lt.s32.totalorder %s27, 1
        %s505 = scalar_select %p504, %s27, 1
        %p506 = scmp.lt.s32.totalorder %s503, 15
        %s507 = scalar_select %p506, %s503, 15
        %s508 = smul.addr %s507, 2
        %s509 = smul.addr %s505, 32
        %s510 = sadd.s32 %s508, %s509
        %s511 = smul.addr %s510, 8
        %s512 = scalar_lea.vmem %s0, %s511
        %s513 = smul.u32 8, %s28
        %s514 = smul.u32 %s28, 4
        %s515 = ssub.s32 %s514, 1
        %p516 = scmp.gt.s32.totalorder %s515, 0
        %s517 = scalar_select %p516, %s515, 0
        %s518 = smul.u32 2, %s517
        %p519 = scmp.lt.s32.totalorder %s27, 1
        %s520 = scalar_select %p519, %s27, 1
        %p521 = scmp.lt.s32.totalorder %s518, 15
        %s522 = scalar_select %p521, %s518, 15
        %s523 = smul.addr %s522, 2
        %s524 = smul.addr %s520, 32
        %s525 = sadd.s32 %s523, %s524
        %s526 = smul.addr %s525, 8
        %s527 = scalar_lea.vmem %s1, %s526
        %s528 = smul.u32 %s28, 4
        %s529 = ssub.s32 %s528, 1
        %p530 = scmp.gt.s32.totalorder %s529, 0
        %s531 = scalar_select %p530, %s529, 0
        %s532 = smul.u32 2, %s531
        %s533 = sadd.s32 %s28, 1
        %s534 = smul.u32 %s533, 4
        %p535 = scmp.lt.s32.totalorder %s534, 7
        %s536 = scalar_select %p535, %s534, 7
        %s537 = smul.u32 2, %s536
        %p538 = scmp.lt.s32.totalorder %s27, 1
        %s539 = scalar_select %p538, %s27, 1
        %p540 = scmp.lt.s32.totalorder %s537, 15
        %s541 = scalar_select %p540, %s537, 15
        %s542 = smul.addr %s541, 2
        %s543 = smul.addr %s539, 32
        %s544 = sadd.s32 %s542, %s543
        %s545 = smul.addr %s544, 8
        %s546 = scalar_lea.vmem %s2, %s545
        %s547 = sadd.s32 %s28, 1
        %s548 = smul.u32 %s547, 4
        %p549 = scmp.lt.s32.totalorder %s548, 7
        %s550 = scalar_select %p549, %s548, 7
        %s551 = smul.u32 2, %s550
        %p552 = scmp.lt.s32.totalorder %s27, 1
        %s553 = scalar_select %p552, %s27, 1
        %p554 = scmp.lt.s32.totalorder %s28, 1
        %s555 = scalar_select %p554, %s28, 1
        %s556 = smul.addr %s553, 2
        %s557 = sadd.s32 %s555, %s556
        %s558 = smul.addr %s557, 8
        %s559 = scalar_lea.vmem %s10, %s558
        %vm561 = vcmask 24576
        %vm562 = vsmask.f32 256
        %vm563 = vmand %vm561, %vm562
        %v564 = vld [vmem:[#allocation2] sm:$0x1]
        %v565 = vsel %vm563, 0, %v564
        %566 = vst [vmem:[#allocation2] sm:$0x1] %v565
        %v567 = vld [vmem:[#allocation2 + $0xc] sm:$0x1]
        %v568 = vsel %vm563, 0, %v567
        %569 = vst [vmem:[#allocation2 + $0xc] sm:$0x1] %v568
        %v570 = vld [vmem:[#allocation2 + $0x18] sm:$0x1]
        %v571 = vsel %vm563, 0, %v570
        %572 = vst [vmem:[#allocation2 + $0x18] sm:$0x1] %v571
        %v573 = vld [vmem:[#allocation2 + $0x24] sm:$0x1]
        %v574 = vsel %vm563, 0, %v573
        %575 = vst [vmem:[#allocation2 + $0x24] sm:$0x1] %v574
        %v576 = vld [vmem:[#allocation2 + $0x30] sm:$0x1]
        %v577 = vsel %vm563, 0, %v576
        %578 = vst [vmem:[#allocation2 + $0x30] sm:$0x1] %v577
        %v579 = vld [vmem:[#allocation2 + $0x3c] sm:$0x1]
        %v580 = vsel %vm563, 0, %v579
        %581 = vst [vmem:[#allocation2 + $0x3c] sm:$0x1] %v580
        %v582 = vld [vmem:[#allocation2 + $0x48] sm:$0x1]
        %v583 = vsel %vm563, 0, %v582
        %584 = vst [vmem:[#allocation2 + $0x48] sm:$0x1] %v583
        %v585 = vld [vmem:[#allocation2 + $0x54] sm:$0x1]
        %v586 = vsel %vm563, 0, %v585
        %587 = vst [vmem:[#allocation2 + $0x54] sm:$0x1] %v586
        %v588 = vld [vmem:[#allocation2 + $0x60] sm:$0x1]
        %v589 = vsel %vm563, 0, %v588
        %590 = vst [vmem:[#allocation2 + $0x60] sm:$0x1] %v589
        %v591 = vld [vmem:[#allocation2 + $0x6c] sm:$0x1]
        %v592 = vsel %vm563, 0, %v591
        %593 = vst [vmem:[#allocation2 + $0x6c] sm:$0x1] %v592
        %v594 = vld [vmem:[#allocation2 + $0x78] sm:$0x1]
        %v595 = vsel %vm563, 0, %v594
        %596 = vst [vmem:[#allocation2 + $0x78] sm:$0x1] %v595
        %v597 = vld [vmem:[#allocation2 + $0x84] sm:$0x1]
        %v598 = vsel %vm563, 0, %v597
        %599 = vst [vmem:[#allocation2 + $0x84] sm:$0x1] %v598
        %vm600 = vsmask.f32 7938
        %vm601 = vmand %vm561, %vm600
        %v602 = vld [vmem:[#allocation2 + $0x8] sm:$0x1]
        %v603 = vsel %vm601, 0, %v602
        %604 = vst [vmem:[#allocation2 + $0x8] sm:$0x1] %v603
        %v605 = vld [vmem:[#allocation2 + $0x14] sm:$0x1]
        %v606 = vsel %vm601, 0, %v605
        %607 = vst [vmem:[#allocation2 + $0x14] sm:$0x1] %v606
        %v608 = vld [vmem:[#allocation2 + $0x20] sm:$0x1]
        %v609 = vsel %vm601, 0, %v608
        %610 = vst [vmem:[#allocation2 + $0x20] sm:$0x1] %v609
        %v611 = vld [vmem:[#allocation2 + $0x2c] sm:$0x1]
        %v612 = vsel %vm601, 0, %v611
        %613 = vst [vmem:[#allocation2 + $0x2c] sm:$0x1] %v612
        %v614 = vld [vmem:[#allocation2 + $0x38] sm:$0x1]
        %v615 = vsel %vm601, 0, %v614
        %616 = vst [vmem:[#allocation2 + $0x38] sm:$0x1] %v615
        %v617 = vld [vmem:[#allocation2 + $0x44] sm:$0x1]
        %v618 = vsel %vm601, 0, %v617
        %619 = vst [vmem:[#allocation2 + $0x44] sm:$0x1] %v618
        %v620 = vld [vmem:[#allocation2 + $0x50] sm:$0x1]
        %v621 = vsel %vm601, 0, %v620
        %622 = vst [vmem:[#allocation2 + $0x50] sm:$0x1] %v621
        %v623 = vld [vmem:[#allocation2 + $0x5c] sm:$0x1]
        %v624 = vsel %vm601, 0, %v623
        %625 = vst [vmem:[#allocation2 + $0x5c] sm:$0x1] %v624
        %v626 = vld [vmem:[#allocation2 + $0x68] sm:$0x1]
        %v627 = vsel %vm601, 0, %v626
        %628 = vst [vmem:[#allocation2 + $0x68] sm:$0x1] %v627
        %v629 = vld [vmem:[#allocation2 + $0x74] sm:$0x1]
        %v630 = vsel %vm601, 0, %v629
        %631 = vst [vmem:[#allocation2 + $0x74] sm:$0x1] %v630
        %v632 = vld [vmem:[#allocation2 + $0x80] sm:$0x1]
        %v633 = vsel %vm601, 0, %v632
        %634 = vst [vmem:[#allocation2 + $0x80] sm:$0x1] %v633
        %v635 = vld [vmem:[#allocation2 + $0x8c] sm:$0x1]
        %v636 = vsel %vm601, 0, %v635
        %637 = vst [vmem:[#allocation2 + $0x8c] sm:$0x1] %v636
        %v638 = vld [vmem:[%s527] sm:$0xff]
        %v639 = vld [vmem:[%s527 + $0x8] sm:$0xff]
        %v640 = vld [vmem:[%s527 + $0x10] sm:$0xff]
        %v641 = vld [vmem:[%s527 + $0x18] sm:$0xff]
        %v642 = vpack.c.bf16 %v639, %v638
        %v643 = vpack.c.bf16 %v641, %v640
        %v646 = vunpack.c.l.b16 %v642
        %v647 = vunpack.c.h.b16 %v642
        %v648 = vunpack.c.l.b16 %v643
        %v649 = vunpack.c.h.b16 %v643
        %v650 = vpack.c.b16 %v646, %v646
        %v651 = vpack.c.b16 %v647, %v647
        %v652 = vpack.c.b16 %v648, %v648
        %v653 = vpack.c.b16 %v649, %v649
        %vm654 = vsmask.f32 4368
        %vm655 = vmor %vm562, %vm654
        %v657 = vshrl.u32 %v650, 16
        %v659 = vrot.slane %v657, 7
        %v660 = vshll.u32 %v650, 16
        %v662 = vor.u32 %v659, %v660
        %v663 = vrot.slane %v659, 4
        %v665 = vshrl.u32 %v651, 16
        %v667 = vrot.slane %v665, 7
        %v668 = vshll.u32 %v651, 16
        %v670 = vor.u32 %v667, %v668
        %v671 = vsel %vm655, %v663, %v670
        %v672 = vrot.slane %v667, 4
        %v674 = vshrl.u32 %v652, 16
        %v676 = vrot.slane %v674, 7
        %v677 = vshll.u32 %v652, 16
        %v679 = vor.u32 %v676, %v677
        %v680 = vrot.slane %v676, 4
        %v682 = vshrl.u32 %v653, 16
        %v684 = vrot.slane %v682, 7
        %v685 = vshll.u32 %v653, 16
        %v687 = vor.u32 %v684, %v685
        %v688 = vsel %vm655, %v680, %v687
        %v689 = vrot.slane %v684, 4
        %vm696 = vcmask 27648
        %vm697 = vmand %vm696, %vm600
        %v698 = vld [vmem:[#allocation2] sm:$0xf]
        %v699 = vsel %vm697, %v662, %v698
        %700 = vst [vmem:[#allocation2] sm:$0xf] %v699
        %vm701 = vcmask 27648
        %702 = vst.msk [vmem:[#allocation2 + $0x4] sm:$0xf] %vm701, %v671
        %v703 = vld [vmem:[#allocation2 + $0x8] sm:$0x1]
        %v704 = vsel %vm563, %v672, %v703
        %705 = vst [vmem:[#allocation2 + $0x8] sm:$0x1] %v704
        %v706 = vld [vmem:[#allocation2 + $0xc] sm:$0xf]
        %v707 = vsel %vm697, %v679, %v706
        %708 = vst [vmem:[#allocation2 + $0xc] sm:$0xf] %v707
        %709 = vst.msk [vmem:[#allocation2 + $0x10] sm:$0xf] %vm701, %v688
        %v710 = vld [vmem:[#allocation2 + $0x14] sm:$0x1]
        %v711 = vsel %vm563, %v689, %v710
        %712 = vst [vmem:[#allocation2 + $0x14] sm:$0x1] %v711
        %v713 = vld [vmem:[%s512] sm:$0xff]
        %v714 = vld [vmem:[%s512 + $0x8] sm:$0xff]
        %v715 = vld [vmem:[%s512 + $0x10] sm:$0xff]
        %v716 = vld [vmem:[%s512 + $0x18] sm:$0xff]
        %v717 = vld [vmem:[%s512 + $0x20] sm:$0xff]
        %v718 = vld [vmem:[%s512 + $0x28] sm:$0xff]
        %v719 = vld [vmem:[%s512 + $0x30] sm:$0xff]
        %v720 = vld [vmem:[%s512 + $0x38] sm:$0xff]
        %v721 = vld [vmem:[%s512 + $0x40] sm:$0xff]
        %v722 = vld [vmem:[%s512 + $0x48] sm:$0xff]
        %v723 = vld [vmem:[%s512 + $0x50] sm:$0xff]
        %v724 = vld [vmem:[%s512 + $0x58] sm:$0xff]
        %v725 = vld [vmem:[%s512 + $0x60] sm:$0xff]
        %v726 = vld [vmem:[%s512 + $0x68] sm:$0xff]
        %v727 = vld [vmem:[%s512 + $0x70] sm:$0xff]
        %v728 = vld [vmem:[%s512 + $0x78] sm:$0xff]
        %v729 = vpack.c.bf16 %v714, %v713
        %v730 = vpack.c.bf16 %v716, %v715
        %v731 = vpack.c.bf16 %v718, %v717
        %v732 = vpack.c.bf16 %v720, %v719
        %v733 = vpack.c.bf16 %v722, %v721
        %v734 = vpack.c.bf16 %v724, %v723
        %v735 = vpack.c.bf16 %v726, %v725
        %v736 = vpack.c.bf16 %v728, %v727
        %v745 = vunpack.c.l.b16 %v729
        %v746 = vunpack.c.h.b16 %v729
        %v747 = vunpack.c.l.b16 %v730
        %v748 = vunpack.c.h.b16 %v730
        %v749 = vunpack.c.l.b16 %v731
        %v750 = vunpack.c.h.b16 %v731
        %v751 = vunpack.c.l.b16 %v732
        %v752 = vunpack.c.h.b16 %v732
        %v753 = vunpack.c.l.b16 %v733
        %v754 = vunpack.c.h.b16 %v733
        %v755 = vunpack.c.l.b16 %v734
        %v756 = vunpack.c.h.b16 %v734
        %v757 = vunpack.c.l.b16 %v735
        %v758 = vunpack.c.h.b16 %v735
        %v759 = vunpack.c.l.b16 %v736
        %v760 = vunpack.c.h.b16 %v736
        %v761 = vpack.c.b16 %v745, %v745
        %v762 = vpack.c.b16 %v746, %v746
        %v763 = vpack.c.b16 %v747, %v747
        %v764 = vpack.c.b16 %v748, %v748
        %v765 = vpack.c.b16 %v749, %v749
        %v766 = vpack.c.b16 %v750, %v750
        %v767 = vpack.c.b16 %v751, %v751
        %v768 = vpack.c.b16 %v752, %v752
        %v769 = vpack.c.b16 %v753, %v753
        %v770 = vpack.c.b16 %v754, %v754
        %v771 = vpack.c.b16 %v755, %v755
        %v772 = vpack.c.b16 %v756, %v756
        %v773 = vpack.c.b16 %v757, %v757
        %v774 = vpack.c.b16 %v758, %v758
        %v775 = vpack.c.b16 %v759, %v759
        %v776 = vpack.c.b16 %v760, %v760
        %v778 = vshrl.u32 %v761, 16
        %v780 = vrot.slane %v778, 7
        %v781 = vshll.u32 %v761, 16
        %v783 = vor.u32 %v780, %v781
        %v784 = vrot.slane %v780, 4
        %v786 = vshrl.u32 %v762, 16
        %v788 = vrot.slane %v786, 7
        %v789 = vshll.u32 %v762, 16
        %v791 = vor.u32 %v788, %v789
        %v792 = vsel %vm655, %v784, %v791
        %v793 = vrot.slane %v788, 4
        %v795 = vshrl.u32 %v763, 16
        %v797 = vrot.slane %v795, 7
        %v798 = vshll.u32 %v763, 16
        %v800 = vor.u32 %v797, %v798
        %v801 = vrot.slane %v797, 4
        %v803 = vshrl.u32 %v764, 16
        %v805 = vrot.slane %v803, 7
        %v806 = vshll.u32 %v764, 16
        %v808 = vor.u32 %v805, %v806
        %v809 = vsel %vm655, %v801, %v808
        %v810 = vrot.slane %v805, 4
        %v812 = vshrl.u32 %v765, 16
        %v814 = vrot.slane %v812, 7
        %v815 = vshll.u32 %v765, 16
        %v817 = vor.u32 %v814, %v815
        %v818 = vrot.slane %v814, 4
        %v820 = vshrl.u32 %v766, 16
        %v822 = vrot.slane %v820, 7
        %v823 = vshll.u32 %v766, 16
        %v825 = vor.u32 %v822, %v823
        %v826 = vsel %vm655, %v818, %v825
        %v827 = vrot.slane %v822, 4
        %v829 = vshrl.u32 %v767, 16
        %v831 = vrot.slane %v829, 7
        %v832 = vshll.u32 %v767, 16
        %v834 = vor.u32 %v831, %v832
        %v835 = vrot.slane %v831, 4
        %v837 = vshrl.u32 %v768, 16
        %v839 = vrot.slane %v837, 7
        %v840 = vshll.u32 %v768, 16
        %v842 = vor.u32 %v839, %v840
        %v843 = vsel %vm655, %v835, %v842
        %v844 = vrot.slane %v839, 4
        %v846 = vshrl.u32 %v769, 16
        %v848 = vrot.slane %v846, 7
        %v849 = vshll.u32 %v769, 16
        %v851 = vor.u32 %v848, %v849
        %v852 = vrot.slane %v848, 4
        %v854 = vshrl.u32 %v770, 16
        %v856 = vrot.slane %v854, 7
        %v857 = vshll.u32 %v770, 16
        %v859 = vor.u32 %v856, %v857
        %v860 = vsel %vm655, %v852, %v859
        %v861 = vrot.slane %v856, 4
        %v863 = vshrl.u32 %v771, 16
        %v865 = vrot.slane %v863, 7
        %v866 = vshll.u32 %v771, 16
        %v868 = vor.u32 %v865, %v866
        %v869 = vrot.slane %v865, 4
        %v871 = vshrl.u32 %v772, 16
        %v873 = vrot.slane %v871, 7
        %v874 = vshll.u32 %v772, 16
        %v876 = vor.u32 %v873, %v874
        %v877 = vsel %vm655, %v869, %v876
        %v878 = vrot.slane %v873, 4
        %v880 = vshrl.u32 %v773, 16
        %v882 = vrot.slane %v880, 7
        %v883 = vshll.u32 %v773, 16
        %v885 = vor.u32 %v882, %v883
        %v886 = vrot.slane %v882, 4
        %v888 = vshrl.u32 %v774, 16
        %v890 = vrot.slane %v888, 7
        %v891 = vshll.u32 %v774, 16
        %v893 = vor.u32 %v890, %v891
        %v894 = vsel %vm655, %v886, %v893
        %v895 = vrot.slane %v890, 4
        %v897 = vshrl.u32 %v775, 16
        %v899 = vrot.slane %v897, 7
        %v900 = vshll.u32 %v775, 16
        %v902 = vor.u32 %v899, %v900
        %v903 = vrot.slane %v899, 4
        %v905 = vshrl.u32 %v776, 16
        %v907 = vrot.slane %v905, 7
        %v908 = vshll.u32 %v776, 16
        %v910 = vor.u32 %v907, %v908
        %v911 = vsel %vm655, %v903, %v910
        %v912 = vrot.slane %v907, 4
        %s937 = scalar_lea.vmem [#allocation2], 24
        %v938 = vld [vmem:[%s937] sm:$0xf]
        %v939 = vsel %vm697, %v783, %v938
        %940 = vst [vmem:[%s937] sm:$0xf] %v939
        %941 = vst.msk [vmem:[%s937 + $0x4] sm:$0xf] %vm701, %v792
        %v942 = vld [vmem:[%s937 + $0x8] sm:$0x1]
        %v943 = vsel %vm563, %v793, %v942
        %944 = vst [vmem:[%s937 + $0x8] sm:$0x1] %v943
        %v945 = vld [vmem:[%s937 + $0xc] sm:$0xf]
        %v946 = vsel %vm697, %v800, %v945
        %947 = vst [vmem:[%s937 + $0xc] sm:$0xf] %v946
        %948 = vst.msk [vmem:[%s937 + $0x10] sm:$0xf] %vm701, %v809
        %v949 = vld [vmem:[%s937 + $0x14] sm:$0x1]
        %v950 = vsel %vm563, %v810, %v949
        %951 = vst [vmem:[%s937 + $0x14] sm:$0x1] %v950
        %v952 = vld [vmem:[%s937 + $0x18] sm:$0xf]
        %v953 = vsel %vm697, %v817, %v952
        %954 = vst [vmem:[%s937 + $0x18] sm:$0xf] %v953
        %955 = vst.msk [vmem:[%s937 + $0x1c] sm:$0xf] %vm701, %v826
        %v956 = vld [vmem:[%s937 + $0x20] sm:$0x1]
        %v957 = vsel %vm563, %v827, %v956
        %958 = vst [vmem:[%s937 + $0x20] sm:$0x1] %v957
        %v959 = vld [vmem:[%s937 + $0x24] sm:$0xf]
        %v960 = vsel %vm697, %v834, %v959
        %961 = vst [vmem:[%s937 + $0x24] sm:$0xf] %v960
        %962 = vst.msk [vmem:[%s937 + $0x28] sm:$0xf] %vm701, %v843
        %v963 = vld [vmem:[%s937 + $0x2c] sm:$0x1]
        %v964 = vsel %vm563, %v844, %v963
        %965 = vst [vmem:[%s937 + $0x2c] sm:$0x1] %v964
        %v966 = vld [vmem:[%s937 + $0x30] sm:$0xf]
        %v967 = vsel %vm697, %v851, %v966
        %968 = vst [vmem:[%s937 + $0x30] sm:$0xf] %v967
        %969 = vst.msk [vmem:[%s937 + $0x34] sm:$0xf] %vm701, %v860
        %v970 = vld [vmem:[%s937 + $0x38] sm:$0x1]
        %v971 = vsel %vm563, %v861, %v970
        %972 = vst [vmem:[%s937 + $0x38] sm:$0x1] %v971
        %v973 = vld [vmem:[%s937 + $0x3c] sm:$0xf]
        %v974 = vsel %vm697, %v868, %v973
        %975 = vst [vmem:[%s937 + $0x3c] sm:$0xf] %v974
        %976 = vst.msk [vmem:[%s937 + $0x40] sm:$0xf] %vm701, %v877
        %v977 = vld [vmem:[%s937 + $0x44] sm:$0x1]
        %v978 = vsel %vm563, %v878, %v977
        %979 = vst [vmem:[%s937 + $0x44] sm:$0x1] %v978
        %v980 = vld [vmem:[%s937 + $0x48] sm:$0xf]
        %v981 = vsel %vm697, %v885, %v980
        %982 = vst [vmem:[%s937 + $0x48] sm:$0xf] %v981
        %983 = vst.msk [vmem:[%s937 + $0x4c] sm:$0xf] %vm701, %v894
        %v984 = vld [vmem:[%s937 + $0x50] sm:$0x1]
        %v985 = vsel %vm563, %v895, %v984
        %986 = vst [vmem:[%s937 + $0x50] sm:$0x1] %v985
        %v987 = vld [vmem:[%s937 + $0x54] sm:$0xf]
        %v988 = vsel %vm697, %v902, %v987
        %989 = vst [vmem:[%s937 + $0x54] sm:$0xf] %v988
        %990 = vst.msk [vmem:[%s937 + $0x58] sm:$0xf] %vm701, %v911
        %v991 = vld [vmem:[%s937 + $0x5c] sm:$0x1]
        %v992 = vsel %vm563, %v912, %v991
        %993 = vst [vmem:[%s937 + $0x5c] sm:$0x1] %v992
        %v994 = vld [vmem:[%s546] sm:$0xff]
        %v995 = vld [vmem:[%s546 + $0x8] sm:$0xff]
        %v996 = vld [vmem:[%s546 + $0x10] sm:$0xff]
        %v997 = vld [vmem:[%s546 + $0x18] sm:$0xff]
        %v998 = vpack.c.bf16 %v995, %v994
        %v999 = vpack.c.bf16 %v997, %v996
        %v1002 = vunpack.c.l.b16 %v998
        %v1003 = vunpack.c.h.b16 %v998
        %v1004 = vunpack.c.l.b16 %v999
        %v1005 = vunpack.c.h.b16 %v999
        %v1006 = vpack.c.b16 %v1002, %v1002
        %v1007 = vpack.c.b16 %v1003, %v1003
        %v1008 = vpack.c.b16 %v1004, %v1004
        %v1009 = vpack.c.b16 %v1005, %v1005
        %v1011 = vshrl.u32 %v1006, 16
        %v1013 = vrot.slane %v1011, 7
        %v1014 = vshll.u32 %v1006, 16
        %v1016 = vor.u32 %v1013, %v1014
        %v1017 = vrot.slane %v1013, 4
        %v1019 = vshrl.u32 %v1007, 16
        %v1021 = vrot.slane %v1019, 7
        %v1022 = vshll.u32 %v1007, 16
        %v1024 = vor.u32 %v1021, %v1022
        %v1025 = vsel %vm655, %v1017, %v1024
        %v1026 = vrot.slane %v1021, 4
        %v1028 = vshrl.u32 %v1008, 16
        %v1030 = vrot.slane %v1028, 7
        %v1031 = vshll.u32 %v1008, 16
        %v1033 = vor.u32 %v1030, %v1031
        %v1034 = vrot.slane %v1030, 4
        %v1036 = vshrl.u32 %v1009, 16
        %v1038 = vrot.slane %v1036, 7
        %v1039 = vshll.u32 %v1009, 16
        %v1041 = vor.u32 %v1038, %v1039
        %v1042 = vsel %vm655, %v1034, %v1041
        %v1043 = vrot.slane %v1038, 4
        %s1050 = scalar_lea.vmem [#allocation2], 120
        %v1051 = vld [vmem:[%s1050] sm:$0xf]
        %v1052 = vsel %vm697, %v1016, %v1051
        %1053 = vst [vmem:[%s1050] sm:$0xf] %v1052
        %1054 = vst.msk [vmem:[%s1050 + $0x4] sm:$0xf] %vm701, %v1025
        %v1055 = vld [vmem:[%s1050 + $0x8] sm:$0x1]
        %v1056 = vsel %vm563, %v1026, %v1055
        %1057 = vst [vmem:[%s1050 + $0x8] sm:$0x1] %v1056
        %v1058 = vld [vmem:[%s1050 + $0xc] sm:$0xf]
        %v1059 = vsel %vm697, %v1033, %v1058
        %1060 = vst [vmem:[%s1050 + $0xc] sm:$0xf] %v1059
        %1061 = vst.msk [vmem:[%s1050 + $0x10] sm:$0xf] %vm701, %v1042
        %v1062 = vld [vmem:[%s1050 + $0x14] sm:$0x1]
        %v1063 = vsel %vm563, %v1043, %v1062
        %1064 = vst [vmem:[%s1050 + $0x14] sm:$0x1] %v1063
        %p1065 = scmp.eq.s32.totalorder %s28, 0
        // Predicated region
        $region69: #{tpu_custom_call.1} parent=59 // pred_check
          %p1066 = pneg %p1065
        $region70: #{tpu_custom_call.1} parent=59 // pred_check_branch
          %1068 = sbr.rel (%p1066) target = $region72
        $region71: #{tpu_custom_call.1} parent=59 // pred_region
          %1069 = vst.msk [vmem:[#allocation2] sm:$0xf] %vm701, 0
          %1070 = vst.msk [vmem:[#allocation2 + $0x4] sm:$0xf] %vm701, 0
          %vm1071 = vcmask 24576
          %1072 = vst.msk [vmem:[#allocation2 + $0x8] sm:$0x1] %vm1071, 0
          %1073 = vst.msk [vmem:[#allocation2 + $0xc] sm:$0xf] %vm701, 0
          %1074 = vst.msk [vmem:[#allocation2 + $0x10] sm:$0xf] %vm701, 0
          %1075 = vst.msk [vmem:[#allocation2 + $0x14] sm:$0x1] %vm1071, 0
        $region72: #{tpu_custom_call.1} parent=59 // pred_fallthru
          _
        %p1076 = scmp.eq.s32.totalorder %s28, 1
        // Predicated region
        $region73: #{tpu_custom_call.1} parent=59 // pred_check
          %p1077 = pneg %p1076
        $region74: #{tpu_custom_call.1} parent=59 // pred_check_branch
          %1079 = sbr.rel (%p1077) target = $region76
        $region75: #{tpu_custom_call.1} parent=59 // pred_region
          %1080 = vst.msk [vmem:[%s1050] sm:$0xf] %vm701, 0
          %1081 = vst.msk [vmem:[%s1050 + $0x4] sm:$0xf] %vm701, 0
          %vm1082 = vcmask 24576
          %1083 = vst.msk [vmem:[%s1050 + $0x8] sm:$0x1] %vm1082, 0
          %1084 = vst.msk [vmem:[%s1050 + $0xc] sm:$0xf] %vm701, 0
          %1085 = vst.msk [vmem:[%s1050 + $0x10] sm:$0xf] %vm701, 0
          %1086 = vst.msk [vmem:[%s1050 + $0x14] sm:$0x1] %vm1082, 0
        $region76: #{tpu_custom_call.1} parent=59 // pred_fallthru
          _
        %v1087 = vld [vmem:[#allocation2] sm:$0xf]
        %v1088 = vld [vmem:[#allocation2 + $0x4] sm:$0xf]
        %v1089 = vld [vmem:[#allocation2 + $0x8] sm:$0x1]
        %v1090 = vld [vmem:[#allocation2 + $0xc] sm:$0xf]
        %v1091 = vld [vmem:[#allocation2 + $0x10] sm:$0xf]
        %v1092 = vld [vmem:[#allocation2 + $0x14] sm:$0x1]
        %v1093 = vld [vmem:[#allocation2 + $0x18] sm:$0xf]
        %v1094 = vld [vmem:[#allocation2 + $0x1c] sm:$0xf]
        %v1095 = vld [vmem:[#allocation2 + $0x20] sm:$0x1]
        %v1096 = vld [vmem:[#allocation2 + $0x24] sm:$0xf]
        %v1097 = vld [vmem:[#allocation2 + $0x28] sm:$0xf]
        %v1098 = vld [vmem:[#allocation2 + $0x2c] sm:$0x1]
        %v1099 = vld [vmem:[#allocation2 + $0x30] sm:$0xf]
        %v1100 = vld [vmem:[#allocation2 + $0x34] sm:$0xf]
        %v1101 = vld [vmem:[#allocation2 + $0x38] sm:$0x1]
        %v1102 = vld [vmem:[#allocation2 + $0x3c] sm:$0xf]
        %v1103 = vld [vmem:[#allocation2 + $0x40] sm:$0xf]
        %v1104 = vld [vmem:[#allocation2 + $0x44] sm:$0x1]
        %v1105 = vld [vmem:[#allocation2 + $0x48] sm:$0xf]
        %v1106 = vld [vmem:[#allocation2 + $0x4c] sm:$0xf]
        %v1107 = vld [vmem:[#allocation2 + $0x50] sm:$0x1]
        %v1108 = vld [vmem:[#allocation2 + $0x54] sm:$0xf]
        %v1109 = vld [vmem:[#allocation2 + $0x58] sm:$0xf]
        %v1110 = vld [vmem:[#allocation2 + $0x5c] sm:$0x1]
        %v1111 = vld [vmem:[#allocation2 + $0x60] sm:$0xf]
        %v1112 = vld [vmem:[#allocation2 + $0x64] sm:$0xf]
        %v1113 = vld [vmem:[#allocation2 + $0x68] sm:$0x1]
        %v1114 = vld [vmem:[#allocation2 + $0x6c] sm:$0xf]
        %v1115 = vld [vmem:[#allocation2 + $0x70] sm:$0xf]
        %v1116 = vld [vmem:[#allocation2 + $0x74] sm:$0x1]
        %v1117 = vld [vmem:[#allocation2 + $0x78] sm:$0xf]
        %v1118 = vld [vmem:[#allocation2 + $0x7c] sm:$0xf]
        %v1119 = vld [vmem:[#allocation2 + $0x80] sm:$0x1]
        %v1120 = vld [vmem:[#allocation2 + $0x84] sm:$0xf]
        %v1121 = vld [vmem:[#allocation2 + $0x88] sm:$0xf]
        %v1122 = vld [vmem:[#allocation2 + $0x8c] sm:$0x1]
        %v1123 = vld [vmem:[%s3] sm:$0x3]
        %s1124 = scalar_lea.vmem %s3, 6
        %v1125 = vld [vmem:[%s1124] sm:$0x3]
        %v1146 = vunpack.c.l.b16 %v1090
        %v1147 = vunpack.c.l.b16 %v1091
        %v1148 = vunpack.c.l.b16 %v1093
        %v1149 = vunpack.c.l.b16 %v1094
        %v1150 = vunpack.c.l.b16 %v1096
        %v1151 = vunpack.c.l.b16 %v1097
        %v1152 = vunpack.c.l.b16 %v1099
        %v1153 = vunpack.c.l.b16 %v1100
        %v1154 = vunpack.c.l.b16 %v1102
        %v1155 = vunpack.c.l.b16 %v1103
        %v1156 = vunpack.c.l.b16 %v1105
        %v1157 = vunpack.c.l.b16 %v1106
        %v1158 = vunpack.c.l.b16 %v1108
        %v1159 = vunpack.c.l.b16 %v1109
        %v1160 = vunpack.c.l.b16 %v1111
        %v1161 = vunpack.c.l.b16 %v1112
        %v1162 = vunpack.c.l.b16 %v1114
        %v1163 = vunpack.c.l.b16 %v1115
        %v1164 = vunpack.c.l.b16 %v1117
        %v1165 = vunpack.c.l.b16 %v1118
        %v1166 = vpack.c.b16 %v1147, %v1146
        %v1167 = vpack.c.b16 %v1149, %v1148
        %v1168 = vpack.c.b16 %v1151, %v1150
        %v1169 = vpack.c.b16 %v1153, %v1152
        %v1170 = vpack.c.b16 %v1155, %v1154
        %v1171 = vpack.c.b16 %v1157, %v1156
        %v1172 = vpack.c.b16 %v1159, %v1158
        %v1173 = vpack.c.b16 %v1161, %v1160
        %v1174 = vpack.c.b16 %v1163, %v1162
        %v1175 = vpack.c.b16 %v1165, %v1164
        %vm1176 = vcmask 31744
        %v1178 = vsel %vm1176, %v1166, 0
        %v1181 = vsel %vm1176, %v1167, 0
        %v1184 = vsel %vm1176, %v1168, 0
        %v1187 = vsel %vm1176, %v1169, 0
        %v1190 = vsel %vm1176, %v1170, 0
        %v1193 = vsel %vm1176, %v1171, 0
        %v1196 = vsel %vm1176, %v1172, 0
        %v1199 = vsel %vm1176, %v1173, 0
        %v1202 = vsel %vm1176, %v1174, 0
        %v1205 = vsel %vm1176, %v1175, 0
        %vm1207 = vcmask 1041408
        %v1209 = vsel %vm1207, %v1125, 0
        %1211 = vmatprep.subr.bf16.mxu0 0
        %1212 = vmatpush1.bf16.msra.mxu0 0
        %1213 = vmatprep.subr.bf16.mxu0 0
        %1214 = vmatpush1.bf16.msra.mxu0 0
        %1215 = vmatprep.subr.bf16.mxu0 0
        %1216 = vmatpush1.bf16.msra.mxu0 0
        %1217 = vmatprep.subr.bf16.mxu0 0
        %1218 = vmatpush1.bf16.msra.mxu0 0
        %1219 = vmatprep.subr.bf16.mxu0 0
        %1220 = vmatpush1.bf16.msra.mxu0 0
        %1221 = vmatprep.subr.bf16.mxu0 0
        %1222 = vmatpush1.bf16.msra.mxu0 0
        %1223 = vmatprep.subr.bf16.mxu0 0
        %1224 = vmatpush1.bf16.msra.mxu0 0
        %1225 = vmatprep.subr.bf16.mxu0 0
        %1226 = vmatpush1.bf16.msra.mxu0 %v1209
        %1227 = vmatprep.subr.bf16.mxu0 0
        %1228 = vmatpush2.bf16.msra.mxu0 0
        %1229 = vmatprep.subr.bf16.mxu0 0
        %1230 = vmatpush2.bf16.msra.mxu0 0
        %1231 = vmatprep.subr.bf16.mxu0 0
        %1232 = vmatpush2.bf16.msra.mxu0 0
        %1233 = vmatprep.subr.bf16.mxu0 0
        %1234 = vmatpush2.bf16.msra.mxu0 0
        %1235 = vmatprep.subr.bf16.mxu0 0
        %1236 = vmatpush2.bf16.msra.mxu0 0
        %1237 = vmatprep.subr.bf16.mxu0 0
        %1238 = vmatpush2.bf16.msra.mxu0 0
        %1239 = vmatprep.subr.bf16.mxu0 0
        %1240 = vmatpush2.bf16.msra.mxu0 0
        %1241 = vmatprep.subr.bf16.mxu0 0
        %1242 = vmatpush2.bf16.msra.mxu0 0
        %1243 = vmatprep.mubr.bf16.mxu0 0
        %1244 = vmatmul.mubr.bf16.gmra.mxu0 %v1178
        %v1245 = vpop.f32.mrf.mxu0
        %v1246 = vadd.f32 0.0, %v1245
        %v1247 = vpop.f32.mrf.mxu0
        %v1248 = vpop.f32.mrf.mxu0
        %v1249 = vadd.f32 0.0, %v1248
        %v1250 = vpop.f32.mrf.mxu0
        %1251 = vmatprep.mubr.bf16.mxu0 0
        %1252 = vmatmul.mubr.bf16.gmra.mxu0 %v1181
        %v1253 = vpop.f32.mrf.mxu0
        %v1254 = vadd.f32 0.0, %v1253
        %v1255 = vpop.f32.mrf.mxu0
        %v1256 = vpop.f32.mrf.mxu0
        %v1257 = vadd.f32 0.0, %v1256
        %v1258 = vpop.f32.mrf.mxu0
        %1259 = vmatprep.mubr.bf16.mxu0 0
        %1260 = vmatmul.mubr.bf16.gmra.mxu0 %v1184
        %v1261 = vpop.f32.mrf.mxu0
        %v1262 = vadd.f32 0.0, %v1261
        %v1263 = vpop.f32.mrf.mxu0
        %v1264 = vpop.f32.mrf.mxu0
        %v1265 = vadd.f32 0.0, %v1264
        %v1266 = vpop.f32.mrf.mxu0
        %1267 = vmatprep.mubr.bf16.mxu0 0
        %1268 = vmatmul.mubr.bf16.gmra.mxu0 %v1187
        %v1269 = vpop.f32.mrf.mxu0
        %v1270 = vadd.f32 0.0, %v1269
        %v1271 = vpop.f32.mrf.mxu0
        %v1272 = vpop.f32.mrf.mxu0
        %v1273 = vadd.f32 0.0, %v1272
        %v1274 = vpop.f32.mrf.mxu0
        %1275 = vmatprep.mubr.bf16.mxu0 0
        %1276 = vmatmul.mubr.bf16.gmra.mxu0 %v1190
        %v1277 = vpop.f32.mrf.mxu0
        %v1278 = vadd.f32 0.0, %v1277
        %v1279 = vpop.f32.mrf.mxu0
        %v1280 = vpop.f32.mrf.mxu0
        %v1281 = vadd.f32 0.0, %v1280
        %v1282 = vpop.f32.mrf.mxu0
        %1283 = vmatprep.mubr.bf16.mxu0 0
        %1284 = vmatmul.mubr.bf16.gmra.mxu0 %v1193
        %v1285 = vpop.f32.mrf.mxu0
        %v1286 = vadd.f32 0.0, %v1285
        %v1287 = vpop.f32.mrf.mxu0
        %v1288 = vpop.f32.mrf.mxu0
        %v1289 = vadd.f32 0.0, %v1288
        %v1290 = vpop.f32.mrf.mxu0
        %1291 = vmatprep.mubr.bf16.mxu0 0
        %1292 = vmatmul.mubr.bf16.gmra.mxu0 %v1196
        %v1293 = vpop.f32.mrf.mxu0
        %v1294 = vadd.f32 0.0, %v1293
        %v1295 = vpop.f32.mrf.mxu0
        %v1296 = vpop.f32.mrf.mxu0
        %v1297 = vadd.f32 0.0, %v1296
        %v1298 = vpop.f32.mrf.mxu0
        %1299 = vmatprep.mubr.bf16.mxu0 0
        %1300 = vmatmul.mubr.bf16.gmra.mxu0 %v1199
        %v1301 = vpop.f32.mrf.mxu0
        %v1302 = vadd.f32 0.0, %v1301
        %v1303 = vpop.f32.mrf.mxu0
        %v1304 = vpop.f32.mrf.mxu0
        %v1305 = vadd.f32 0.0, %v1304
        %v1306 = vpop.f32.mrf.mxu0
        %1307 = vmatprep.mubr.bf16.mxu0 0
        %1308 = vmatmul.mubr.bf16.gmra.mxu0 %v1202
        %v1309 = vpop.f32.mrf.mxu0
        %v1310 = vadd.f32 0.0, %v1309
        %v1311 = vpop.f32.mrf.mxu0
        %v1312 = vpop.f32.mrf.mxu0
        %v1313 = vadd.f32 0.0, %v1312
        %v1314 = vpop.f32.mrf.mxu0
        %1315 = vmatprep.mubr.bf16.mxu0 0
        %1316 = vmatmul.mubr.bf16.gmra.mxu0 %v1205
        %v1317 = vpop.f32.mrf.mxu0
        %v1318 = vadd.f32 0.0, %v1317
        %v1319 = vpop.f32.mrf.mxu0
        %v1320 = vpop.f32.mrf.mxu0
        %v1321 = vadd.f32 0.0, %v1320
        %v1322 = vpop.f32.mrf.mxu0
        %1323 = vdwg.mxu0
        %v1326 = vunpack.c.l.b16 %v1087
        %v1327 = vunpack.c.l.b16 %v1088
        %v1328 = vpack.c.b16 %v1327, %v1326
        %v1330 = vsel %vm1176, %v1328, 0
        %v1333 = vsel %vm1207, %v1123, 0
        %1335 = vmatprep.subr.bf16.mxu0 0
        %1336 = vmatpush1.bf16.msra.mxu0 0
        %1337 = vmatprep.subr.bf16.mxu0 0
        %1338 = vmatpush1.bf16.msra.mxu0 0
        %1339 = vmatprep.subr.bf16.mxu0 0
        %1340 = vmatpush1.bf16.msra.mxu0 0
        %1341 = vmatprep.subr.bf16.mxu0 0
        %1342 = vmatpush1.bf16.msra.mxu0 0
        %1343 = vmatprep.subr.bf16.mxu0 0
        %1344 = vmatpush1.bf16.msra.mxu0 0
        %1345 = vmatprep.subr.bf16.mxu0 0
        %1346 = vmatpush1.bf16.msra.mxu0 0
        %1347 = vmatprep.subr.bf16.mxu0 0
        %1348 = vmatpush1.bf16.msra.mxu0 0
        %1349 = vmatprep.subr.bf16.mxu0 0
        %1350 = vmatpush1.bf16.msra.mxu0 %v1333
        %1351 = vmatprep.subr.bf16.mxu0 0
        %1352 = vmatpush2.bf16.msra.mxu0 0
        %1353 = vmatprep.subr.bf16.mxu0 0
        %1354 = vmatpush2.bf16.msra.mxu0 0
        %1355 = vmatprep.subr.bf16.mxu0 0
        %1356 = vmatpush2.bf16.msra.mxu0 0
        %1357 = vmatprep.subr.bf16.mxu0 0
        %1358 = vmatpush2.bf16.msra.mxu0 0
        %1359 = vmatprep.subr.bf16.mxu0 0
        %1360 = vmatpush2.bf16.msra.mxu0 0
        %1361 = vmatprep.subr.bf16.mxu0 0
        %1362 = vmatpush2.bf16.msra.mxu0 0
        %1363 = vmatprep.subr.bf16.mxu0 0
        %1364 = vmatpush2.bf16.msra.mxu0 0
        %1365 = vmatprep.subr.bf16.mxu0 0
        %1366 = vmatpush2.bf16.msra.mxu0 0
        %1367 = vmatprep.mubr.bf16.mxu0 0
        %1368 = vmatmul.mubr.bf16.gmra.mxu0 %v1330
        %v1369 = vpop.f32.mrf.mxu0
        %v1370 = vadd.f32 %v1246, %v1369
        %v1371 = vpop.f32.mrf.mxu0
        %v1372 = vpop.f32.mrf.mxu0
        %v1373 = vadd.f32 %v1249, %v1372
        %v1374 = vpop.f32.mrf.mxu0
        %1375 = vmatprep.mubr.bf16.mxu0 0
        %1376 = vmatmul.mubr.bf16.gmra.mxu0 %v1178
        %v1377 = vpop.f32.mrf.mxu0
        %v1378 = vadd.f32 %v1254, %v1377
        %v1379 = vpop.f32.mrf.mxu0
        %v1380 = vpop.f32.mrf.mxu0
        %v1381 = vadd.f32 %v1257, %v1380
        %v1382 = vpop.f32.mrf.mxu0
        %1383 = vmatprep.mubr.bf16.mxu0 0
        %1384 = vmatmul.mubr.bf16.gmra.mxu0 %v1181
        %v1385 = vpop.f32.mrf.mxu0
        %v1386 = vadd.f32 %v1262, %v1385
        %v1387 = vpop.f32.mrf.mxu0
        %v1388 = vpop.f32.mrf.mxu0
        %v1389 = vadd.f32 %v1265, %v1388
        %v1390 = vpop.f32.mrf.mxu0
        %1391 = vmatprep.mubr.bf16.mxu0 0
        %1392 = vmatmul.mubr.bf16.gmra.mxu0 %v1184
        %v1393 = vpop.f32.mrf.mxu0
        %v1394 = vadd.f32 %v1270, %v1393
        %v1395 = vpop.f32.mrf.mxu0
        %v1396 = vpop.f32.mrf.mxu0
        %v1397 = vadd.f32 %v1273, %v1396
        %v1398 = vpop.f32.mrf.mxu0
        %1399 = vmatprep.mubr.bf16.mxu0 0
        %1400 = vmatmul.mubr.bf16.gmra.mxu0 %v1187
        %v1401 = vpop.f32.mrf.mxu0
        %v1402 = vadd.f32 %v1278, %v1401
        %v1403 = vpop.f32.mrf.mxu0
        %v1404 = vpop.f32.mrf.mxu0
        %v1405 = vadd.f32 %v1281, %v1404
        %v1406 = vpop.f32.mrf.mxu0
        %1407 = vmatprep.mubr.bf16.mxu0 0
        %1408 = vmatmul.mubr.bf16.gmra.mxu0 %v1190
        %v1409 = vpop.f32.mrf.mxu0
        %v1410 = vadd.f32 %v1286, %v1409
        %v1411 = vpop.f32.mrf.mxu0
        %v1412 = vpop.f32.mrf.mxu0
        %v1413 = vadd.f32 %v1289, %v1412
        %v1414 = vpop.f32.mrf.mxu0
        %1415 = vmatprep.mubr.bf16.mxu0 0
        %1416 = vmatmul.mubr.bf16.gmra.mxu0 %v1193
        %v1417 = vpop.f32.mrf.mxu0
        %v1418 = vadd.f32 %v1294, %v1417
        %v1419 = vpop.f32.mrf.mxu0
        %v1420 = vpop.f32.mrf.mxu0
        %v1421 = vadd.f32 %v1297, %v1420
        %v1422 = vpop.f32.mrf.mxu0
        %1423 = vmatprep.mubr.bf16.mxu0 0
        %1424 = vmatmul.mubr.bf16.gmra.mxu0 %v1196
        %v1425 = vpop.f32.mrf.mxu0
        %v1426 = vadd.f32 %v1302, %v1425
        %v1427 = vpop.f32.mrf.mxu0
        %v1428 = vpop.f32.mrf.mxu0
        %v1429 = vadd.f32 %v1305, %v1428
        %v1430 = vpop.f32.mrf.mxu0
        %1431 = vmatprep.mubr.bf16.mxu0 0
        %1432 = vmatmul.mubr.bf16.gmra.mxu0 %v1199
        %v1433 = vpop.f32.mrf.mxu0
        %v1434 = vadd.f32 %v1310, %v1433
        %v1435 = vpop.f32.mrf.mxu0
        %v1436 = vpop.f32.mrf.mxu0
        %v1437 = vadd.f32 %v1313, %v1436
        %v1438 = vpop.f32.mrf.mxu0
        %1439 = vmatprep.mubr.bf16.mxu0 0
        %1440 = vmatmul.mubr.bf16.gmra.mxu0 %v1202
        %v1441 = vpop.f32.mrf.mxu0
        %v1442 = vadd.f32 %v1318, %v1441
        %v1443 = vpop.f32.mrf.mxu0
        %v1444 = vpop.f32.mrf.mxu0
        %v1445 = vadd.f32 %v1321, %v1444
        %v1446 = vpop.f32.mrf.mxu0
        %1447 = vdwg.mxu0
        %s1448 = scalar_lea.vmem %s3, 12
        %v1449 = vld [vmem:[%s1448] sm:$0x3]
        %v1452 = vunpack.c.l.b16 %v1120
        %v1453 = vunpack.c.l.b16 %v1121
        %v1454 = vpack.c.b16 %v1453, %v1452
        %v1456 = vsel %vm1176, %v1454, 0
        %v1459 = vsel %vm1207, %v1449, 0
        %1461 = vmatprep.subr.bf16.mxu0 0
        %1462 = vmatpush1.bf16.msra.mxu0 0
        %1463 = vmatprep.subr.bf16.mxu0 0
        %1464 = vmatpush1.bf16.msra.mxu0 0
        %1465 = vmatprep.subr.bf16.mxu0 0
        %1466 = vmatpush1.bf16.msra.mxu0 0
        %1467 = vmatprep.subr.bf16.mxu0 0
        %1468 = vmatpush1.bf16.msra.mxu0 0
        %1469 = vmatprep.subr.bf16.mxu0 0
        %1470 = vmatpush1.bf16.msra.mxu0 0
        %1471 = vmatprep.subr.bf16.mxu0 0
        %1472 = vmatpush1.bf16.msra.mxu0 0
        %1473 = vmatprep.subr.bf16.mxu0 0
        %1474 = vmatpush1.bf16.msra.mxu0 0
        %1475 = vmatprep.subr.bf16.mxu0 0
        %1476 = vmatpush1.bf16.msra.mxu0 %v1459
        %1477 = vmatprep.subr.bf16.mxu0 0
        %1478 = vmatpush2.bf16.msra.mxu0 0
        %1479 = vmatprep.subr.bf16.mxu0 0
        %1480 = vmatpush2.bf16.msra.mxu0 0
        %1481 = vmatprep.subr.bf16.mxu0 0
        %1482 = vmatpush2.bf16.msra.mxu0 0
        %1483 = vmatprep.subr.bf16.mxu0 0
        %1484 = vmatpush2.bf16.msra.mxu0 0
        %1485 = vmatprep.subr.bf16.mxu0 0
        %1486 = vmatpush2.bf16.msra.mxu0 0
        %1487 = vmatprep.subr.bf16.mxu0 0
        %1488 = vmatpush2.bf16.msra.mxu0 0
        %1489 = vmatprep.subr.bf16.mxu0 0
        %1490 = vmatpush2.bf16.msra.mxu0 0
        %1491 = vmatprep.subr.bf16.mxu0 0
        %1492 = vmatpush2.bf16.msra.mxu0 0
        %1493 = vmatprep.mubr.bf16.mxu0 0
        %1494 = vmatmul.mubr.bf16.gmra.mxu0 %v1181
        %v1495 = vpop.f32.mrf.mxu0
        %v1496 = vadd.f32 0.0, %v1495
        %v1497 = vpop.f32.mrf.mxu0
        %v1498 = vpop.f32.mrf.mxu0
        %v1499 = vadd.f32 0.0, %v1498
        %v1500 = vpop.f32.mrf.mxu0
        %1501 = vmatprep.mubr.bf16.mxu0 0
        %1502 = vmatmul.mubr.bf16.gmra.mxu0 %v1184
        %v1503 = vpop.f32.mrf.mxu0
        %v1504 = vadd.f32 0.0, %v1503
        %v1505 = vpop.f32.mrf.mxu0
        %v1506 = vpop.f32.mrf.mxu0
        %v1507 = vadd.f32 0.0, %v1506
        %v1508 = vpop.f32.mrf.mxu0
        %1509 = vmatprep.mubr.bf16.mxu0 0
        %1510 = vmatmul.mubr.bf16.gmra.mxu0 %v1187
        %v1511 = vpop.f32.mrf.mxu0
        %v1512 = vadd.f32 0.0, %v1511
        %v1513 = vpop.f32.mrf.mxu0
        %v1514 = vpop.f32.mrf.mxu0
        %v1515 = vadd.f32 0.0, %v1514
        %v1516 = vpop.f32.mrf.mxu0
        %1517 = vmatprep.mubr.bf16.mxu0 0
        %1518 = vmatmul.mubr.bf16.gmra.mxu0 %v1190
        %v1519 = vpop.f32.mrf.mxu0
        %v1520 = vadd.f32 0.0, %v1519
        %v1521 = vpop.f32.mrf.mxu0
        %v1522 = vpop.f32.mrf.mxu0
        %v1523 = vadd.f32 0.0, %v1522
        %v1524 = vpop.f32.mrf.mxu0
        %1525 = vmatprep.mubr.bf16.mxu0 0
        %1526 = vmatmul.mubr.bf16.gmra.mxu0 %v1193
        %v1527 = vpop.f32.mrf.mxu0
        %v1528 = vadd.f32 0.0, %v1527
        %v1529 = vpop.f32.mrf.mxu0
        %v1530 = vpop.f32.mrf.mxu0
        %v1531 = vadd.f32 0.0, %v1530
        %v1532 = vpop.f32.mrf.mxu0
        %1533 = vmatprep.mubr.bf16.mxu0 0
        %1534 = vmatmul.mubr.bf16.gmra.mxu0 %v1196
        %v1535 = vpop.f32.mrf.mxu0
        %v1536 = vadd.f32 0.0, %v1535
        %v1537 = vpop.f32.mrf.mxu0
        %v1538 = vpop.f32.mrf.mxu0
        %v1539 = vadd.f32 0.0, %v1538
        %v1540 = vpop.f32.mrf.mxu0
        %1541 = vmatprep.mubr.bf16.mxu0 0
        %1542 = vmatmul.mubr.bf16.gmra.mxu0 %v1199
        %v1543 = vpop.f32.mrf.mxu0
        %v1544 = vadd.f32 0.0, %v1543
        %v1545 = vpop.f32.mrf.mxu0
        %v1546 = vpop.f32.mrf.mxu0
        %v1547 = vadd.f32 0.0, %v1546
        %v1548 = vpop.f32.mrf.mxu0
        %1549 = vmatprep.mubr.bf16.mxu0 0
        %1550 = vmatmul.mubr.bf16.gmra.mxu0 %v1202
        %v1551 = vpop.f32.mrf.mxu0
        %v1552 = vadd.f32 0.0, %v1551
        %v1553 = vpop.f32.mrf.mxu0
        %v1554 = vpop.f32.mrf.mxu0
        %v1555 = vadd.f32 0.0, %v1554
        %v1556 = vpop.f32.mrf.mxu0
        %1557 = vmatprep.mubr.bf16.mxu0 0
        %1558 = vmatmul.mubr.bf16.gmra.mxu0 %v1205
        %v1559 = vpop.f32.mrf.mxu0
        %v1560 = vadd.f32 0.0, %v1559
        %v1561 = vpop.f32.mrf.mxu0
        %v1562 = vpop.f32.mrf.mxu0
        %v1563 = vadd.f32 0.0, %v1562
        %v1564 = vpop.f32.mrf.mxu0
        %1565 = vmatprep.mubr.bf16.mxu0 0
        %1566 = vmatmul.mubr.bf16.gmra.mxu0 %v1456
        %v1567 = vpop.f32.mrf.mxu0
        %v1568 = vadd.f32 0.0, %v1567
        %v1569 = vpop.f32.mrf.mxu0
        %v1570 = vpop.f32.mrf.mxu0
        %v1571 = vadd.f32 0.0, %v1570
        %v1572 = vpop.f32.mrf.mxu0
        %1573 = vdwg.mxu0
        %v1574 = vadd.f32 %v1370, %v1496
        %v1575 = vadd.f32 %v1373, %v1499
        %v1576 = vadd.f32 %v1378, %v1504
        %v1577 = vadd.f32 %v1381, %v1507
        %v1578 = vadd.f32 %v1386, %v1512
        %v1579 = vadd.f32 %v1389, %v1515
        %v1580 = vadd.f32 %v1394, %v1520
        %v1581 = vadd.f32 %v1397, %v1523
        %v1582 = vadd.f32 %v1402, %v1528
        %v1583 = vadd.f32 %v1405, %v1531
        %v1584 = vadd.f32 %v1410, %v1536
        %v1585 = vadd.f32 %v1413, %v1539
        %v1586 = vadd.f32 %v1418, %v1544
        %v1587 = vadd.f32 %v1421, %v1547
        %v1588 = vadd.f32 %v1426, %v1552
        %v1589 = vadd.f32 %v1429, %v1555
        %v1590 = vadd.f32 %v1434, %v1560
        %v1591 = vadd.f32 %v1437, %v1563
        %v1592 = vadd.f32 %v1442, %v1568
        %v1593 = vadd.f32 %v1445, %v1571
        %s1594 = scalar_lea.vmem %s3, 2
        %v1595 = vld [vmem:[%s1594] sm:$0x3]
        %vm1596 = vsmask.f32 3328
        %vm1597 = vsmask.f32 7440
        %vm1598 = vmor %vm1596, %vm1597
        %v1600 = vshrl.u32 %v1087, 16
        %v1602 = vrot.slane %v1600, 4
        %v1603 = vshll.u32 %v1087, 16
        %v1605 = vrot.slane %v1603, 5
        %v1606 = vor.u32 %v1602, %v1605
        %v1607 = vrot.slane %v1606, 4
        %v1609 = vshll.u32 %v1088, 16
        %v1611 = vrot.slane %v1609, 5
        %v1612 = vsel %vm1598, %v1607, %v1611
        %v1613 = vshrl.u32 %v1088, 16
        %v1615 = vrot.slane %v1613, 4
        %v1616 = vor.u32 %v1615, %v1611
        %v1617 = vrot.slane %v1616, 4
        %v1619 = vshll.u32 %v1089, 16
        %v1621 = vrot.slane %v1619, 5
        %v1622 = vsel %vm1598, %v1617, %v1621
        %v1624 = vshrl.u32 %v1090, 16
        %v1626 = vrot.slane %v1624, 4
        %v1627 = vshll.u32 %v1090, 16
        %v1629 = vrot.slane %v1627, 5
        %v1630 = vor.u32 %v1626, %v1629
        %v1631 = vrot.slane %v1630, 4
        %v1633 = vshll.u32 %v1091, 16
        %v1635 = vrot.slane %v1633, 5
        %v1636 = vsel %vm1598, %v1631, %v1635
        %v1637 = vshrl.u32 %v1091, 16
        %v1639 = vrot.slane %v1637, 4
        %v1640 = vor.u32 %v1639, %v1635
        %v1641 = vrot.slane %v1640, 4
        %v1643 = vshll.u32 %v1092, 16
        %v1645 = vrot.slane %v1643, 5
        %v1646 = vsel %vm1598, %v1641, %v1645
        %v1648 = vshrl.u32 %v1093, 16
        %v1650 = vrot.slane %v1648, 4
        %v1651 = vshll.u32 %v1093, 16
        %v1653 = vrot.slane %v1651, 5
        %v1654 = vor.u32 %v1650, %v1653
        %v1655 = vrot.slane %v1654, 4
        %v1657 = vshll.u32 %v1094, 16
        %v1659 = vrot.slane %v1657, 5
        %v1660 = vsel %vm1598, %v1655, %v1659
        %v1661 = vshrl.u32 %v1094, 16
        %v1663 = vrot.slane %v1661, 4
        %v1664 = vor.u32 %v1663, %v1659
        %v1665 = vrot.slane %v1664, 4
        %v1667 = vshll.u32 %v1095, 16
        %v1669 = vrot.slane %v1667, 5
        %v1670 = vsel %vm1598, %v1665, %v1669
        %v1672 = vshrl.u32 %v1096, 16
        %v1674 = vrot.slane %v1672, 4
        %v1675 = vshll.u32 %v1096, 16
        %v1677 = vrot.slane %v1675, 5
        %v1678 = vor.u32 %v1674, %v1677
        %v1679 = vrot.slane %v1678, 4
        %v1681 = vshll.u32 %v1097, 16
        %v1683 = vrot.slane %v1681, 5
        %v1684 = vsel %vm1598, %v1679, %v1683
        %v1685 = vshrl.u32 %v1097, 16
        %v1687 = vrot.slane %v1685, 4
        %v1688 = vor.u32 %v1687, %v1683
        %v1689 = vrot.slane %v1688, 4
        %v1691 = vshll.u32 %v1098, 16
        %v1693 = vrot.slane %v1691, 5
        %v1694 = vsel %vm1598, %v1689, %v1693
        %v1696 = vshrl.u32 %v1099, 16
        %v1698 = vrot.slane %v1696, 4
        %v1699 = vshll.u32 %v1099, 16
        %v1701 = vrot.slane %v1699, 5
        %v1702 = vor.u32 %v1698, %v1701
        %v1703 = vrot.slane %v1702, 4
        %v1705 = vshll.u32 %v1100, 16
        %v1707 = vrot.slane %v1705, 5
        %v1708 = vsel %vm1598, %v1703, %v1707
        %v1709 = vshrl.u32 %v1100, 16
        %v1711 = vrot.slane %v1709, 4
        %v1712 = vor.u32 %v1711, %v1707
        %v1713 = vrot.slane %v1712, 4
        %v1715 = vshll.u32 %v1101, 16
        %v1717 = vrot.slane %v1715, 5
        %v1718 = vsel %vm1598, %v1713, %v1717
        %v1720 = vshrl.u32 %v1102, 16
        %v1722 = vrot.slane %v1720, 4
        %v1723 = vshll.u32 %v1102, 16
        %v1725 = vrot.slane %v1723, 5
        %v1726 = vor.u32 %v1722, %v1725
        %v1727 = vrot.slane %v1726, 4
        %v1729 = vshll.u32 %v1103, 16
        %v1731 = vrot.slane %v1729, 5
        %v1732 = vsel %vm1598, %v1727, %v1731
        %v1733 = vshrl.u32 %v1103, 16
        %v1735 = vrot.slane %v1733, 4
        %v1736 = vor.u32 %v1735, %v1731
        %v1737 = vrot.slane %v1736, 4
        %v1739 = vshll.u32 %v1104, 16
        %v1741 = vrot.slane %v1739, 5
        %v1742 = vsel %vm1598, %v1737, %v1741
        %v1744 = vshrl.u32 %v1105, 16
        %v1746 = vrot.slane %v1744, 4
        %v1747 = vshll.u32 %v1105, 16
        %v1749 = vrot.slane %v1747, 5
        %v1750 = vor.u32 %v1746, %v1749
        %v1751 = vrot.slane %v1750, 4
        %v1753 = vshll.u32 %v1106, 16
        %v1755 = vrot.slane %v1753, 5
        %v1756 = vsel %vm1598, %v1751, %v1755
        %v1757 = vshrl.u32 %v1106, 16
        %v1759 = vrot.slane %v1757, 4
        %v1760 = vor.u32 %v1759, %v1755
        %v1761 = vrot.slane %v1760, 4
        %v1763 = vshll.u32 %v1107, 16
        %v1765 = vrot.slane %v1763, 5
        %v1766 = vsel %vm1598, %v1761, %v1765
        %v1768 = vshrl.u32 %v1108, 16
        %v1770 = vrot.slane %v1768, 4
        %v1771 = vshll.u32 %v1108, 16
        %v1773 = vrot.slane %v1771, 5
        %v1774 = vor.u32 %v1770, %v1773
        %v1775 = vrot.slane %v1774, 4
        %v1777 = vshll.u32 %v1109, 16
        %v1779 = vrot.slane %v1777, 5
        %v1780 = vsel %vm1598, %v1775, %v1779
        %v1781 = vshrl.u32 %v1109, 16
        %v1783 = vrot.slane %v1781, 4
        %v1784 = vor.u32 %v1783, %v1779
        %v1785 = vrot.slane %v1784, 4
        %v1787 = vshll.u32 %v1110, 16
        %v1789 = vrot.slane %v1787, 5
        %v1790 = vsel %vm1598, %v1785, %v1789
        %v1792 = vshrl.u32 %v1111, 16
        %v1794 = vrot.slane %v1792, 4
        %v1795 = vshll.u32 %v1111, 16
        %v1797 = vrot.slane %v1795, 5
        %v1798 = vor.u32 %v1794, %v1797
        %v1799 = vrot.slane %v1798, 4
        %v1801 = vshll.u32 %v1112, 16
        %v1803 = vrot.slane %v1801, 5
        %v1804 = vsel %vm1598, %v1799, %v1803
        %v1805 = vshrl.u32 %v1112, 16
        %v1807 = vrot.slane %v1805, 4
        %v1808 = vor.u32 %v1807, %v1803
        %v1809 = vrot.slane %v1808, 4
        %v1811 = vshll.u32 %v1113, 16
        %v1813 = vrot.slane %v1811, 5
        %v1814 = vsel %vm1598, %v1809, %v1813
        %v1816 = vshrl.u32 %v1114, 16
        %v1818 = vrot.slane %v1816, 4
        %v1819 = vshll.u32 %v1114, 16
        %v1821 = vrot.slane %v1819, 5
        %v1822 = vor.u32 %v1818, %v1821
        %v1823 = vrot.slane %v1822, 4
        %v1825 = vshll.u32 %v1115, 16
        %v1827 = vrot.slane %v1825, 5
        %v1828 = vsel %vm1598, %v1823, %v1827
        %v1829 = vshrl.u32 %v1115, 16
        %v1831 = vrot.slane %v1829, 4
        %v1832 = vor.u32 %v1831, %v1827
        %v1833 = vrot.slane %v1832, 4
        %v1835 = vshll.u32 %v1116, 16
        %v1837 = vrot.slane %v1835, 5
        %v1838 = vsel %vm1598, %v1833, %v1837
        %v1839 = vunpack.c.l.b16 %v1612
        %v1840 = vunpack.c.l.b16 %v1622
        %v1841 = vunpack.c.l.b16 %v1636
        %v1842 = vunpack.c.l.b16 %v1646
        %v1843 = vunpack.c.l.b16 %v1660
        %v1844 = vunpack.c.l.b16 %v1670
        %v1845 = vunpack.c.l.b16 %v1684
        %v1846 = vunpack.c.l.b16 %v1694
        %v1847 = vunpack.c.l.b16 %v1708
        %v1848 = vunpack.c.l.b16 %v1718
        %v1849 = vunpack.c.l.b16 %v1732
        %v1850 = vunpack.c.l.b16 %v1742
        %v1851 = vunpack.c.l.b16 %v1756
        %v1852 = vunpack.c.l.b16 %v1766
        %v1853 = vunpack.c.l.b16 %v1780
        %v1854 = vunpack.c.l.b16 %v1790
        %v1855 = vunpack.c.l.b16 %v1804
        %v1856 = vunpack.c.l.b16 %v1814
        %v1857 = vunpack.c.l.b16 %v1828
        %v1858 = vunpack.c.l.b16 %v1838
        %v1859 = vpack.c.b16 %v1840, %v1839
        %v1860 = vpack.c.b16 %v1842, %v1841
        %v1861 = vpack.c.b16 %v1844, %v1843
        %v1862 = vpack.c.b16 %v1846, %v1845
        %v1863 = vpack.c.b16 %v1848, %v1847
        %v1864 = vpack.c.b16 %v1850, %v1849
        %v1865 = vpack.c.b16 %v1852, %v1851
        %v1866 = vpack.c.b16 %v1854, %v1853
        %v1867 = vpack.c.b16 %v1856, %v1855
        %v1868 = vpack.c.b16 %v1858, %v1857
        %v1870 = vsel %vm1176, %v1859, 0
        %v1873 = vsel %vm1176, %v1860, 0
        %v1876 = vsel %vm1176, %v1861, 0
        %v1879 = vsel %vm1176, %v1862, 0
        %v1882 = vsel %vm1176, %v1863, 0
        %v1885 = vsel %vm1176, %v1864, 0
        %v1888 = vsel %vm1176, %v1865, 0
        %v1891 = vsel %vm1176, %v1866, 0
        %v1894 = vsel %vm1176, %v1867, 0
        %v1897 = vsel %vm1176, %v1868, 0
        %v1900 = vsel %vm1207, %v1595, 0
        %1902 = vmatprep.subr.bf16.mxu0 0
        %1903 = vmatpush1.bf16.msra.mxu0 0
        %1904 = vmatprep.subr.bf16.mxu0 0
        %1905 = vmatpush1.bf16.msra.mxu0 0
        %1906 = vmatprep.subr.bf16.mxu0 0
        %1907 = vmatpush1.bf16.msra.mxu0 0
        %1908 = vmatprep.subr.bf16.mxu0 0
        %1909 = vmatpush1.bf16.msra.mxu0 0
        %1910 = vmatprep.subr.bf16.mxu0 0
        %1911 = vmatpush1.bf16.msra.mxu0 0
        %1912 = vmatprep.subr.bf16.mxu0 0
        %1913 = vmatpush1.bf16.msra.mxu0 0
        %1914 = vmatprep.subr.bf16.mxu0 0
        %1915 = vmatpush1.bf16.msra.mxu0 0
        %1916 = vmatprep.subr.bf16.mxu0 0
        %1917 = vmatpush1.bf16.msra.mxu0 %v1900
        %1918 = vmatprep.subr.bf16.mxu0 0
        %1919 = vmatpush2.bf16.msra.mxu0 0
        %1920 = vmatprep.subr.bf16.mxu0 0
        %1921 = vmatpush2.bf16.msra.mxu0 0
        %1922 = vmatprep.subr.bf16.mxu0 0
        %1923 = vmatpush2.bf16.msra.mxu0 0
        %1924 = vmatprep.subr.bf16.mxu0 0
        %1925 = vmatpush2.bf16.msra.mxu0 0
        %1926 = vmatprep.subr.bf16.mxu0 0
        %1927 = vmatpush2.bf16.msra.mxu0 0
        %1928 = vmatprep.subr.bf16.mxu0 0
        %1929 = vmatpush2.bf16.msra.mxu0 0
        %1930 = vmatprep.subr.bf16.mxu0 0
        %1931 = vmatpush2.bf16.msra.mxu0 0
        %1932 = vmatprep.subr.bf16.mxu0 0
        %1933 = vmatpush2.bf16.msra.mxu0 0
        %1934 = vmatprep.mubr.bf16.mxu0 0
        %1935 = vmatmul.mubr.bf16.gmra.mxu0 %v1870
        %v1936 = vpop.f32.mrf.mxu0
        %v1937 = vadd.f32 0.0, %v1936
        %v1938 = vpop.f32.mrf.mxu0
        %v1939 = vpop.f32.mrf.mxu0
        %v1940 = vadd.f32 0.0, %v1939
        %v1941 = vpop.f32.mrf.mxu0
        %1942 = vmatprep.mubr.bf16.mxu0 0
        %1943 = vmatmul.mubr.bf16.gmra.mxu0 %v1873
        %v1944 = vpop.f32.mrf.mxu0
        %v1945 = vadd.f32 0.0, %v1944
        %v1946 = vpop.f32.mrf.mxu0
        %v1947 = vpop.f32.mrf.mxu0
        %v1948 = vadd.f32 0.0, %v1947
        %v1949 = vpop.f32.mrf.mxu0
        %1950 = vmatprep.mubr.bf16.mxu0 0
        %1951 = vmatmul.mubr.bf16.gmra.mxu0 %v1876
        %v1952 = vpop.f32.mrf.mxu0
        %v1953 = vadd.f32 0.0, %v1952
        %v1954 = vpop.f32.mrf.mxu0
        %v1955 = vpop.f32.mrf.mxu0
        %v1956 = vadd.f32 0.0, %v1955
        %v1957 = vpop.f32.mrf.mxu0
        %1958 = vmatprep.mubr.bf16.mxu0 0
        %1959 = vmatmul.mubr.bf16.gmra.mxu0 %v1879
        %v1960 = vpop.f32.mrf.mxu0
        %v1961 = vadd.f32 0.0, %v1960
        %v1962 = vpop.f32.mrf.mxu0
        %v1963 = vpop.f32.mrf.mxu0
        %v1964 = vadd.f32 0.0, %v1963
        %v1965 = vpop.f32.mrf.mxu0
        %1966 = vmatprep.mubr.bf16.mxu0 0
        %1967 = vmatmul.mubr.bf16.gmra.mxu0 %v1882
        %v1968 = vpop.f32.mrf.mxu0
        %v1969 = vadd.f32 0.0, %v1968
        %v1970 = vpop.f32.mrf.mxu0
        %v1971 = vpop.f32.mrf.mxu0
        %v1972 = vadd.f32 0.0, %v1971
        %v1973 = vpop.f32.mrf.mxu0
        %1974 = vmatprep.mubr.bf16.mxu0 0
        %1975 = vmatmul.mubr.bf16.gmra.mxu0 %v1885
        %v1976 = vpop.f32.mrf.mxu0
        %v1977 = vadd.f32 0.0, %v1976
        %v1978 = vpop.f32.mrf.mxu0
        %v1979 = vpop.f32.mrf.mxu0
        %v1980 = vadd.f32 0.0, %v1979
        %v1981 = vpop.f32.mrf.mxu0
        %1982 = vmatprep.mubr.bf16.mxu0 0
        %1983 = vmatmul.mubr.bf16.gmra.mxu0 %v1888
        %v1984 = vpop.f32.mrf.mxu0
        %v1985 = vadd.f32 0.0, %v1984
        %v1986 = vpop.f32.mrf.mxu0
        %v1987 = vpop.f32.mrf.mxu0
        %v1988 = vadd.f32 0.0, %v1987
        %v1989 = vpop.f32.mrf.mxu0
        %1990 = vmatprep.mubr.bf16.mxu0 0
        %1991 = vmatmul.mubr.bf16.gmra.mxu0 %v1891
        %v1992 = vpop.f32.mrf.mxu0
        %v1993 = vadd.f32 0.0, %v1992
        %v1994 = vpop.f32.mrf.mxu0
        %v1995 = vpop.f32.mrf.mxu0
        %v1996 = vadd.f32 0.0, %v1995
        %v1997 = vpop.f32.mrf.mxu0
        %1998 = vmatprep.mubr.bf16.mxu0 0
        %1999 = vmatmul.mubr.bf16.gmra.mxu0 %v1894
        %v2000 = vpop.f32.mrf.mxu0
        %v2001 = vadd.f32 0.0, %v2000
        %v2002 = vpop.f32.mrf.mxu0
        %v2003 = vpop.f32.mrf.mxu0
        %v2004 = vadd.f32 0.0, %v2003
        %v2005 = vpop.f32.mrf.mxu0
        %2006 = vmatprep.mubr.bf16.mxu0 0
        %2007 = vmatmul.mubr.bf16.gmra.mxu0 %v1897
        %v2008 = vpop.f32.mrf.mxu0
        %v2009 = vadd.f32 0.0, %v2008
        %v2010 = vpop.f32.mrf.mxu0
        %v2011 = vpop.f32.mrf.mxu0
        %v2012 = vadd.f32 0.0, %v2011
        %v2013 = vpop.f32.mrf.mxu0
        %2014 = vdwg.mxu0
        %v2015 = vadd.f32 %v1574, %v1937
        %v2016 = vadd.f32 %v1575, %v1940
        %v2017 = vadd.f32 %v1576, %v1945
        %v2018 = vadd.f32 %v1577, %v1948
        %v2019 = vadd.f32 %v1578, %v1953
        %v2020 = vadd.f32 %v1579, %v1956
        %v2021 = vadd.f32 %v1580, %v1961
        %v2022 = vadd.f32 %v1581, %v1964
        %v2023 = vadd.f32 %v1582, %v1969
        %v2024 = vadd.f32 %v1583, %v1972
        %v2025 = vadd.f32 %v1584, %v1977
        %v2026 = vadd.f32 %v1585, %v1980
        %v2027 = vadd.f32 %v1586, %v1985
        %v2028 = vadd.f32 %v1587, %v1988
        %v2029 = vadd.f32 %v1588, %v1993
        %v2030 = vadd.f32 %v1589, %v1996
        %v2031 = vadd.f32 %v1590, %v2001
        %v2032 = vadd.f32 %v1591, %v2004
        %v2033 = vadd.f32 %v1592, %v2009
        %v2034 = vadd.f32 %v1593, %v2012
        %s2035 = scalar_lea.vmem %s3, 8
        %v2036 = vld [vmem:[%s2035] sm:$0x3]
        %v2038 = vshrl.u32 %v1117, 16
        %v2040 = vrot.slane %v2038, 4
        %v2041 = vshll.u32 %v1117, 16
        %v2043 = vrot.slane %v2041, 5
        %v2044 = vor.u32 %v2040, %v2043
        %v2045 = vrot.slane %v2044, 4
        %v2047 = vshll.u32 %v1118, 16
        %v2049 = vrot.slane %v2047, 5
        %v2050 = vsel %vm1598, %v2045, %v2049
        %v2051 = vshrl.u32 %v1118, 16
        %v2053 = vrot.slane %v2051, 4
        %v2054 = vor.u32 %v2053, %v2049
        %v2055 = vrot.slane %v2054, 4
        %v2057 = vshll.u32 %v1119, 16
        %v2059 = vrot.slane %v2057, 5
        %v2060 = vsel %vm1598, %v2055, %v2059
        %v2061 = vunpack.c.l.b16 %v2050
        %v2062 = vunpack.c.l.b16 %v2060
        %v2063 = vpack.c.b16 %v2062, %v2061
        %v2065 = vsel %vm1176, %v2063, 0
        %v2068 = vsel %vm1207, %v2036, 0
        %2070 = vmatprep.subr.bf16.mxu0 0
        %2071 = vmatpush1.bf16.msra.mxu0 0
        %2072 = vmatprep.subr.bf16.mxu0 0
        %2073 = vmatpush1.bf16.msra.mxu0 0
        %2074 = vmatprep.subr.bf16.mxu0 0
        %2075 = vmatpush1.bf16.msra.mxu0 0
        %2076 = vmatprep.subr.bf16.mxu0 0
        %2077 = vmatpush1.bf16.msra.mxu0 0
        %2078 = vmatprep.subr.bf16.mxu0 0
        %2079 = vmatpush1.bf16.msra.mxu0 0
        %2080 = vmatprep.subr.bf16.mxu0 0
        %2081 = vmatpush1.bf16.msra.mxu0 0
        %2082 = vmatprep.subr.bf16.mxu0 0
        %2083 = vmatpush1.bf16.msra.mxu0 0
        %2084 = vmatprep.subr.bf16.mxu0 0
        %2085 = vmatpush1.bf16.msra.mxu0 %v2068
        %2086 = vmatprep.subr.bf16.mxu0 0
        %2087 = vmatpush2.bf16.msra.mxu0 0
        %2088 = vmatprep.subr.bf16.mxu0 0
        %2089 = vmatpush2.bf16.msra.mxu0 0
        %2090 = vmatprep.subr.bf16.mxu0 0
        %2091 = vmatpush2.bf16.msra.mxu0 0
        %2092 = vmatprep.subr.bf16.mxu0 0
        %2093 = vmatpush2.bf16.msra.mxu0 0
        %2094 = vmatprep.subr.bf16.mxu0 0
        %2095 = vmatpush2.bf16.msra.mxu0 0
        %2096 = vmatprep.subr.bf16.mxu0 0
        %2097 = vmatpush2.bf16.msra.mxu0 0
        %2098 = vmatprep.subr.bf16.mxu0 0
        %2099 = vmatpush2.bf16.msra.mxu0 0
        %2100 = vmatprep.subr.bf16.mxu0 0
        %2101 = vmatpush2.bf16.msra.mxu0 0
        %2102 = vmatprep.mubr.bf16.mxu0 0
        %2103 = vmatmul.mubr.bf16.gmra.mxu0 %v1873
        %v2104 = vpop.f32.mrf.mxu0
        %v2105 = vadd.f32 0.0, %v2104
        %v2106 = vpop.f32.mrf.mxu0
        %v2107 = vpop.f32.mrf.mxu0
        %v2108 = vadd.f32 0.0, %v2107
        %v2109 = vpop.f32.mrf.mxu0
        %2110 = vmatprep.mubr.bf16.mxu0 0
        %2111 = vmatmul.mubr.bf16.gmra.mxu0 %v1876
        %v2112 = vpop.f32.mrf.mxu0
        %v2113 = vadd.f32 0.0, %v2112
        %v2114 = vpop.f32.mrf.mxu0
        %v2115 = vpop.f32.mrf.mxu0
        %v2116 = vadd.f32 0.0, %v2115
        %v2117 = vpop.f32.mrf.mxu0
        %2118 = vmatprep.mubr.bf16.mxu0 0
        %2119 = vmatmul.mubr.bf16.gmra.mxu0 %v1879
        %v2120 = vpop.f32.mrf.mxu0
        %v2121 = vadd.f32 0.0, %v2120
        %v2122 = vpop.f32.mrf.mxu0
        %v2123 = vpop.f32.mrf.mxu0
        %v2124 = vadd.f32 0.0, %v2123
        %v2125 = vpop.f32.mrf.mxu0
        %2126 = vmatprep.mubr.bf16.mxu0 0
        %2127 = vmatmul.mubr.bf16.gmra.mxu0 %v1882
        %v2128 = vpop.f32.mrf.mxu0
        %v2129 = vadd.f32 0.0, %v2128
        %v2130 = vpop.f32.mrf.mxu0
        %v2131 = vpop.f32.mrf.mxu0
        %v2132 = vadd.f32 0.0, %v2131
        %v2133 = vpop.f32.mrf.mxu0
        %2134 = vmatprep.mubr.bf16.mxu0 0
        %2135 = vmatmul.mubr.bf16.gmra.mxu0 %v1885
        %v2136 = vpop.f32.mrf.mxu0
        %v2137 = vadd.f32 0.0, %v2136
        %v2138 = vpop.f32.mrf.mxu0
        %v2139 = vpop.f32.mrf.mxu0
        %v2140 = vadd.f32 0.0, %v2139
        %v2141 = vpop.f32.mrf.mxu0
        %2142 = vmatprep.mubr.bf16.mxu0 0
        %2143 = vmatmul.mubr.bf16.gmra.mxu0 %v1888
        %v2144 = vpop.f32.mrf.mxu0
        %v2145 = vadd.f32 0.0, %v2144
        %v2146 = vpop.f32.mrf.mxu0
        %v2147 = vpop.f32.mrf.mxu0
        %v2148 = vadd.f32 0.0, %v2147
        %v2149 = vpop.f32.mrf.mxu0
        %2150 = vmatprep.mubr.bf16.mxu0 0
        %2151 = vmatmul.mubr.bf16.gmra.mxu0 %v1891
        %v2152 = vpop.f32.mrf.mxu0
        %v2153 = vadd.f32 0.0, %v2152
        %v2154 = vpop.f32.mrf.mxu0
        %v2155 = vpop.f32.mrf.mxu0
        %v2156 = vadd.f32 0.0, %v2155
        %v2157 = vpop.f32.mrf.mxu0
        %2158 = vmatprep.mubr.bf16.mxu0 0
        %2159 = vmatmul.mubr.bf16.gmra.mxu0 %v1894
        %v2160 = vpop.f32.mrf.mxu0
        %v2161 = vadd.f32 0.0, %v2160
        %v2162 = vpop.f32.mrf.mxu0
        %v2163 = vpop.f32.mrf.mxu0
        %v2164 = vadd.f32 0.0, %v2163
        %v2165 = vpop.f32.mrf.mxu0
        %2166 = vmatprep.mubr.bf16.mxu0 0
        %2167 = vmatmul.mubr.bf16.gmra.mxu0 %v1897
        %v2168 = vpop.f32.mrf.mxu0
        %v2169 = vadd.f32 0.0, %v2168
        %v2170 = vpop.f32.mrf.mxu0
        %v2171 = vpop.f32.mrf.mxu0
        %v2172 = vadd.f32 0.0, %v2171
        %v2173 = vpop.f32.mrf.mxu0
        %2174 = vmatprep.mubr.bf16.mxu0 0
        %2175 = vmatmul.mubr.bf16.gmra.mxu0 %v2065
        %v2176 = vpop.f32.mrf.mxu0
        %v2177 = vadd.f32 0.0, %v2176
        %v2178 = vpop.f32.mrf.mxu0
        %v2179 = vpop.f32.mrf.mxu0
        %v2180 = vadd.f32 0.0, %v2179
        %v2181 = vpop.f32.mrf.mxu0
        %2182 = vdwg.mxu0
        %v2183 = vadd.f32 %v2015, %v2105
        %v2184 = vadd.f32 %v2016, %v2108
        %v2185 = vadd.f32 %v2017, %v2113
        %v2186 = vadd.f32 %v2018, %v2116
        %v2187 = vadd.f32 %v2019, %v2121
        %v2188 = vadd.f32 %v2020, %v2124
        %v2189 = vadd.f32 %v2021, %v2129
        %v2190 = vadd.f32 %v2022, %v2132
        %v2191 = vadd.f32 %v2023, %v2137
        %v2192 = vadd.f32 %v2024, %v2140
        %v2193 = vadd.f32 %v2025, %v2145
        %v2194 = vadd.f32 %v2026, %v2148
        %v2195 = vadd.f32 %v2027, %v2153
        %v2196 = vadd.f32 %v2028, %v2156
        %v2197 = vadd.f32 %v2029, %v2161
        %v2198 = vadd.f32 %v2030, %v2164
        %v2199 = vadd.f32 %v2031, %v2169
        %v2200 = vadd.f32 %v2032, %v2172
        %v2201 = vadd.f32 %v2033, %v2177
        %v2202 = vadd.f32 %v2034, %v2180
        %s2203 = scalar_lea.vmem %s3, 14
        %v2204 = vld [vmem:[%s2203] sm:$0x3]
        %v2206 = vshrl.u32 %v1120, 16
        %v2208 = vrot.slane %v2206, 4
        %v2209 = vshll.u32 %v1120, 16
        %v2211 = vrot.slane %v2209, 5
        %v2212 = vor.u32 %v2208, %v2211
        %v2213 = vrot.slane %v2212, 4
        %v2215 = vshll.u32 %v1121, 16
        %v2217 = vrot.slane %v2215, 5
        %v2218 = vsel %vm1598, %v2213, %v2217
        %v2219 = vshrl.u32 %v1121, 16
        %v2221 = vrot.slane %v2219, 4
        %v2222 = vor.u32 %v2221, %v2217
        %v2223 = vrot.slane %v2222, 4
        %v2225 = vshll.u32 %v1122, 16
        %v2227 = vrot.slane %v2225, 5
        %v2228 = vsel %vm1598, %v2223, %v2227
        %v2229 = vunpack.c.l.b16 %v2218
        %v2230 = vunpack.c.l.b16 %v2228
        %v2231 = vpack.c.b16 %v2230, %v2229
        %v2233 = vsel %vm1176, %v2231, 0
        %v2236 = vsel %vm1207, %v2204, 0
        %2238 = vmatprep.subr.bf16.mxu0 0
        %2239 = vmatpush1.bf16.msra.mxu0 0
        %2240 = vmatprep.subr.bf16.mxu0 0
        %2241 = vmatpush1.bf16.msra.mxu0 0
        %2242 = vmatprep.subr.bf16.mxu0 0
        %2243 = vmatpush1.bf16.msra.mxu0 0
        %2244 = vmatprep.subr.bf16.mxu0 0
        %2245 = vmatpush1.bf16.msra.mxu0 0
        %2246 = vmatprep.subr.bf16.mxu0 0
        %2247 = vmatpush1.bf16.msra.mxu0 0
        %2248 = vmatprep.subr.bf16.mxu0 0
        %2249 = vmatpush1.bf16.msra.mxu0 0
        %2250 = vmatprep.subr.bf16.mxu0 0
        %2251 = vmatpush1.bf16.msra.mxu0 0
        %2252 = vmatprep.subr.bf16.mxu0 0
        %2253 = vmatpush1.bf16.msra.mxu0 %v2236
        %2254 = vmatprep.subr.bf16.mxu0 0
        %2255 = vmatpush2.bf16.msra.mxu0 0
        %2256 = vmatprep.subr.bf16.mxu0 0
        %2257 = vmatpush2.bf16.msra.mxu0 0
        %2258 = vmatprep.subr.bf16.mxu0 0
        %2259 = vmatpush2.bf16.msra.mxu0 0
        %2260 = vmatprep.subr.bf16.mxu0 0
        %2261 = vmatpush2.bf16.msra.mxu0 0
        %2262 = vmatprep.subr.bf16.mxu0 0
        %2263 = vmatpush2.bf16.msra.mxu0 0
        %2264 = vmatprep.subr.bf16.mxu0 0
        %2265 = vmatpush2.bf16.msra.mxu0 0
        %2266 = vmatprep.subr.bf16.mxu0 0
        %2267 = vmatpush2.bf16.msra.mxu0 0
        %2268 = vmatprep.subr.bf16.mxu0 0
        %2269 = vmatpush2.bf16.msra.mxu0 0
        %2270 = vmatprep.mubr.bf16.mxu0 0
        %2271 = vmatmul.mubr.bf16.gmra.mxu0 %v1876
        %v2272 = vpop.f32.mrf.mxu0
        %v2273 = vadd.f32 0.0, %v2272
        %v2274 = vpop.f32.mrf.mxu0
        %v2275 = vpop.f32.mrf.mxu0
        %v2276 = vadd.f32 0.0, %v2275
        %v2277 = vpop.f32.mrf.mxu0
        %2278 = vmatprep.mubr.bf16.mxu0 0
        %2279 = vmatmul.mubr.bf16.gmra.mxu0 %v1879
        %v2280 = vpop.f32.mrf.mxu0
        %v2281 = vadd.f32 0.0, %v2280
        %v2282 = vpop.f32.mrf.mxu0
        %v2283 = vpop.f32.mrf.mxu0
        %v2284 = vadd.f32 0.0, %v2283
        %v2285 = vpop.f32.mrf.mxu0
        %2286 = vmatprep.mubr.bf16.mxu0 0
        %2287 = vmatmul.mubr.bf16.gmra.mxu0 %v1882
        %v2288 = vpop.f32.mrf.mxu0
        %v2289 = vadd.f32 0.0, %v2288
        %v2290 = vpop.f32.mrf.mxu0
        %v2291 = vpop.f32.mrf.mxu0
        %v2292 = vadd.f32 0.0, %v2291
        %v2293 = vpop.f32.mrf.mxu0
        %2294 = vmatprep.mubr.bf16.mxu0 0
        %2295 = vmatmul.mubr.bf16.gmra.mxu0 %v1885
        %v2296 = vpop.f32.mrf.mxu0
        %v2297 = vadd.f32 0.0, %v2296
        %v2298 = vpop.f32.mrf.mxu0
        %v2299 = vpop.f32.mrf.mxu0
        %v2300 = vadd.f32 0.0, %v2299
        %v2301 = vpop.f32.mrf.mxu0
        %2302 = vmatprep.mubr.bf16.mxu0 0
        %2303 = vmatmul.mubr.bf16.gmra.mxu0 %v1888
        %v2304 = vpop.f32.mrf.mxu0
        %v2305 = vadd.f32 0.0, %v2304
        %v2306 = vpop.f32.mrf.mxu0
        %v2307 = vpop.f32.mrf.mxu0
        %v2308 = vadd.f32 0.0, %v2307
        %v2309 = vpop.f32.mrf.mxu0
        %2310 = vmatprep.mubr.bf16.mxu0 0
        %2311 = vmatmul.mubr.bf16.gmra.mxu0 %v1891
        %v2312 = vpop.f32.mrf.mxu0
        %v2313 = vadd.f32 0.0, %v2312
        %v2314 = vpop.f32.mrf.mxu0
        %v2315 = vpop.f32.mrf.mxu0
        %v2316 = vadd.f32 0.0, %v2315
        %v2317 = vpop.f32.mrf.mxu0
        %2318 = vmatprep.mubr.bf16.mxu0 0
        %2319 = vmatmul.mubr.bf16.gmra.mxu0 %v1894
        %v2320 = vpop.f32.mrf.mxu0
        %v2321 = vadd.f32 0.0, %v2320
        %v2322 = vpop.f32.mrf.mxu0
        %v2323 = vpop.f32.mrf.mxu0
        %v2324 = vadd.f32 0.0, %v2323
        %v2325 = vpop.f32.mrf.mxu0
        %2326 = vmatprep.mubr.bf16.mxu0 0
        %2327 = vmatmul.mubr.bf16.gmra.mxu0 %v1897
        %v2328 = vpop.f32.mrf.mxu0
        %v2329 = vadd.f32 0.0, %v2328
        %v2330 = vpop.f32.mrf.mxu0
        %v2331 = vpop.f32.mrf.mxu0
        %v2332 = vadd.f32 0.0, %v2331
        %v2333 = vpop.f32.mrf.mxu0
        %2334 = vmatprep.mubr.bf16.mxu0 0
        %2335 = vmatmul.mubr.bf16.gmra.mxu0 %v2065
        %v2336 = vpop.f32.mrf.mxu0
        %v2337 = vadd.f32 0.0, %v2336
        %v2338 = vpop.f32.mrf.mxu0
        %v2339 = vpop.f32.mrf.mxu0
        %v2340 = vadd.f32 0.0, %v2339
        %v2341 = vpop.f32.mrf.mxu0
        %2342 = vmatprep.mubr.bf16.mxu0 0
        %2343 = vmatmul.mubr.bf16.gmra.mxu0 %v2233
        %v2344 = vpop.f32.mrf.mxu0
        %v2345 = vadd.f32 0.0, %v2344
        %v2346 = vpop.f32.mrf.mxu0
        %v2347 = vpop.f32.mrf.mxu0
        %v2348 = vadd.f32 0.0, %v2347
        %v2349 = vpop.f32.mrf.mxu0
        %2350 = vdwg.mxu0
        %v2351 = vadd.f32 %v2183, %v2273
        %v2352 = vadd.f32 %v2184, %v2276
        %v2353 = vadd.f32 %v2185, %v2281
        %v2354 = vadd.f32 %v2186, %v2284
        %v2355 = vadd.f32 %v2187, %v2289
        %v2356 = vadd.f32 %v2188, %v2292
        %v2357 = vadd.f32 %v2189, %v2297
        %v2358 = vadd.f32 %v2190, %v2300
        %v2359 = vadd.f32 %v2191, %v2305
        %v2360 = vadd.f32 %v2192, %v2308
        %v2361 = vadd.f32 %v2193, %v2313
        %v2362 = vadd.f32 %v2194, %v2316
        %v2363 = vadd.f32 %v2195, %v2321
        %v2364 = vadd.f32 %v2196, %v2324
        %v2365 = vadd.f32 %v2197, %v2329
        %v2366 = vadd.f32 %v2198, %v2332
        %v2367 = vadd.f32 %v2199, %v2337
        %v2368 = vadd.f32 %v2200, %v2340
        %v2369 = vadd.f32 %v2201, %v2345
        %v2370 = vadd.f32 %v2202, %v2348
        %s2371 = scalar_lea.vmem %s3, 4
        %v2372 = vld [vmem:[%s2371] sm:$0x3]
        %vm2383 = vcmask 1042432
        %vm2384 = vcmask 1046532
        %vm2385 = vmor %vm2383, %vm2384
        %v2386 = vrot.slane %v1087, 5
        %v2387 = vrot.slane %v2386, 4
        %v2388 = vrot.slane %v1088, 5
        %v2389 = vsel %vm2385, %v2387, %v2388
        %v2390 = vrot.slane %v2388, 4
        %v2391 = vrot.slane %v1089, 5
        %v2392 = vsel %vm2385, %v2390, %v2391
        %v2393 = vrot.slane %v1090, 5
        %v2394 = vrot.slane %v2393, 4
        %v2395 = vrot.slane %v1091, 5
        %v2396 = vsel %vm2385, %v2394, %v2395
        %v2397 = vrot.slane %v2395, 4
        %v2398 = vrot.slane %v1092, 5
        %v2399 = vsel %vm2385, %v2397, %v2398
        %v2400 = vrot.slane %v1093, 5
        %v2401 = vrot.slane %v2400, 4
        %v2402 = vrot.slane %v1094, 5
        %v2403 = vsel %vm2385, %v2401, %v2402
        %v2404 = vrot.slane %v2402, 4
        %v2405 = vrot.slane %v1095, 5
        %v2406 = vsel %vm2385, %v2404, %v2405
        %v2407 = vrot.slane %v1096, 5
        %v2408 = vrot.slane %v2407, 4
        %v2409 = vrot.slane %v1097, 5
        %v2410 = vsel %vm2385, %v2408, %v2409
        %v2411 = vrot.slane %v2409, 4
        %v2412 = vrot.slane %v1098, 5
        %v2413 = vsel %vm2385, %v2411, %v2412
        %v2414 = vrot.slane %v1099, 5
        %v2415 = vrot.slane %v2414, 4
        %v2416 = vrot.slane %v1100, 5
        %v2417 = vsel %vm2385, %v2415, %v2416
        %v2418 = vrot.slane %v2416, 4
        %v2419 = vrot.slane %v1101, 5
        %v2420 = vsel %vm2385, %v2418, %v2419
        %v2421 = vrot.slane %v1102, 5
        %v2422 = vrot.slane %v2421, 4
        %v2423 = vrot.slane %v1103, 5
        %v2424 = vsel %vm2385, %v2422, %v2423
        %v2425 = vrot.slane %v2423, 4
        %v2426 = vrot.slane %v1104, 5
        %v2427 = vsel %vm2385, %v2425, %v2426
        %v2428 = vrot.slane %v1105, 5
        %v2429 = vrot.slane %v2428, 4
        %v2430 = vrot.slane %v1106, 5
        %v2431 = vsel %vm2385, %v2429, %v2430
        %v2432 = vrot.slane %v2430, 4
        %v2433 = vrot.slane %v1107, 5
        %v2434 = vsel %vm2385, %v2432, %v2433
        %v2435 = vrot.slane %v1108, 5
        %v2436 = vrot.slane %v2435, 4
        %v2437 = vrot.slane %v1109, 5
        %v2438 = vsel %vm2385, %v2436, %v2437
        %v2439 = vrot.slane %v2437, 4
        %v2440 = vrot.slane %v1110, 5
        %v2441 = vsel %vm2385, %v2439, %v2440
        %v2442 = vrot.slane %v1111, 5
        %v2443 = vrot.slane %v2442, 4
        %v2444 = vrot.slane %v1112, 5
        %v2445 = vsel %vm2385, %v2443, %v2444
        %v2446 = vrot.slane %v2444, 4
        %v2447 = vrot.slane %v1113, 5
        %v2448 = vsel %vm2385, %v2446, %v2447
        %v2449 = vrot.slane %v1114, 5
        %v2450 = vrot.slane %v2449, 4
        %v2451 = vrot.slane %v1115, 5
        %v2452 = vsel %vm2385, %v2450, %v2451
        %v2453 = vrot.slane %v2451, 4
        %v2454 = vrot.slane %v1116, 5
        %v2455 = vsel %vm2385, %v2453, %v2454
        %v2456 = vunpack.c.l.b16 %v2389
        %v2457 = vunpack.c.l.b16 %v2392
        %v2458 = vunpack.c.l.b16 %v2396
        %v2459 = vunpack.c.l.b16 %v2399
        %v2460 = vunpack.c.l.b16 %v2403
        %v2461 = vunpack.c.l.b16 %v2406
        %v2462 = vunpack.c.l.b16 %v2410
        %v2463 = vunpack.c.l.b16 %v2413
        %v2464 = vunpack.c.l.b16 %v2417
        %v2465 = vunpack.c.l.b16 %v2420
        %v2466 = vunpack.c.l.b16 %v2424
        %v2467 = vunpack.c.l.b16 %v2427
        %v2468 = vunpack.c.l.b16 %v2431
        %v2469 = vunpack.c.l.b16 %v2434
        %v2470 = vunpack.c.l.b16 %v2438
        %v2471 = vunpack.c.l.b16 %v2441
        %v2472 = vunpack.c.l.b16 %v2445
        %v2473 = vunpack.c.l.b16 %v2448
        %v2474 = vunpack.c.l.b16 %v2452
        %v2475 = vunpack.c.l.b16 %v2455
        %v2476 = vpack.c.b16 %v2457, %v2456
        %v2477 = vpack.c.b16 %v2459, %v2458
        %v2478 = vpack.c.b16 %v2461, %v2460
        %v2479 = vpack.c.b16 %v2463, %v2462
        %v2480 = vpack.c.b16 %v2465, %v2464
        %v2481 = vpack.c.b16 %v2467, %v2466
        %v2482 = vpack.c.b16 %v2469, %v2468
        %v2483 = vpack.c.b16 %v2471, %v2470
        %v2484 = vpack.c.b16 %v2473, %v2472
        %v2485 = vpack.c.b16 %v2475, %v2474
        %v2487 = vsel %vm1176, %v2476, 0
        %v2490 = vsel %vm1176, %v2477, 0
        %v2493 = vsel %vm1176, %v2478, 0
        %v2496 = vsel %vm1176, %v2479, 0
        %v2499 = vsel %vm1176, %v2480, 0
        %v2502 = vsel %vm1176, %v2481, 0
        %v2505 = vsel %vm1176, %v2482, 0
        %v2508 = vsel %vm1176, %v2483, 0
        %v2511 = vsel %vm1176, %v2484, 0
        %v2514 = vsel %vm1176, %v2485, 0
        %v2517 = vsel %vm1207, %v2372, 0
        %2519 = vmatprep.subr.bf16.mxu0 0
        %2520 = vmatpush1.bf16.msra.mxu0 0
        %2521 = vmatprep.subr.bf16.mxu0 0
        %2522 = vmatpush1.bf16.msra.mxu0 0
        %2523 = vmatprep.subr.bf16.mxu0 0
        %2524 = vmatpush1.bf16.msra.mxu0 0
        %2525 = vmatprep.subr.bf16.mxu0 0
        %2526 = vmatpush1.bf16.msra.mxu0 0
        %2527 = vmatprep.subr.bf16.mxu0 0
        %2528 = vmatpush1.bf16.msra.mxu0 0
        %2529 = vmatprep.subr.bf16.mxu0 0
        %2530 = vmatpush1.bf16.msra.mxu0 0
        %2531 = vmatprep.subr.bf16.mxu0 0
        %2532 = vmatpush1.bf16.msra.mxu0 0
        %2533 = vmatprep.subr.bf16.mxu0 0
        %2534 = vmatpush1.bf16.msra.mxu0 %v2517
        %2535 = vmatprep.subr.bf16.mxu0 0
        %2536 = vmatpush2.bf16.msra.mxu0 0
        %2537 = vmatprep.subr.bf16.mxu0 0
        %2538 = vmatpush2.bf16.msra.mxu0 0
        %2539 = vmatprep.subr.bf16.mxu0 0
        %2540 = vmatpush2.bf16.msra.mxu0 0
        %2541 = vmatprep.subr.bf16.mxu0 0
        %2542 = vmatpush2.bf16.msra.mxu0 0
        %2543 = vmatprep.subr.bf16.mxu0 0
        %2544 = vmatpush2.bf16.msra.mxu0 0
        %2545 = vmatprep.subr.bf16.mxu0 0
        %2546 = vmatpush2.bf16.msra.mxu0 0
        %2547 = vmatprep.subr.bf16.mxu0 0
        %2548 = vmatpush2.bf16.msra.mxu0 0
        %2549 = vmatprep.subr.bf16.mxu0 0
        %2550 = vmatpush2.bf16.msra.mxu0 0
        %2551 = vmatprep.mubr.bf16.mxu0 0
        %2552 = vmatmul.mubr.bf16.gmra.mxu0 %v2487
        %v2553 = vpop.f32.mrf.mxu0
        %v2554 = vadd.f32 0.0, %v2553
        %v2555 = vpop.f32.mrf.mxu0
        %v2556 = vpop.f32.mrf.mxu0
        %v2557 = vadd.f32 0.0, %v2556
        %v2558 = vpop.f32.mrf.mxu0
        %2559 = vmatprep.mubr.bf16.mxu0 0
        %2560 = vmatmul.mubr.bf16.gmra.mxu0 %v2490
        %v2561 = vpop.f32.mrf.mxu0
        %v2562 = vadd.f32 0.0, %v2561
        %v2563 = vpop.f32.mrf.mxu0
        %v2564 = vpop.f32.mrf.mxu0
        %v2565 = vadd.f32 0.0, %v2564
        %v2566 = vpop.f32.mrf.mxu0
        %2567 = vmatprep.mubr.bf16.mxu0 0
        %2568 = vmatmul.mubr.bf16.gmra.mxu0 %v2493
        %v2569 = vpop.f32.mrf.mxu0
        %v2570 = vadd.f32 0.0, %v2569
        %v2571 = vpop.f32.mrf.mxu0
        %v2572 = vpop.f32.mrf.mxu0
        %v2573 = vadd.f32 0.0, %v2572
        %v2574 = vpop.f32.mrf.mxu0
        %2575 = vmatprep.mubr.bf16.mxu0 0
        %2576 = vmatmul.mubr.bf16.gmra.mxu0 %v2496
        %v2577 = vpop.f32.mrf.mxu0
        %v2578 = vadd.f32 0.0, %v2577
        %v2579 = vpop.f32.mrf.mxu0
        %v2580 = vpop.f32.mrf.mxu0
        %v2581 = vadd.f32 0.0, %v2580
        %v2582 = vpop.f32.mrf.mxu0
        %2583 = vmatprep.mubr.bf16.mxu0 0
        %2584 = vmatmul.mubr.bf16.gmra.mxu0 %v2499
        %v2585 = vpop.f32.mrf.mxu0
        %v2586 = vadd.f32 0.0, %v2585
        %v2587 = vpop.f32.mrf.mxu0
        %v2588 = vpop.f32.mrf.mxu0
        %v2589 = vadd.f32 0.0, %v2588
        %v2590 = vpop.f32.mrf.mxu0
        %2591 = vmatprep.mubr.bf16.mxu0 0
        %2592 = vmatmul.mubr.bf16.gmra.mxu0 %v2502
        %v2593 = vpop.f32.mrf.mxu0
        %v2594 = vadd.f32 0.0, %v2593
        %v2595 = vpop.f32.mrf.mxu0
        %v2596 = vpop.f32.mrf.mxu0
        %v2597 = vadd.f32 0.0, %v2596
        %v2598 = vpop.f32.mrf.mxu0
        %2599 = vmatprep.mubr.bf16.mxu0 0
        %2600 = vmatmul.mubr.bf16.gmra.mxu0 %v2505
        %v2601 = vpop.f32.mrf.mxu0
        %v2602 = vadd.f32 0.0, %v2601
        %v2603 = vpop.f32.mrf.mxu0
        %v2604 = vpop.f32.mrf.mxu0
        %v2605 = vadd.f32 0.0, %v2604
        %v2606 = vpop.f32.mrf.mxu0
        %2607 = vmatprep.mubr.bf16.mxu0 0
        %2608 = vmatmul.mubr.bf16.gmra.mxu0 %v2508
        %v2609 = vpop.f32.mrf.mxu0
        %v2610 = vadd.f32 0.0, %v2609
        %v2611 = vpop.f32.mrf.mxu0
        %v2612 = vpop.f32.mrf.mxu0
        %v2613 = vadd.f32 0.0, %v2612
        %v2614 = vpop.f32.mrf.mxu0
        %2615 = vmatprep.mubr.bf16.mxu0 0
        %2616 = vmatmul.mubr.bf16.gmra.mxu0 %v2511
        %v2617 = vpop.f32.mrf.mxu0
        %v2618 = vadd.f32 0.0, %v2617
        %v2619 = vpop.f32.mrf.mxu0
        %v2620 = vpop.f32.mrf.mxu0
        %v2621 = vadd.f32 0.0, %v2620
        %v2622 = vpop.f32.mrf.mxu0
        %2623 = vmatprep.mubr.bf16.mxu0 0
        %2624 = vmatmul.mubr.bf16.gmra.mxu0 %v2514
        %v2625 = vpop.f32.mrf.mxu0
        %v2626 = vadd.f32 0.0, %v2625
        %v2627 = vpop.f32.mrf.mxu0
        %v2628 = vpop.f32.mrf.mxu0
        %v2629 = vadd.f32 0.0, %v2628
        %v2630 = vpop.f32.mrf.mxu0
        %2631 = vdwg.mxu0
        %v2632 = vadd.f32 %v2351, %v2554
        %v2633 = vadd.f32 %v2352, %v2557
        %v2634 = vadd.f32 %v2353, %v2562
        %v2635 = vadd.f32 %v2354, %v2565
        %v2636 = vadd.f32 %v2355, %v2570
        %v2637 = vadd.f32 %v2356, %v2573
        %v2638 = vadd.f32 %v2357, %v2578
        %v2639 = vadd.f32 %v2358, %v2581
        %v2640 = vadd.f32 %v2359, %v2586
        %v2641 = vadd.f32 %v2360, %v2589
        %v2642 = vadd.f32 %v2361, %v2594
        %v2643 = vadd.f32 %v2362, %v2597
        %v2644 = vadd.f32 %v2363, %v2602
        %v2645 = vadd.f32 %v2364, %v2605
        %v2646 = vadd.f32 %v2365, %v2610
        %v2647 = vadd.f32 %v2366, %v2613
        %v2648 = vadd.f32 %v2367, %v2618
        %v2649 = vadd.f32 %v2368, %v2621
        %v2650 = vadd.f32 %v2369, %v2626
        %v2651 = vadd.f32 %v2370, %v2629
        %s2652 = scalar_lea.vmem %s3, 10
        %v2653 = vld [vmem:[%s2652] sm:$0x3]
        %v2655 = vrot.slane %v1117, 5
        %v2656 = vrot.slane %v2655, 4
        %v2657 = vrot.slane %v1118, 5
        %v2658 = vsel %vm2385, %v2656, %v2657
        %v2659 = vrot.slane %v2657, 4
        %v2660 = vrot.slane %v1119, 5
        %v2661 = vsel %vm2385, %v2659, %v2660
        %v2662 = vunpack.c.l.b16 %v2658
        %v2663 = vunpack.c.l.b16 %v2661
        %v2664 = vpack.c.b16 %v2663, %v2662
        %v2666 = vsel %vm1176, %v2664, 0
        %v2669 = vsel %vm1207, %v2653, 0
        %2671 = vmatprep.subr.bf16.mxu0 0
        %2672 = vmatpush1.bf16.msra.mxu0 0
        %2673 = vmatprep.subr.bf16.mxu0 0
        %2674 = vmatpush1.bf16.msra.mxu0 0
        %2675 = vmatprep.subr.bf16.mxu0 0
        %2676 = vmatpush1.bf16.msra.mxu0 0
        %2677 = vmatprep.subr.bf16.mxu0 0
        %2678 = vmatpush1.bf16.msra.mxu0 0
        %2679 = vmatprep.subr.bf16.mxu0 0
        %2680 = vmatpush1.bf16.msra.mxu0 0
        %2681 = vmatprep.subr.bf16.mxu0 0
        %2682 = vmatpush1.bf16.msra.mxu0 0
        %2683 = vmatprep.subr.bf16.mxu0 0
        %2684 = vmatpush1.bf16.msra.mxu0 0
        %2685 = vmatprep.subr.bf16.mxu0 0
        %2686 = vmatpush1.bf16.msra.mxu0 %v2669
        %2687 = vmatprep.subr.bf16.mxu0 0
        %2688 = vmatpush2.bf16.msra.mxu0 0
        %2689 = vmatprep.subr.bf16.mxu0 0
        %2690 = vmatpush2.bf16.msra.mxu0 0
        %2691 = vmatprep.subr.bf16.mxu0 0
        %2692 = vmatpush2.bf16.msra.mxu0 0
        %2693 = vmatprep.subr.bf16.mxu0 0
        %2694 = vmatpush2.bf16.msra.mxu0 0
        %2695 = vmatprep.subr.bf16.mxu0 0
        %2696 = vmatpush2.bf16.msra.mxu0 0
        %2697 = vmatprep.subr.bf16.mxu0 0
        %2698 = vmatpush2.bf16.msra.mxu0 0
        %2699 = vmatprep.subr.bf16.mxu0 0
        %2700 = vmatpush2.bf16.msra.mxu0 0
        %2701 = vmatprep.subr.bf16.mxu0 0
        %2702 = vmatpush2.bf16.msra.mxu0 0
        %2703 = vmatprep.mubr.bf16.mxu0 0
        %2704 = vmatmul.mubr.bf16.gmra.mxu0 %v2490
        %v2705 = vpop.f32.mrf.mxu0
        %v2706 = vadd.f32 0.0, %v2705
        %v2707 = vpop.f32.mrf.mxu0
        %v2708 = vpop.f32.mrf.mxu0
        %v2709 = vadd.f32 0.0, %v2708
        %v2710 = vpop.f32.mrf.mxu0
        %2711 = vmatprep.mubr.bf16.mxu0 0
        %2712 = vmatmul.mubr.bf16.gmra.mxu0 %v2493
        %v2713 = vpop.f32.mrf.mxu0
        %v2714 = vadd.f32 0.0, %v2713
        %v2715 = vpop.f32.mrf.mxu0
        %v2716 = vpop.f32.mrf.mxu0
        %v2717 = vadd.f32 0.0, %v2716
        %v2718 = vpop.f32.mrf.mxu0
        %2719 = vmatprep.mubr.bf16.mxu0 0
        %2720 = vmatmul.mubr.bf16.gmra.mxu0 %v2496
        %v2721 = vpop.f32.mrf.mxu0
        %v2722 = vadd.f32 0.0, %v2721
        %v2723 = vpop.f32.mrf.mxu0
        %v2724 = vpop.f32.mrf.mxu0
        %v2725 = vadd.f32 0.0, %v2724
        %v2726 = vpop.f32.mrf.mxu0
        %2727 = vmatprep.mubr.bf16.mxu0 0
        %2728 = vmatmul.mubr.bf16.gmra.mxu0 %v2499
        %v2729 = vpop.f32.mrf.mxu0
        %v2730 = vadd.f32 0.0, %v2729
        %v2731 = vpop.f32.mrf.mxu0
        %v2732 = vpop.f32.mrf.mxu0
        %v2733 = vadd.f32 0.0, %v2732
        %v2734 = vpop.f32.mrf.mxu0
        %2735 = vmatprep.mubr.bf16.mxu0 0
        %2736 = vmatmul.mubr.bf16.gmra.mxu0 %v2502
        %v2737 = vpop.f32.mrf.mxu0
        %v2738 = vadd.f32 0.0, %v2737
        %v2739 = vpop.f32.mrf.mxu0
        %v2740 = vpop.f32.mrf.mxu0
        %v2741 = vadd.f32 0.0, %v2740
        %v2742 = vpop.f32.mrf.mxu0
        %2743 = vmatprep.mubr.bf16.mxu0 0
        %2744 = vmatmul.mubr.bf16.gmra.mxu0 %v2505
        %v2745 = vpop.f32.mrf.mxu0
        %v2746 = vadd.f32 0.0, %v2745
        %v2747 = vpop.f32.mrf.mxu0
        %v2748 = vpop.f32.mrf.mxu0
        %v2749 = vadd.f32 0.0, %v2748
        %v2750 = vpop.f32.mrf.mxu0
        %2751 = vmatprep.mubr.bf16.mxu0 0
        %2752 = vmatmul.mubr.bf16.gmra.mxu0 %v2508
        %v2753 = vpop.f32.mrf.mxu0
        %v2754 = vadd.f32 0.0, %v2753
        %v2755 = vpop.f32.mrf.mxu0
        %v2756 = vpop.f32.mrf.mxu0
        %v2757 = vadd.f32 0.0, %v2756
        %v2758 = vpop.f32.mrf.mxu0
        %2759 = vmatprep.mubr.bf16.mxu0 0
        %2760 = vmatmul.mubr.bf16.gmra.mxu0 %v2511
        %v2761 = vpop.f32.mrf.mxu0
        %v2762 = vadd.f32 0.0, %v2761
        %v2763 = vpop.f32.mrf.mxu0
        %v2764 = vpop.f32.mrf.mxu0
        %v2765 = vadd.f32 0.0, %v2764
        %v2766 = vpop.f32.mrf.mxu0
        %2767 = vmatprep.mubr.bf16.mxu0 0
        %2768 = vmatmul.mubr.bf16.gmra.mxu0 %v2514
        %v2769 = vpop.f32.mrf.mxu0
        %v2770 = vadd.f32 0.0, %v2769
        %v2771 = vpop.f32.mrf.mxu0
        %v2772 = vpop.f32.mrf.mxu0
        %v2773 = vadd.f32 0.0, %v2772
        %v2774 = vpop.f32.mrf.mxu0
        %2775 = vmatprep.mubr.bf16.mxu0 0
        %2776 = vmatmul.mubr.bf16.gmra.mxu0 %v2666
        %v2777 = vpop.f32.mrf.mxu0
        %v2778 = vadd.f32 0.0, %v2777
        %v2779 = vpop.f32.mrf.mxu0
        %v2780 = vpop.f32.mrf.mxu0
        %v2781 = vadd.f32 0.0, %v2780
        %v2782 = vpop.f32.mrf.mxu0
        %2783 = vdwg.mxu0
        %v2784 = vadd.f32 %v2632, %v2706
        %v2785 = vadd.f32 %v2633, %v2709
        %v2786 = vadd.f32 %v2634, %v2714
        %v2787 = vadd.f32 %v2635, %v2717
        %v2788 = vadd.f32 %v2636, %v2722
        %v2789 = vadd.f32 %v2637, %v2725
        %v2790 = vadd.f32 %v2638, %v2730
        %v2791 = vadd.f32 %v2639, %v2733
        %v2792 = vadd.f32 %v2640, %v2738
        %v2793 = vadd.f32 %v2641, %v2741
        %v2794 = vadd.f32 %v2642, %v2746
        %v2795 = vadd.f32 %v2643, %v2749
        %v2796 = vadd.f32 %v2644, %v2754
        %v2797 = vadd.f32 %v2645, %v2757
        %v2798 = vadd.f32 %v2646, %v2762
        %v2799 = vadd.f32 %v2647, %v2765
        %v2800 = vadd.f32 %v2648, %v2770
        %v2801 = vadd.f32 %v2649, %v2773
        %v2802 = vadd.f32 %v2650, %v2778
        %v2803 = vadd.f32 %v2651, %v2781
        %s2804 = scalar_lea.vmem %s3, 16
        %v2805 = vld [vmem:[%s2804] sm:$0x3]
        %v2807 = vrot.slane %v1120, 5
        %v2808 = vrot.slane %v2807, 4
        %v2809 = vrot.slane %v1121, 5
        %v2810 = vsel %vm2385, %v2808, %v2809
        %v2811 = vrot.slane %v2809, 4
        %v2812 = vrot.slane %v1122, 5
        %v2813 = vsel %vm2385, %v2811, %v2812
        %v2814 = vunpack.c.l.b16 %v2810
        %v2815 = vunpack.c.l.b16 %v2813
        %v2816 = vpack.c.b16 %v2815, %v2814
        %v2818 = vsel %vm1176, %v2816, 0
        %v2821 = vsel %vm1207, %v2805, 0
        %2823 = vmatprep.subr.bf16.mxu0 0
        %2824 = vmatpush1.bf16.msra.mxu0 0
        %2825 = vmatprep.subr.bf16.mxu0 0
        %2826 = vmatpush1.bf16.msra.mxu0 0
        %2827 = vmatprep.subr.bf16.mxu0 0
        %2828 = vmatpush1.bf16.msra.mxu0 0
        %2829 = vmatprep.subr.bf16.mxu0 0
        %2830 = vmatpush1.bf16.msra.mxu0 0
        %2831 = vmatprep.subr.bf16.mxu0 0
        %2832 = vmatpush1.bf16.msra.mxu0 0
        %2833 = vmatprep.subr.bf16.mxu0 0
        %2834 = vmatpush1.bf16.msra.mxu0 0
        %2835 = vmatprep.subr.bf16.mxu0 0
        %2836 = vmatpush1.bf16.msra.mxu0 0
        %2837 = vmatprep.subr.bf16.mxu0 0
        %2838 = vmatpush1.bf16.msra.mxu0 %v2821
        %2839 = vmatprep.subr.bf16.mxu0 0
        %2840 = vmatpush2.bf16.msra.mxu0 0
        %2841 = vmatprep.subr.bf16.mxu0 0
        %2842 = vmatpush2.bf16.msra.mxu0 0
        %2843 = vmatprep.subr.bf16.mxu0 0
        %2844 = vmatpush2.bf16.msra.mxu0 0
        %2845 = vmatprep.subr.bf16.mxu0 0
        %2846 = vmatpush2.bf16.msra.mxu0 0
        %2847 = vmatprep.subr.bf16.mxu0 0
        %2848 = vmatpush2.bf16.msra.mxu0 0
        %2849 = vmatprep.subr.bf16.mxu0 0
        %2850 = vmatpush2.bf16.msra.mxu0 0
        %2851 = vmatprep.subr.bf16.mxu0 0
        %2852 = vmatpush2.bf16.msra.mxu0 0
        %2853 = vmatprep.subr.bf16.mxu0 0
        %2854 = vmatpush2.bf16.msra.mxu0 0
        %2855 = vmatprep.mubr.bf16.mxu0 0
        %2856 = vmatmul.mubr.bf16.gmra.mxu0 %v2493
        %v2857 = vpop.f32.mrf.mxu0
        %v2858 = vadd.f32 0.0, %v2857
        %v2859 = vpop.f32.mrf.mxu0
        %v2860 = vpop.f32.mrf.mxu0
        %v2861 = vadd.f32 0.0, %v2860
        %v2862 = vpop.f32.mrf.mxu0
        %2863 = vmatprep.mubr.bf16.mxu0 0
        %2864 = vmatmul.mubr.bf16.gmra.mxu0 %v2496
        %v2865 = vpop.f32.mrf.mxu0
        %v2866 = vadd.f32 0.0, %v2865
        %v2867 = vpop.f32.mrf.mxu0
        %v2868 = vpop.f32.mrf.mxu0
        %v2869 = vadd.f32 0.0, %v2868
        %v2870 = vpop.f32.mrf.mxu0
        %2871 = vmatprep.mubr.bf16.mxu0 0
        %2872 = vmatmul.mubr.bf16.gmra.mxu0 %v2499
        %v2873 = vpop.f32.mrf.mxu0
        %v2874 = vadd.f32 0.0, %v2873
        %v2875 = vpop.f32.mrf.mxu0
        %v2876 = vpop.f32.mrf.mxu0
        %v2877 = vadd.f32 0.0, %v2876
        %v2878 = vpop.f32.mrf.mxu0
        %2879 = vmatprep.mubr.bf16.mxu0 0
        %2880 = vmatmul.mubr.bf16.gmra.mxu0 %v2502
        %v2881 = vpop.f32.mrf.mxu0
        %v2882 = vadd.f32 0.0, %v2881
        %v2883 = vpop.f32.mrf.mxu0
        %v2884 = vpop.f32.mrf.mxu0
        %v2885 = vadd.f32 0.0, %v2884
        %v2886 = vpop.f32.mrf.mxu0
        %2887 = vmatprep.mubr.bf16.mxu0 0
        %2888 = vmatmul.mubr.bf16.gmra.mxu0 %v2505
        %v2889 = vpop.f32.mrf.mxu0
        %v2890 = vadd.f32 0.0, %v2889
        %v2891 = vpop.f32.mrf.mxu0
        %v2892 = vpop.f32.mrf.mxu0
        %v2893 = vadd.f32 0.0, %v2892
        %v2894 = vpop.f32.mrf.mxu0
        %2895 = vmatprep.mubr.bf16.mxu0 0
        %2896 = vmatmul.mubr.bf16.gmra.mxu0 %v2508
        %v2897 = vpop.f32.mrf.mxu0
        %v2898 = vadd.f32 0.0, %v2897
        %v2899 = vpop.f32.mrf.mxu0
        %v2900 = vpop.f32.mrf.mxu0
        %v2901 = vadd.f32 0.0, %v2900
        %v2902 = vpop.f32.mrf.mxu0
        %2903 = vmatprep.mubr.bf16.mxu0 0
        %2904 = vmatmul.mubr.bf16.gmra.mxu0 %v2511
        %v2905 = vpop.f32.mrf.mxu0
        %v2906 = vadd.f32 0.0, %v2905
        %v2907 = vpop.f32.mrf.mxu0
        %v2908 = vpop.f32.mrf.mxu0
        %v2909 = vadd.f32 0.0, %v2908
        %v2910 = vpop.f32.mrf.mxu0
        %2911 = vmatprep.mubr.bf16.mxu0 0
        %2912 = vmatmul.mubr.bf16.gmra.mxu0 %v2514
        %v2913 = vpop.f32.mrf.mxu0
        %v2914 = vadd.f32 0.0, %v2913
        %v2915 = vpop.f32.mrf.mxu0
        %v2916 = vpop.f32.mrf.mxu0
        %v2917 = vadd.f32 0.0, %v2916
        %v2918 = vpop.f32.mrf.mxu0
        %2919 = vmatprep.mubr.bf16.mxu0 0
        %2920 = vmatmul.mubr.bf16.gmra.mxu0 %v2666
        %v2921 = vpop.f32.mrf.mxu0
        %v2922 = vadd.f32 0.0, %v2921
        %v2923 = vpop.f32.mrf.mxu0
        %v2924 = vpop.f32.mrf.mxu0
        %v2925 = vadd.f32 0.0, %v2924
        %v2926 = vpop.f32.mrf.mxu0
        %2927 = vmatprep.mubr.bf16.mxu0 0
        %2928 = vmatmul.mubr.bf16.gmra.mxu0 %v2818
        %v2929 = vpop.f32.mrf.mxu0
        %v2930 = vadd.f32 0.0, %v2929
        %v2931 = vpop.f32.mrf.mxu0
        %v2932 = vpop.f32.mrf.mxu0
        %v2933 = vadd.f32 0.0, %v2932
        %v2934 = vpop.f32.mrf.mxu0
        %2935 = vdwg.mxu0
        %v2936 = vadd.f32 %v2784, %v2858
        %v2937 = vadd.f32 %v2785, %v2861
        %v2938 = vadd.f32 %v2786, %v2866
        %v2939 = vadd.f32 %v2787, %v2869
        %v2940 = vadd.f32 %v2788, %v2874
        %v2941 = vadd.f32 %v2789, %v2877
        %v2942 = vadd.f32 %v2790, %v2882
        %v2943 = vadd.f32 %v2791, %v2885
        %v2944 = vadd.f32 %v2792, %v2890
        %v2945 = vadd.f32 %v2793, %v2893
        %v2946 = vadd.f32 %v2794, %v2898
        %v2947 = vadd.f32 %v2795, %v2901
        %v2948 = vadd.f32 %v2796, %v2906
        %v2949 = vadd.f32 %v2797, %v2909
        %v2950 = vadd.f32 %v2798, %v2914
        %v2951 = vadd.f32 %v2799, %v2917
        %v2952 = vadd.f32 %v2800, %v2922
        %v2953 = vadd.f32 %v2801, %v2925
        %v2954 = vadd.f32 %v2802, %v2930
        %v2955 = vadd.f32 %v2803, %v2933
        %v2956 = vld [vmem:[%s4] sm:$0x1]
        %v2958 = vlaneseq
        %v2959 = vshrl.u32 %v2958, 7
        %v2960 = vsub.s32 0, %v2959
        %v2961 = vrot.slane %v2956, %v2960
        %v2963 = vadd.f32 %v2936, %v2961
        %v2964 = vadd.f32 %v2937, %v2961
        %v2965 = vadd.f32 %v2938, %v2961
        %v2966 = vadd.f32 %v2939, %v2961
        %v2967 = vadd.f32 %v2940, %v2961
        %v2968 = vadd.f32 %v2941, %v2961
        %v2969 = vadd.f32 %v2942, %v2961
        %v2970 = vadd.f32 %v2943, %v2961
        %v2971 = vadd.f32 %v2944, %v2961
        %v2972 = vadd.f32 %v2945, %v2961
        %v2973 = vadd.f32 %v2946, %v2961
        %v2974 = vadd.f32 %v2947, %v2961
        %v2975 = vadd.f32 %v2948, %v2961
        %v2976 = vadd.f32 %v2949, %v2961
        %v2977 = vadd.f32 %v2950, %v2961
        %v2978 = vadd.f32 %v2951, %v2961
        %v2979 = vadd.f32 %v2952, %v2961
        %v2980 = vadd.f32 %v2953, %v2961
        %v2981 = vadd.f32 %v2954, %v2961
        %v2982 = vadd.f32 %v2955, %v2961
        %v2983 = vmax.f32 %v2963, 0.0
        %v2984 = vmax.f32 %v2964, 0.0
        %v2985 = vmax.f32 %v2965, 0.0
        %v2986 = vmax.f32 %v2966, 0.0
        %v2987 = vmax.f32 %v2967, 0.0
        %v2988 = vmax.f32 %v2968, 0.0
        %v2989 = vmax.f32 %v2969, 0.0
        %v2990 = vmax.f32 %v2970, 0.0
        %v2991 = vmax.f32 %v2971, 0.0
        %v2992 = vmax.f32 %v2972, 0.0
        %v2993 = vmax.f32 %v2973, 0.0
        %v2994 = vmax.f32 %v2974, 0.0
        %v2995 = vmax.f32 %v2975, 0.0
        %v2996 = vmax.f32 %v2976, 0.0
        %v2997 = vmax.f32 %v2977, 0.0
        %v2998 = vmax.f32 %v2978, 0.0
        %v2999 = vmax.f32 %v2979, 0.0
        %v3000 = vmax.f32 %v2980, 0.0
        %v3001 = vmax.f32 %v2981, 0.0
        %v3002 = vmax.f32 %v2982, 0.0
        %vm3003 = vcmask 253952
        %vm3004 = vmand %vm3003, %vm562
        %v3005 = vld [vmem:[#allocation3] sm:$0x1]
        %v3006 = vsel %vm3004, 0, %v3005
        %3007 = vst [vmem:[#allocation3] sm:$0x1] %v3006
        %v3008 = vld [vmem:[#allocation3 + $0xc] sm:$0x1]
        %v3009 = vsel %vm3004, 0, %v3008
        %3010 = vst [vmem:[#allocation3 + $0xc] sm:$0x1] %v3009
        %v3011 = vld [vmem:[#allocation3 + $0x18] sm:$0x1]
        %v3012 = vsel %vm3004, 0, %v3011
        %3013 = vst [vmem:[#allocation3 + $0x18] sm:$0x1] %v3012
        %v3014 = vld [vmem:[#allocation3 + $0x24] sm:$0x1]
        %v3015 = vsel %vm3004, 0, %v3014
        %3016 = vst [vmem:[#allocation3 + $0x24] sm:$0x1] %v3015
        %v3017 = vld [vmem:[#allocation3 + $0x30] sm:$0x1]
        %v3018 = vsel %vm3004, 0, %v3017
        %3019 = vst [vmem:[#allocation3 + $0x30] sm:$0x1] %v3018
        %v3020 = vld [vmem:[#allocation3 + $0x3c] sm:$0x1]
        %v3021 = vsel %vm3004, 0, %v3020
        %3022 = vst [vmem:[#allocation3 + $0x3c] sm:$0x1] %v3021
        %v3023 = vld [vmem:[#allocation3 + $0x48] sm:$0x1]
        %v3024 = vsel %vm3004, 0, %v3023
        %3025 = vst [vmem:[#allocation3 + $0x48] sm:$0x1] %v3024
        %v3026 = vld [vmem:[#allocation3 + $0x54] sm:$0x1]
        %v3027 = vsel %vm3004, 0, %v3026
        %3028 = vst [vmem:[#allocation3 + $0x54] sm:$0x1] %v3027
        %v3029 = vld [vmem:[#allocation3 + $0x60] sm:$0x1]
        %v3030 = vsel %vm3004, 0, %v3029
        %3031 = vst [vmem:[#allocation3 + $0x60] sm:$0x1] %v3030
        %v3032 = vld [vmem:[#allocation3 + $0x6c] sm:$0x1]
        %v3033 = vsel %vm3004, 0, %v3032
        %3034 = vst [vmem:[#allocation3 + $0x6c] sm:$0x1] %v3033
        %vm3035 = vmand %vm3003, %vm600
        %v3036 = vld [vmem:[#allocation3 + $0x8] sm:$0x1]
        %v3037 = vsel %vm3035, 0, %v3036
        %3038 = vst [vmem:[#allocation3 + $0x8] sm:$0x1] %v3037
        %v3039 = vld [vmem:[#allocation3 + $0x14] sm:$0x1]
        %v3040 = vsel %vm3035, 0, %v3039
        %3041 = vst [vmem:[#allocation3 + $0x14] sm:$0x1] %v3040
        %v3042 = vld [vmem:[#allocation3 + $0x20] sm:$0x1]
        %v3043 = vsel %vm3035, 0, %v3042
        %3044 = vst [vmem:[#allocation3 + $0x20] sm:$0x1] %v3043
        %v3045 = vld [vmem:[#allocation3 + $0x2c] sm:$0x1]
        %v3046 = vsel %vm3035, 0, %v3045
        %3047 = vst [vmem:[#allocation3 + $0x2c] sm:$0x1] %v3046
        %v3048 = vld [vmem:[#allocation3 + $0x38] sm:$0x1]
        %v3049 = vsel %vm3035, 0, %v3048
        %3050 = vst [vmem:[#allocation3 + $0x38] sm:$0x1] %v3049
        %v3051 = vld [vmem:[#allocation3 + $0x44] sm:$0x1]
        %v3052 = vsel %vm3035, 0, %v3051
        %3053 = vst [vmem:[#allocation3 + $0x44] sm:$0x1] %v3052
        %v3054 = vld [vmem:[#allocation3 + $0x50] sm:$0x1]
        %v3055 = vsel %vm3035, 0, %v3054
        %3056 = vst [vmem:[#allocation3 + $0x50] sm:$0x1] %v3055
        %v3057 = vld [vmem:[#allocation3 + $0x5c] sm:$0x1]
        %v3058 = vsel %vm3035, 0, %v3057
        %3059 = vst [vmem:[#allocation3 + $0x5c] sm:$0x1] %v3058
        %v3060 = vld [vmem:[#allocation3 + $0x68] sm:$0x1]
        %v3061 = vsel %vm3035, 0, %v3060
        %3062 = vst [vmem:[#allocation3 + $0x68] sm:$0x1] %v3061
        %v3063 = vld [vmem:[#allocation3 + $0x74] sm:$0x1]
        %v3064 = vsel %vm3035, 0, %v3063
        %3065 = vst [vmem:[#allocation3 + $0x74] sm:$0x1] %v3064
        %v3066 = vpack.c.bf16 %v2984, %v2983
        %v3067 = vpack.c.bf16 %v2986, %v2985
        %v3068 = vpack.c.bf16 %v2988, %v2987
        %v3069 = vpack.c.bf16 %v2990, %v2989
        %v3070 = vpack.c.bf16 %v2992, %v2991
        %v3071 = vpack.c.bf16 %v2994, %v2993
        %v3072 = vpack.c.bf16 %v2996, %v2995
        %v3073 = vpack.c.bf16 %v2998, %v2997
        %v3074 = vpack.c.bf16 %v3000, %v2999
        %v3075 = vpack.c.bf16 %v3002, %v3001
        %v3086 = vunpack.c.l.b16 %v3066
        %v3087 = vunpack.c.h.b16 %v3066
        %v3088 = vunpack.c.l.b16 %v3067
        %v3089 = vunpack.c.h.b16 %v3067
        %v3090 = vunpack.c.l.b16 %v3068
        %v3091 = vunpack.c.h.b16 %v3068
        %v3092 = vunpack.c.l.b16 %v3069
        %v3093 = vunpack.c.h.b16 %v3069
        %v3094 = vunpack.c.l.b16 %v3070
        %v3095 = vunpack.c.h.b16 %v3070
        %v3096 = vunpack.c.l.b16 %v3071
        %v3097 = vunpack.c.h.b16 %v3071
        %v3098 = vunpack.c.l.b16 %v3072
        %v3099 = vunpack.c.h.b16 %v3072
        %v3100 = vunpack.c.l.b16 %v3073
        %v3101 = vunpack.c.h.b16 %v3073
        %v3102 = vunpack.c.l.b16 %v3074
        %v3103 = vunpack.c.h.b16 %v3074
        %v3104 = vunpack.c.l.b16 %v3075
        %v3105 = vunpack.c.h.b16 %v3075
        %v3106 = vpack.c.b16 %v3086, %v3086
        %v3107 = vpack.c.b16 %v3087, %v3087
        %v3108 = vpack.c.b16 %v3088, %v3088
        %v3109 = vpack.c.b16 %v3089, %v3089
        %v3110 = vpack.c.b16 %v3090, %v3090
        %v3111 = vpack.c.b16 %v3091, %v3091
        %v3112 = vpack.c.b16 %v3092, %v3092
        %v3113 = vpack.c.b16 %v3093, %v3093
        %v3114 = vpack.c.b16 %v3094, %v3094
        %v3115 = vpack.c.b16 %v3095, %v3095
        %v3116 = vpack.c.b16 %v3096, %v3096
        %v3117 = vpack.c.b16 %v3097, %v3097
        %v3118 = vpack.c.b16 %v3098, %v3098
        %v3119 = vpack.c.b16 %v3099, %v3099
        %v3120 = vpack.c.b16 %v3100, %v3100
        %v3121 = vpack.c.b16 %v3101, %v3101
        %v3122 = vpack.c.b16 %v3102, %v3102
        %v3123 = vpack.c.b16 %v3103, %v3103
        %v3124 = vpack.c.b16 %v3104, %v3104
        %v3125 = vpack.c.b16 %v3105, %v3105
        %v3127 = vshrl.u32 %v3106, 16
        %v3129 = vrot.slane %v3127, 7
        %v3130 = vshll.u32 %v3106, 16
        %v3132 = vor.u32 %v3129, %v3130
        %v3133 = vrot.slane %v3129, 4
        %v3135 = vshrl.u32 %v3107, 16
        %v3137 = vrot.slane %v3135, 7
        %v3138 = vshll.u32 %v3107, 16
        %v3140 = vor.u32 %v3137, %v3138
        %v3141 = vsel %vm655, %v3133, %v3140
        %v3142 = vrot.slane %v3137, 4
        %v3144 = vshrl.u32 %v3108, 16
        %v3146 = vrot.slane %v3144, 7
        %v3147 = vshll.u32 %v3108, 16
        %v3149 = vor.u32 %v3146, %v3147
        %v3150 = vrot.slane %v3146, 4
        %v3152 = vshrl.u32 %v3109, 16
        %v3154 = vrot.slane %v3152, 7
        %v3155 = vshll.u32 %v3109, 16
        %v3157 = vor.u32 %v3154, %v3155
        %v3158 = vsel %vm655, %v3150, %v3157
        %v3159 = vrot.slane %v3154, 4
        %v3161 = vshrl.u32 %v3110, 16
        %v3163 = vrot.slane %v3161, 7
        %v3164 = vshll.u32 %v3110, 16
        %v3166 = vor.u32 %v3163, %v3164
        %v3167 = vrot.slane %v3163, 4
        %v3169 = vshrl.u32 %v3111, 16
        %v3171 = vrot.slane %v3169, 7
        %v3172 = vshll.u32 %v3111, 16
        %v3174 = vor.u32 %v3171, %v3172
        %v3175 = vsel %vm655, %v3167, %v3174
        %v3176 = vrot.slane %v3171, 4
        %v3178 = vshrl.u32 %v3112, 16
        %v3180 = vrot.slane %v3178, 7
        %v3181 = vshll.u32 %v3112, 16
        %v3183 = vor.u32 %v3180, %v3181
        %v3184 = vrot.slane %v3180, 4
        %v3186 = vshrl.u32 %v3113, 16
        %v3188 = vrot.slane %v3186, 7
        %v3189 = vshll.u32 %v3113, 16
        %v3191 = vor.u32 %v3188, %v3189
        %v3192 = vsel %vm655, %v3184, %v3191
        %v3193 = vrot.slane %v3188, 4
        %v3195 = vshrl.u32 %v3114, 16
        %v3197 = vrot.slane %v3195, 7
        %v3198 = vshll.u32 %v3114, 16
        %v3200 = vor.u32 %v3197, %v3198
        %v3201 = vrot.slane %v3197, 4
        %v3203 = vshrl.u32 %v3115, 16
        %v3205 = vrot.slane %v3203, 7
        %v3206 = vshll.u32 %v3115, 16
        %v3208 = vor.u32 %v3205, %v3206
        %v3209 = vsel %vm655, %v3201, %v3208
        %v3210 = vrot.slane %v3205, 4
        %v3212 = vshrl.u32 %v3116, 16
        %v3214 = vrot.slane %v3212, 7
        %v3215 = vshll.u32 %v3116, 16
        %v3217 = vor.u32 %v3214, %v3215
        %v3218 = vrot.slane %v3214, 4
        %v3220 = vshrl.u32 %v3117, 16
        %v3222 = vrot.slane %v3220, 7
        %v3223 = vshll.u32 %v3117, 16
        %v3225 = vor.u32 %v3222, %v3223
        %v3226 = vsel %vm655, %v3218, %v3225
        %v3227 = vrot.slane %v3222, 4
        %v3229 = vshrl.u32 %v3118, 16
        %v3231 = vrot.slane %v3229, 7
        %v3232 = vshll.u32 %v3118, 16
        %v3234 = vor.u32 %v3231, %v3232
        %v3235 = vrot.slane %v3231, 4
        %v3237 = vshrl.u32 %v3119, 16
        %v3239 = vrot.slane %v3237, 7
        %v3240 = vshll.u32 %v3119, 16
        %v3242 = vor.u32 %v3239, %v3240
        %v3243 = vsel %vm655, %v3235, %v3242
        %v3244 = vrot.slane %v3239, 4
        %v3246 = vshrl.u32 %v3120, 16
        %v3248 = vrot.slane %v3246, 7
        %v3249 = vshll.u32 %v3120, 16
        %v3251 = vor.u32 %v3248, %v3249
        %v3252 = vrot.slane %v3248, 4
        %v3254 = vshrl.u32 %v3121, 16
        %v3256 = vrot.slane %v3254, 7
        %v3257 = vshll.u32 %v3121, 16
        %v3259 = vor.u32 %v3256, %v3257
        %v3260 = vsel %vm655, %v3252, %v3259
        %v3261 = vrot.slane %v3256, 4
        %v3263 = vshrl.u32 %v3122, 16
        %v3265 = vrot.slane %v3263, 7
        %v3266 = vshll.u32 %v3122, 16
        %v3268 = vor.u32 %v3265, %v3266
        %v3269 = vrot.slane %v3265, 4
        %v3271 = vshrl.u32 %v3123, 16
        %v3273 = vrot.slane %v3271, 7
        %v3274 = vshll.u32 %v3123, 16
        %v3276 = vor.u32 %v3273, %v3274
        %v3277 = vsel %vm655, %v3269, %v3276
        %v3278 = vrot.slane %v3273, 4
        %v3280 = vshrl.u32 %v3124, 16
        %v3282 = vrot.slane %v3280, 7
        %v3283 = vshll.u32 %v3124, 16
        %v3285 = vor.u32 %v3282, %v3283
        %v3286 = vrot.slane %v3282, 4
        %v3288 = vshrl.u32 %v3125, 16
        %v3290 = vrot.slane %v3288, 7
        %v3291 = vshll.u32 %v3125, 16
        %v3293 = vor.u32 %v3290, %v3291
        %v3294 = vsel %vm655, %v3286, %v3293
        %v3295 = vrot.slane %v3290, 4
        %vm3326 = vcmask 257024
        %vm3327 = vmand %vm3326, %vm600
        %v3328 = vld [vmem:[#allocation3] sm:$0xf]
        %v3329 = vsel %vm3327, %v3132, %v3328
        %3330 = vst [vmem:[#allocation3] sm:$0xf] %v3329
        %vm3331 = vcmask 257024
        %3332 = vst.msk [vmem:[#allocation3 + $0x4] sm:$0xf] %vm3331, %v3141
        %v3333 = vld [vmem:[#allocation3 + $0x8] sm:$0x1]
        %v3334 = vsel %vm3004, %v3142, %v3333
        %3335 = vst [vmem:[#allocation3 + $0x8] sm:$0x1] %v3334
        %v3336 = vld [vmem:[#allocation3 + $0xc] sm:$0xf]
        %v3337 = vsel %vm3327, %v3149, %v3336
        %3338 = vst [vmem:[#allocation3 + $0xc] sm:$0xf] %v3337
        %3339 = vst.msk [vmem:[#allocation3 + $0x10] sm:$0xf] %vm3331, %v3158
        %v3340 = vld [vmem:[#allocation3 + $0x14] sm:$0x1]
        %v3341 = vsel %vm3004, %v3159, %v3340
        %3342 = vst [vmem:[#allocation3 + $0x14] sm:$0x1] %v3341
        %v3343 = vld [vmem:[#allocation3 + $0x18] sm:$0xf]
        %v3344 = vsel %vm3327, %v3166, %v3343
        %3345 = vst [vmem:[#allocation3 + $0x18] sm:$0xf] %v3344
        %3346 = vst.msk [vmem:[#allocation3 + $0x1c] sm:$0xf] %vm3331, %v3175
        %v3347 = vld [vmem:[#allocation3 + $0x20] sm:$0x1]
        %v3348 = vsel %vm3004, %v3176, %v3347
        %3349 = vst [vmem:[#allocation3 + $0x20] sm:$0x1] %v3348
        %v3350 = vld [vmem:[#allocation3 + $0x24] sm:$0xf]
        %v3351 = vsel %vm3327, %v3183, %v3350
        %3352 = vst [vmem:[#allocation3 + $0x24] sm:$0xf] %v3351
        %3353 = vst.msk [vmem:[#allocation3 + $0x28] sm:$0xf] %vm3331, %v3192
        %v3354 = vld [vmem:[#allocation3 + $0x2c] sm:$0x1]
        %v3355 = vsel %vm3004, %v3193, %v3354
        %3356 = vst [vmem:[#allocation3 + $0x2c] sm:$0x1] %v3355
        %v3357 = vld [vmem:[#allocation3 + $0x30] sm:$0xf]
        %v3358 = vsel %vm3327, %v3200, %v3357
        %3359 = vst [vmem:[#allocation3 + $0x30] sm:$0xf] %v3358
        %3360 = vst.msk [vmem:[#allocation3 + $0x34] sm:$0xf] %vm3331, %v3209
        %v3361 = vld [vmem:[#allocation3 + $0x38] sm:$0x1]
        %v3362 = vsel %vm3004, %v3210, %v3361
        %3363 = vst [vmem:[#allocation3 + $0x38] sm:$0x1] %v3362
        %v3364 = vld [vmem:[#allocation3 + $0x3c] sm:$0xf]
        %v3365 = vsel %vm3327, %v3217, %v3364
        %3366 = vst [vmem:[#allocation3 + $0x3c] sm:$0xf] %v3365
        %3367 = vst.msk [vmem:[#allocation3 + $0x40] sm:$0xf] %vm3331, %v3226
        %v3368 = vld [vmem:[#allocation3 + $0x44] sm:$0x1]
        %v3369 = vsel %vm3004, %v3227, %v3368
        %3370 = vst [vmem:[#allocation3 + $0x44] sm:$0x1] %v3369
        %v3371 = vld [vmem:[#allocation3 + $0x48] sm:$0xf]
        %v3372 = vsel %vm3327, %v3234, %v3371
        %3373 = vst [vmem:[#allocation3 + $0x48] sm:$0xf] %v3372
        %3374 = vst.msk [vmem:[#allocation3 + $0x4c] sm:$0xf] %vm3331, %v3243
        %v3375 = vld [vmem:[#allocation3 + $0x50] sm:$0x1]
        %v3376 = vsel %vm3004, %v3244, %v3375
        %3377 = vst [vmem:[#allocation3 + $0x50] sm:$0x1] %v3376
        %v3378 = vld [vmem:[#allocation3 + $0x54] sm:$0xf]
        %v3379 = vsel %vm3327, %v3251, %v3378
        %3380 = vst [vmem:[#allocation3 + $0x54] sm:$0xf] %v3379
        %3381 = vst.msk [vmem:[#allocation3 + $0x58] sm:$0xf] %vm3331, %v3260
        %v3382 = vld [vmem:[#allocation3 + $0x5c] sm:$0x1]
        %v3383 = vsel %vm3004, %v3261, %v3382
        %3384 = vst [vmem:[#allocation3 + $0x5c] sm:$0x1] %v3383
        %v3385 = vld [vmem:[#allocation3 + $0x60] sm:$0xf]
        %v3386 = vsel %vm3327, %v3268, %v3385
        %3387 = vst [vmem:[#allocation3 + $0x60] sm:$0xf] %v3386
        %3388 = vst.msk [vmem:[#allocation3 + $0x64] sm:$0xf] %vm3331, %v3277
        %v3389 = vld [vmem:[#allocation3 + $0x68] sm:$0x1]
        %v3390 = vsel %vm3004, %v3278, %v3389
        %3391 = vst [vmem:[#allocation3 + $0x68] sm:$0x1] %v3390
        %v3392 = vld [vmem:[#allocation3 + $0x6c] sm:$0xf]
        %v3393 = vsel %vm3327, %v3285, %v3392
        %3394 = vst [vmem:[#allocation3 + $0x6c] sm:$0xf] %v3393
        %3395 = vst.msk [vmem:[#allocation3 + $0x70] sm:$0xf] %vm3331, %v3294
        %v3396 = vld [vmem:[#allocation3 + $0x74] sm:$0x1]
        %v3397 = vsel %vm3004, %v3295, %v3396
        %3398 = vst [vmem:[#allocation3 + $0x74] sm:$0x1] %v3397
        // Predicated region
        $region77: #{tpu_custom_call.1} parent=59 // pred_check
          %p3399 = pneg %p1065
        $region78: #{tpu_custom_call.1} parent=59 // pred_check_branch
          %3401 = sbr.rel (%p3399) target = $region80
        $region79: #{tpu_custom_call.1} parent=59 // pred_region
          %3402 = vst.msk [vmem:[#allocation3] sm:$0xf] %vm3331, 0
          %3403 = vst.msk [vmem:[#allocation3 + $0x4] sm:$0xf] %vm3331, 0
          %vm3404 = vcmask 253952
          %3405 = vst.msk [vmem:[#allocation3 + $0x8] sm:$0x1] %vm3404, 0
        $region80: #{tpu_custom_call.1} parent=59 // pred_fallthru
          _
        // Predicated region
        $region81: #{tpu_custom_call.1} parent=59 // pred_check
          %p3406 = pneg %p1076
        $region82: #{tpu_custom_call.1} parent=59 // pred_check_branch
          %3408 = sbr.rel (%p3406) target = $region84
        $region83: #{tpu_custom_call.1} parent=59 // pred_region
          %s3409 = scalar_lea.vmem [#allocation3], 108
          %3410 = vst.msk [vmem:[%s3409] sm:$0xf] %vm3331, 0
          %3411 = vst.msk [vmem:[%s3409 + $0x4] sm:$0xf] %vm3331, 0
          %vm3412 = vcmask 253952
          %3413 = vst.msk [vmem:[%s3409 + $0x8] sm:$0x1] %vm3412, 0
        $region84: #{tpu_custom_call.1} parent=59 // pred_fallthru
          _
        %v3414 = vld [vmem:[#allocation3] sm:$0xf]
        %v3415 = vld [vmem:[#allocation3 + $0x4] sm:$0xf]
        %v3416 = vld [vmem:[#allocation3 + $0x8] sm:$0x1]
        %v3417 = vld [vmem:[#allocation3 + $0xc] sm:$0xf]
        %v3418 = vld [vmem:[#allocation3 + $0x10] sm:$0xf]
        %v3419 = vld [vmem:[#allocation3 + $0x14] sm:$0x1]
        %v3420 = vld [vmem:[#allocation3 + $0x18] sm:$0xf]
        %v3421 = vld [vmem:[#allocation3 + $0x1c] sm:$0xf]
        %v3422 = vld [vmem:[#allocation3 + $0x20] sm:$0x1]
        %v3423 = vld [vmem:[#allocation3 + $0x24] sm:$0xf]
        %v3424 = vld [vmem:[#allocation3 + $0x28] sm:$0xf]
        %v3425 = vld [vmem:[#allocation3 + $0x2c] sm:$0x1]
        %v3426 = vld [vmem:[#allocation3 + $0x30] sm:$0xf]
        %v3427 = vld [vmem:[#allocation3 + $0x34] sm:$0xf]
        %v3428 = vld [vmem:[#allocation3 + $0x38] sm:$0x1]
        %v3429 = vld [vmem:[#allocation3 + $0x3c] sm:$0xf]
        %v3430 = vld [vmem:[#allocation3 + $0x40] sm:$0xf]
        %v3431 = vld [vmem:[#allocation3 + $0x44] sm:$0x1]
        %v3432 = vld [vmem:[#allocation3 + $0x48] sm:$0xf]
        %v3433 = vld [vmem:[#allocation3 + $0x4c] sm:$0xf]
        %v3434 = vld [vmem:[#allocation3 + $0x50] sm:$0x1]
        %v3435 = vld [vmem:[#allocation3 + $0x54] sm:$0xf]
        %v3436 = vld [vmem:[#allocation3 + $0x58] sm:$0xf]
        %v3437 = vld [vmem:[#allocation3 + $0x5c] sm:$0x1]
        %v3438 = vld [vmem:[#allocation3 + $0x60] sm:$0xf]
        %v3439 = vld [vmem:[#allocation3 + $0x64] sm:$0xf]
        %v3440 = vld [vmem:[#allocation3 + $0x68] sm:$0x1]
        %v3441 = vld [vmem:[#allocation3 + $0x6c] sm:$0xf]
        %v3442 = vld [vmem:[#allocation3 + $0x70] sm:$0xf]
        %v3443 = vld [vmem:[#allocation3 + $0x74] sm:$0x1]
        %v3444 = vld [vmem:[%s5] sm:$0xf]
        %v3445 = vld [vmem:[%s5 + $0x4] sm:$0xf]
        %v3446 = vld [vmem:[%s5 + $0x8] sm:$0xf]
        %v3447 = vld [vmem:[%s5 + $0xc] sm:$0xf]
        %s3448 = scalar_lea.vmem %s5, 48
        %v3449 = vld [vmem:[%s3448] sm:$0xf]
        %v3450 = vld [vmem:[%s3448 + $0x4] sm:$0xf]
        %v3451 = vld [vmem:[%s3448 + $0x8] sm:$0xf]
        %v3452 = vld [vmem:[%s3448 + $0xc] sm:$0xf]
        %v3469 = vunpack.c.l.b16 %v3417
        %v3470 = vunpack.c.l.b16 %v3418
        %v3471 = vunpack.c.l.b16 %v3420
        %v3472 = vunpack.c.l.b16 %v3421
        %v3473 = vunpack.c.l.b16 %v3423
        %v3474 = vunpack.c.l.b16 %v3424
        %v3475 = vunpack.c.l.b16 %v3426
        %v3476 = vunpack.c.l.b16 %v3427
        %v3477 = vunpack.c.l.b16 %v3429
        %v3478 = vunpack.c.l.b16 %v3430
        %v3479 = vunpack.c.l.b16 %v3432
        %v3480 = vunpack.c.l.b16 %v3433
        %v3481 = vunpack.c.l.b16 %v3435
        %v3482 = vunpack.c.l.b16 %v3436
        %v3483 = vunpack.c.l.b16 %v3438
        %v3484 = vunpack.c.l.b16 %v3439
        %v3485 = vpack.c.b16 %v3470, %v3469
        %v3486 = vpack.c.b16 %v3472, %v3471
        %v3487 = vpack.c.b16 %v3474, %v3473
        %v3488 = vpack.c.b16 %v3476, %v3475
        %v3489 = vpack.c.b16 %v3478, %v3477
        %v3490 = vpack.c.b16 %v3480, %v3479
        %v3491 = vpack.c.b16 %v3482, %v3481
        %v3492 = vpack.c.b16 %v3484, %v3483
        %v3497 = vunpack.c.l.b16 %v3449
        %v3498 = vunpack.c.l.b16 %v3450
        %v3499 = vunpack.c.l.b16 %v3451
        %v3500 = vunpack.c.l.b16 %v3452
        %v3501 = vpack.c.b16 %v3498, %v3497
        %v3502 = vpack.c.b16 %v3500, %v3499
        %vm3505 = vcmask 261120
        %v3507 = vsel %vm3505, %v3485, 0
        %v3510 = vsel %vm3505, %v3486, 0
        %v3513 = vsel %vm3505, %v3487, 0
        %v3516 = vsel %vm3505, %v3488, 0
        %v3519 = vsel %vm3505, %v3489, 0
        %v3522 = vsel %vm3505, %v3490, 0
        %v3525 = vsel %vm3505, %v3491, 0
        %v3528 = vsel %vm3505, %v3492, 0
        %3530 = vmatprep.subr.bf16.mxu0 0
        %3531 = vmatpush1.bf16.msra.mxu0 0
        %3532 = vmatprep.subr.bf16.mxu0 0
        %3533 = vmatpush1.bf16.msra.mxu0 0
        %3534 = vmatprep.subr.bf16.mxu0 0
        %3535 = vmatpush1.bf16.msra.mxu0 0
        %3536 = vmatprep.subr.bf16.mxu0 0
        %3537 = vmatpush1.bf16.msra.mxu0 0
        %3538 = vmatprep.subr.bf16.mxu0 0
        %3539 = vmatpush1.bf16.msra.mxu0 0
        %3540 = vmatprep.subr.bf16.mxu0 0
        %3541 = vmatpush1.bf16.msra.mxu0 0
        %3542 = vmatprep.subr.bf16.mxu0 0
        %3543 = vmatpush1.bf16.msra.mxu0 %v3502
        %3544 = vmatprep.subr.bf16.mxu0 0
        %3545 = vmatpush1.bf16.msra.mxu0 %v3501
        %3546 = vmatprep.subr.bf16.mxu0 0
        %3547 = vmatpush2.bf16.msra.mxu0 0
        %3548 = vmatprep.subr.bf16.mxu0 0
        %3549 = vmatpush2.bf16.msra.mxu0 0
        %3550 = vmatprep.subr.bf16.mxu0 0
        %3551 = vmatpush2.bf16.msra.mxu0 0
        %3552 = vmatprep.subr.bf16.mxu0 0
        %3553 = vmatpush2.bf16.msra.mxu0 0
        %3554 = vmatprep.subr.bf16.mxu0 0
        %3555 = vmatpush2.bf16.msra.mxu0 0
        %3556 = vmatprep.subr.bf16.mxu0 0
        %3557 = vmatpush2.bf16.msra.mxu0 0
        %3558 = vmatprep.subr.bf16.mxu0 0
        %3559 = vmatpush2.bf16.msra.mxu0 0
        %3560 = vmatprep.subr.bf16.mxu0 0
        %3561 = vmatpush2.bf16.msra.mxu0 0
        %3562 = vmatprep.mubr.bf16.mxu0 0
        %3563 = vmatmul.mubr.bf16.gmra.mxu0 %v3507
        %v3564 = vpop.f32.mrf.mxu0
        %v3565 = vadd.f32 0.0, %v3564
        %v3566 = vpop.f32.mrf.mxu0
        %v3567 = vpop.f32.mrf.mxu0
        %v3568 = vadd.f32 0.0, %v3567
        %v3569 = vpop.f32.mrf.mxu0
        %3570 = vmatprep.mubr.bf16.mxu0 0
        %3571 = vmatmul.mubr.bf16.gmra.mxu0 %v3510
        %v3572 = vpop.f32.mrf.mxu0
        %v3573 = vadd.f32 0.0, %v3572
        %v3574 = vpop.f32.mrf.mxu0
        %v3575 = vpop.f32.mrf.mxu0
        %v3576 = vadd.f32 0.0, %v3575
        %v3577 = vpop.f32.mrf.mxu0
        %3578 = vmatprep.mubr.bf16.mxu0 0
        %3579 = vmatmul.mubr.bf16.gmra.mxu0 %v3513
        %v3580 = vpop.f32.mrf.mxu0
        %v3581 = vadd.f32 0.0, %v3580
        %v3582 = vpop.f32.mrf.mxu0
        %v3583 = vpop.f32.mrf.mxu0
        %v3584 = vadd.f32 0.0, %v3583
        %v3585 = vpop.f32.mrf.mxu0
        %3586 = vmatprep.mubr.bf16.mxu0 0
        %3587 = vmatmul.mubr.bf16.gmra.mxu0 %v3516
        %v3588 = vpop.f32.mrf.mxu0
        %v3589 = vadd.f32 0.0, %v3588
        %v3590 = vpop.f32.mrf.mxu0
        %v3591 = vpop.f32.mrf.mxu0
        %v3592 = vadd.f32 0.0, %v3591
        %v3593 = vpop.f32.mrf.mxu0
        %3594 = vmatprep.mubr.bf16.mxu0 0
        %3595 = vmatmul.mubr.bf16.gmra.mxu0 %v3519
        %v3596 = vpop.f32.mrf.mxu0
        %v3597 = vadd.f32 0.0, %v3596
        %v3598 = vpop.f32.mrf.mxu0
        %v3599 = vpop.f32.mrf.mxu0
        %v3600 = vadd.f32 0.0, %v3599
        %v3601 = vpop.f32.mrf.mxu0
        %3602 = vmatprep.mubr.bf16.mxu0 0
        %3603 = vmatmul.mubr.bf16.gmra.mxu0 %v3522
        %v3604 = vpop.f32.mrf.mxu0
        %v3605 = vadd.f32 0.0, %v3604
        %v3606 = vpop.f32.mrf.mxu0
        %v3607 = vpop.f32.mrf.mxu0
        %v3608 = vadd.f32 0.0, %v3607
        %v3609 = vpop.f32.mrf.mxu0
        %3610 = vmatprep.mubr.bf16.mxu0 0
        %3611 = vmatmul.mubr.bf16.gmra.mxu0 %v3525
        %v3612 = vpop.f32.mrf.mxu0
        %v3613 = vadd.f32 0.0, %v3612
        %v3614 = vpop.f32.mrf.mxu0
        %v3615 = vpop.f32.mrf.mxu0
        %v3616 = vadd.f32 0.0, %v3615
        %v3617 = vpop.f32.mrf.mxu0
        %3618 = vmatprep.mubr.bf16.mxu0 0
        %3619 = vmatmul.mubr.bf16.gmra.mxu0 %v3528
        %v3620 = vpop.f32.mrf.mxu0
        %v3621 = vadd.f32 0.0, %v3620
        %v3622 = vpop.f32.mrf.mxu0
        %v3623 = vpop.f32.mrf.mxu0
        %v3624 = vadd.f32 0.0, %v3623
        %v3625 = vpop.f32.mrf.mxu0
        %3626 = vdwg.mxu0
        %v3629 = vunpack.c.l.b16 %v3414
        %v3630 = vunpack.c.l.b16 %v3415
        %v3631 = vpack.c.b16 %v3630, %v3629
        %v3636 = vunpack.c.l.b16 %v3444
        %v3637 = vunpack.c.l.b16 %v3445
        %v3638 = vunpack.c.l.b16 %v3446
        %v3639 = vunpack.c.l.b16 %v3447
        %v3640 = vpack.c.b16 %v3637, %v3636
        %v3641 = vpack.c.b16 %v3639, %v3638
        %v3645 = vsel %vm3505, %v3631, 0
        %3647 = vmatprep.subr.bf16.mxu0 0
        %3648 = vmatpush1.bf16.msra.mxu0 0
        %3649 = vmatprep.subr.bf16.mxu0 0
        %3650 = vmatpush1.bf16.msra.mxu0 0
        %3651 = vmatprep.subr.bf16.mxu0 0
        %3652 = vmatpush1.bf16.msra.mxu0 0
        %3653 = vmatprep.subr.bf16.mxu0 0
        %3654 = vmatpush1.bf16.msra.mxu0 0
        %3655 = vmatprep.subr.bf16.mxu0 0
        %3656 = vmatpush1.bf16.msra.mxu0 0
        %3657 = vmatprep.subr.bf16.mxu0 0
        %3658 = vmatpush1.bf16.msra.mxu0 0
        %3659 = vmatprep.subr.bf16.mxu0 0
        %3660 = vmatpush1.bf16.msra.mxu0 %v3641
        %3661 = vmatprep.subr.bf16.mxu0 0
        %3662 = vmatpush1.bf16.msra.mxu0 %v3640
        %3663 = vmatprep.subr.bf16.mxu0 0
        %3664 = vmatpush2.bf16.msra.mxu0 0
        %3665 = vmatprep.subr.bf16.mxu0 0
        %3666 = vmatpush2.bf16.msra.mxu0 0
        %3667 = vmatprep.subr.bf16.mxu0 0
        %3668 = vmatpush2.bf16.msra.mxu0 0
        %3669 = vmatprep.subr.bf16.mxu0 0
        %3670 = vmatpush2.bf16.msra.mxu0 0
        %3671 = vmatprep.subr.bf16.mxu0 0
        %3672 = vmatpush2.bf16.msra.mxu0 0
        %3673 = vmatprep.subr.bf16.mxu0 0
        %3674 = vmatpush2.bf16.msra.mxu0 0
        %3675 = vmatprep.subr.bf16.mxu0 0
        %3676 = vmatpush2.bf16.msra.mxu0 0
        %3677 = vmatprep.subr.bf16.mxu0 0
        %3678 = vmatpush2.bf16.msra.mxu0 0
        %3679 = vmatprep.mubr.bf16.mxu0 0
        %3680 = vmatmul.mubr.bf16.gmra.mxu0 %v3645
        %v3681 = vpop.f32.mrf.mxu0
        %v3682 = vadd.f32 %v3565, %v3681
        %v3683 = vpop.f32.mrf.mxu0
        %v3684 = vpop.f32.mrf.mxu0
        %v3685 = vadd.f32 %v3568, %v3684
        %v3686 = vpop.f32.mrf.mxu0
        %3687 = vmatprep.mubr.bf16.mxu0 0
        %3688 = vmatmul.mubr.bf16.gmra.mxu0 %v3507
        %v3689 = vpop.f32.mrf.mxu0
        %v3690 = vadd.f32 %v3573, %v3689
        %v3691 = vpop.f32.mrf.mxu0
        %v3692 = vpop.f32.mrf.mxu0
        %v3693 = vadd.f32 %v3576, %v3692
        %v3694 = vpop.f32.mrf.mxu0
        %3695 = vmatprep.mubr.bf16.mxu0 0
        %3696 = vmatmul.mubr.bf16.gmra.mxu0 %v3510
        %v3697 = vpop.f32.mrf.mxu0
        %v3698 = vadd.f32 %v3581, %v3697
        %v3699 = vpop.f32.mrf.mxu0
        %v3700 = vpop.f32.mrf.mxu0
        %v3701 = vadd.f32 %v3584, %v3700
        %v3702 = vpop.f32.mrf.mxu0
        %3703 = vmatprep.mubr.bf16.mxu0 0
        %3704 = vmatmul.mubr.bf16.gmra.mxu0 %v3513
        %v3705 = vpop.f32.mrf.mxu0
        %v3706 = vadd.f32 %v3589, %v3705
        %v3707 = vpop.f32.mrf.mxu0
        %v3708 = vpop.f32.mrf.mxu0
        %v3709 = vadd.f32 %v3592, %v3708
        %v3710 = vpop.f32.mrf.mxu0
        %3711 = vmatprep.mubr.bf16.mxu0 0
        %3712 = vmatmul.mubr.bf16.gmra.mxu0 %v3516
        %v3713 = vpop.f32.mrf.mxu0
        %v3714 = vadd.f32 %v3597, %v3713
        %v3715 = vpop.f32.mrf.mxu0
        %v3716 = vpop.f32.mrf.mxu0
        %v3717 = vadd.f32 %v3600, %v3716
        %v3718 = vpop.f32.mrf.mxu0
        %3719 = vmatprep.mubr.bf16.mxu0 0
        %3720 = vmatmul.mubr.bf16.gmra.mxu0 %v3519
        %v3721 = vpop.f32.mrf.mxu0
        %v3722 = vadd.f32 %v3605, %v3721
        %v3723 = vpop.f32.mrf.mxu0
        %v3724 = vpop.f32.mrf.mxu0
        %v3725 = vadd.f32 %v3608, %v3724
        %v3726 = vpop.f32.mrf.mxu0
        %3727 = vmatprep.mubr.bf16.mxu0 0
        %3728 = vmatmul.mubr.bf16.gmra.mxu0 %v3522
        %v3729 = vpop.f32.mrf.mxu0
        %v3730 = vadd.f32 %v3613, %v3729
        %v3731 = vpop.f32.mrf.mxu0
        %v3732 = vpop.f32.mrf.mxu0
        %v3733 = vadd.f32 %v3616, %v3732
        %v3734 = vpop.f32.mrf.mxu0
        %3735 = vmatprep.mubr.bf16.mxu0 0
        %3736 = vmatmul.mubr.bf16.gmra.mxu0 %v3525
        %v3737 = vpop.f32.mrf.mxu0
        %v3738 = vadd.f32 %v3621, %v3737
        %v3739 = vpop.f32.mrf.mxu0
        %v3740 = vpop.f32.mrf.mxu0
        %v3741 = vadd.f32 %v3624, %v3740
        %v3742 = vpop.f32.mrf.mxu0
        %3743 = vdwg.mxu0
        %s3744 = scalar_lea.vmem %s5, 96
        %v3745 = vld [vmem:[%s3744] sm:$0xf]
        %v3746 = vld [vmem:[%s3744 + $0x4] sm:$0xf]
        %v3747 = vld [vmem:[%s3744 + $0x8] sm:$0xf]
        %v3748 = vld [vmem:[%s3744 + $0xc] sm:$0xf]
        %v3751 = vunpack.c.l.b16 %v3441
        %v3752 = vunpack.c.l.b16 %v3442
        %v3753 = vpack.c.b16 %v3752, %v3751
        %v3758 = vunpack.c.l.b16 %v3745
        %v3759 = vunpack.c.l.b16 %v3746
        %v3760 = vunpack.c.l.b16 %v3747
        %v3761 = vunpack.c.l.b16 %v3748
        %v3762 = vpack.c.b16 %v3759, %v3758
        %v3763 = vpack.c.b16 %v3761, %v3760
        %v3767 = vsel %vm3505, %v3753, 0
        %3769 = vmatprep.subr.bf16.mxu0 0
        %3770 = vmatpush1.bf16.msra.mxu0 0
        %3771 = vmatprep.subr.bf16.mxu0 0
        %3772 = vmatpush1.bf16.msra.mxu0 0
        %3773 = vmatprep.subr.bf16.mxu0 0
        %3774 = vmatpush1.bf16.msra.mxu0 0
        %3775 = vmatprep.subr.bf16.mxu0 0
        %3776 = vmatpush1.bf16.msra.mxu0 0
        %3777 = vmatprep.subr.bf16.mxu0 0
        %3778 = vmatpush1.bf16.msra.mxu0 0
        %3779 = vmatprep.subr.bf16.mxu0 0
        %3780 = vmatpush1.bf16.msra.mxu0 0
        %3781 = vmatprep.subr.bf16.mxu0 0
        %3782 = vmatpush1.bf16.msra.mxu0 %v3763
        %3783 = vmatprep.subr.bf16.mxu0 0
        %3784 = vmatpush1.bf16.msra.mxu0 %v3762
        %3785 = vmatprep.subr.bf16.mxu0 0
        %3786 = vmatpush2.bf16.msra.mxu0 0
        %3787 = vmatprep.subr.bf16.mxu0 0
        %3788 = vmatpush2.bf16.msra.mxu0 0
        %3789 = vmatprep.subr.bf16.mxu0 0
        %3790 = vmatpush2.bf16.msra.mxu0 0
        %3791 = vmatprep.subr.bf16.mxu0 0
        %3792 = vmatpush2.bf16.msra.mxu0 0
        %3793 = vmatprep.subr.bf16.mxu0 0
        %3794 = vmatpush2.bf16.msra.mxu0 0
        %3795 = vmatprep.subr.bf16.mxu0 0
        %3796 = vmatpush2.bf16.msra.mxu0 0
        %3797 = vmatprep.subr.bf16.mxu0 0
        %3798 = vmatpush2.bf16.msra.mxu0 0
        %3799 = vmatprep.subr.bf16.mxu0 0
        %3800 = vmatpush2.bf16.msra.mxu0 0
        %3801 = vmatprep.mubr.bf16.mxu0 0
        %3802 = vmatmul.mubr.bf16.gmra.mxu0 %v3510
        %v3803 = vpop.f32.mrf.mxu0
        %v3804 = vadd.f32 0.0, %v3803
        %v3805 = vpop.f32.mrf.mxu0
        %v3806 = vpop.f32.mrf.mxu0
        %v3807 = vadd.f32 0.0, %v3806
        %v3808 = vpop.f32.mrf.mxu0
        %3809 = vmatprep.mubr.bf16.mxu0 0
        %3810 = vmatmul.mubr.bf16.gmra.mxu0 %v3513
        %v3811 = vpop.f32.mrf.mxu0
        %v3812 = vadd.f32 0.0, %v3811
        %v3813 = vpop.f32.mrf.mxu0
        %v3814 = vpop.f32.mrf.mxu0
        %v3815 = vadd.f32 0.0, %v3814
        %v3816 = vpop.f32.mrf.mxu0
        %3817 = vmatprep.mubr.bf16.mxu0 0
        %3818 = vmatmul.mubr.bf16.gmra.mxu0 %v3516
        %v3819 = vpop.f32.mrf.mxu0
        %v3820 = vadd.f32 0.0, %v3819
        %v3821 = vpop.f32.mrf.mxu0
        %v3822 = vpop.f32.mrf.mxu0
        %v3823 = vadd.f32 0.0, %v3822
        %v3824 = vpop.f32.mrf.mxu0
        %3825 = vmatprep.mubr.bf16.mxu0 0
        %3826 = vmatmul.mubr.bf16.gmra.mxu0 %v3519
        %v3827 = vpop.f32.mrf.mxu0
        %v3828 = vadd.f32 0.0, %v3827
        %v3829 = vpop.f32.mrf.mxu0
        %v3830 = vpop.f32.mrf.mxu0
        %v3831 = vadd.f32 0.0, %v3830
        %v3832 = vpop.f32.mrf.mxu0
        %3833 = vmatprep.mubr.bf16.mxu0 0
        %3834 = vmatmul.mubr.bf16.gmra.mxu0 %v3522
        %v3835 = vpop.f32.mrf.mxu0
        %v3836 = vadd.f32 0.0, %v3835
        %v3837 = vpop.f32.mrf.mxu0
        %v3838 = vpop.f32.mrf.mxu0
        %v3839 = vadd.f32 0.0, %v3838
        %v3840 = vpop.f32.mrf.mxu0
        %3841 = vmatprep.mubr.bf16.mxu0 0
        %3842 = vmatmul.mubr.bf16.gmra.mxu0 %v3525
        %v3843 = vpop.f32.mrf.mxu0
        %v3844 = vadd.f32 0.0, %v3843
        %v3845 = vpop.f32.mrf.mxu0
        %v3846 = vpop.f32.mrf.mxu0
        %v3847 = vadd.f32 0.0, %v3846
        %v3848 = vpop.f32.mrf.mxu0
        %3849 = vmatprep.mubr.bf16.mxu0 0
        %3850 = vmatmul.mubr.bf16.gmra.mxu0 %v3528
        %v3851 = vpop.f32.mrf.mxu0
        %v3852 = vadd.f32 0.0, %v3851
        %v3853 = vpop.f32.mrf.mxu0
        %v3854 = vpop.f32.mrf.mxu0
        %v3855 = vadd.f32 0.0, %v3854
        %v3856 = vpop.f32.mrf.mxu0
        %3857 = vmatprep.mubr.bf16.mxu0 0
        %3858 = vmatmul.mubr.bf16.gmra.mxu0 %v3767
        %v3859 = vpop.f32.mrf.mxu0
        %v3860 = vadd.f32 0.0, %v3859
        %v3861 = vpop.f32.mrf.mxu0
        %v3862 = vpop.f32.mrf.mxu0
        %v3863 = vadd.f32 0.0, %v3862
        %v3864 = vpop.f32.mrf.mxu0
        %3865 = vdwg.mxu0
        %v3866 = vadd.f32 %v3682, %v3804
        %v3867 = vadd.f32 %v3685, %v3807
        %v3868 = vadd.f32 %v3690, %v3812
        %v3869 = vadd.f32 %v3693, %v3815
        %v3870 = vadd.f32 %v3698, %v3820
        %v3871 = vadd.f32 %v3701, %v3823
        %v3872 = vadd.f32 %v3706, %v3828
        %v3873 = vadd.f32 %v3709, %v3831
        %v3874 = vadd.f32 %v3714, %v3836
        %v3875 = vadd.f32 %v3717, %v3839
        %v3876 = vadd.f32 %v3722, %v3844
        %v3877 = vadd.f32 %v3725, %v3847
        %v3878 = vadd.f32 %v3730, %v3852
        %v3879 = vadd.f32 %v3733, %v3855
        %v3880 = vadd.f32 %v3738, %v3860
        %v3881 = vadd.f32 %v3741, %v3863
        %s3882 = scalar_lea.vmem %s5, 16
        %v3883 = vld [vmem:[%s3882] sm:$0xf]
        %v3884 = vld [vmem:[%s3882 + $0x4] sm:$0xf]
        %v3885 = vld [vmem:[%s3882 + $0x8] sm:$0xf]
        %v3886 = vld [vmem:[%s3882 + $0xc] sm:$0xf]
        %v3888 = vshrl.u32 %v3414, 16
        %v3890 = vrot.slane %v3888, 4
        %v3891 = vshll.u32 %v3414, 16
        %v3893 = vrot.slane %v3891, 5
        %v3894 = vor.u32 %v3890, %v3893
        %v3895 = vrot.slane %v3894, 4
        %v3897 = vshll.u32 %v3415, 16
        %v3899 = vrot.slane %v3897, 5
        %v3900 = vsel %vm1598, %v3895, %v3899
        %v3901 = vshrl.u32 %v3415, 16
        %v3903 = vrot.slane %v3901, 4
        %v3904 = vor.u32 %v3903, %v3899
        %v3905 = vrot.slane %v3904, 4
        %v3907 = vshll.u32 %v3416, 16
        %v3909 = vrot.slane %v3907, 5
        %v3910 = vsel %vm1598, %v3905, %v3909
        %v3912 = vshrl.u32 %v3417, 16
        %v3914 = vrot.slane %v3912, 4
        %v3915 = vshll.u32 %v3417, 16
        %v3917 = vrot.slane %v3915, 5
        %v3918 = vor.u32 %v3914, %v3917
        %v3919 = vrot.slane %v3918, 4
        %v3921 = vshll.u32 %v3418, 16
        %v3923 = vrot.slane %v3921, 5
        %v3924 = vsel %vm1598, %v3919, %v3923
        %v3925 = vshrl.u32 %v3418, 16
        %v3927 = vrot.slane %v3925, 4
        %v3928 = vor.u32 %v3927, %v3923
        %v3929 = vrot.slane %v3928, 4
        %v3931 = vshll.u32 %v3419, 16
        %v3933 = vrot.slane %v3931, 5
        %v3934 = vsel %vm1598, %v3929, %v3933
        %v3936 = vshrl.u32 %v3420, 16
        %v3938 = vrot.slane %v3936, 4
        %v3939 = vshll.u32 %v3420, 16
        %v3941 = vrot.slane %v3939, 5
        %v3942 = vor.u32 %v3938, %v3941
        %v3943 = vrot.slane %v3942, 4
        %v3945 = vshll.u32 %v3421, 16
        %v3947 = vrot.slane %v3945, 5
        %v3948 = vsel %vm1598, %v3943, %v3947
        %v3949 = vshrl.u32 %v3421, 16
        %v3951 = vrot.slane %v3949, 4
        %v3952 = vor.u32 %v3951, %v3947
        %v3953 = vrot.slane %v3952, 4
        %v3955 = vshll.u32 %v3422, 16
        %v3957 = vrot.slane %v3955, 5
        %v3958 = vsel %vm1598, %v3953, %v3957
        %v3960 = vshrl.u32 %v3423, 16
        %v3962 = vrot.slane %v3960, 4
        %v3963 = vshll.u32 %v3423, 16
        %v3965 = vrot.slane %v3963, 5
        %v3966 = vor.u32 %v3962, %v3965
        %v3967 = vrot.slane %v3966, 4
        %v3969 = vshll.u32 %v3424, 16
        %v3971 = vrot.slane %v3969, 5
        %v3972 = vsel %vm1598, %v3967, %v3971
        %v3973 = vshrl.u32 %v3424, 16
        %v3975 = vrot.slane %v3973, 4
        %v3976 = vor.u32 %v3975, %v3971
        %v3977 = vrot.slane %v3976, 4
        %v3979 = vshll.u32 %v3425, 16
        %v3981 = vrot.slane %v3979, 5
        %v3982 = vsel %vm1598, %v3977, %v3981
        %v3984 = vshrl.u32 %v3426, 16
        %v3986 = vrot.slane %v3984, 4
        %v3987 = vshll.u32 %v3426, 16
        %v3989 = vrot.slane %v3987, 5
        %v3990 = vor.u32 %v3986, %v3989
        %v3991 = vrot.slane %v3990, 4
        %v3993 = vshll.u32 %v3427, 16
        %v3995 = vrot.slane %v3993, 5
        %v3996 = vsel %vm1598, %v3991, %v3995
        %v3997 = vshrl.u32 %v3427, 16
        %v3999 = vrot.slane %v3997, 4
        %v4000 = vor.u32 %v3999, %v3995
        %v4001 = vrot.slane %v4000, 4
        %v4003 = vshll.u32 %v3428, 16
        %v4005 = vrot.slane %v4003, 5
        %v4006 = vsel %vm1598, %v4001, %v4005
        %v4008 = vshrl.u32 %v3429, 16
        %v4010 = vrot.slane %v4008, 4
        %v4011 = vshll.u32 %v3429, 16
        %v4013 = vrot.slane %v4011, 5
        %v4014 = vor.u32 %v4010, %v4013
        %v4015 = vrot.slane %v4014, 4
        %v4017 = vshll.u32 %v3430, 16
        %v4019 = vrot.slane %v4017, 5
        %v4020 = vsel %vm1598, %v4015, %v4019
        %v4021 = vshrl.u32 %v3430, 16
        %v4023 = vrot.slane %v4021, 4
        %v4024 = vor.u32 %v4023, %v4019
        %v4025 = vrot.slane %v4024, 4
        %v4027 = vshll.u32 %v3431, 16
        %v4029 = vrot.slane %v4027, 5
        %v4030 = vsel %vm1598, %v4025, %v4029
        %v4032 = vshrl.u32 %v3432, 16
        %v4034 = vrot.slane %v4032, 4
        %v4035 = vshll.u32 %v3432, 16
        %v4037 = vrot.slane %v4035, 5
        %v4038 = vor.u32 %v4034, %v4037
        %v4039 = vrot.slane %v4038, 4
        %v4041 = vshll.u32 %v3433, 16
        %v4043 = vrot.slane %v4041, 5
        %v4044 = vsel %vm1598, %v4039, %v4043
        %v4045 = vshrl.u32 %v3433, 16
        %v4047 = vrot.slane %v4045, 4
        %v4048 = vor.u32 %v4047, %v4043
        %v4049 = vrot.slane %v4048, 4
        %v4051 = vshll.u32 %v3434, 16
        %v4053 = vrot.slane %v4051, 5
        %v4054 = vsel %vm1598, %v4049, %v4053
        %v4056 = vshrl.u32 %v3435, 16
        %v4058 = vrot.slane %v4056, 4
        %v4059 = vshll.u32 %v3435, 16
        %v4061 = vrot.slane %v4059, 5
        %v4062 = vor.u32 %v4058, %v4061
        %v4063 = vrot.slane %v4062, 4
        %v4065 = vshll.u32 %v3436, 16
        %v4067 = vrot.slane %v4065, 5
        %v4068 = vsel %vm1598, %v4063, %v4067
        %v4069 = vshrl.u32 %v3436, 16
        %v4071 = vrot.slane %v4069, 4
        %v4072 = vor.u32 %v4071, %v4067
        %v4073 = vrot.slane %v4072, 4
        %v4075 = vshll.u32 %v3437, 16
        %v4077 = vrot.slane %v4075, 5
        %v4078 = vsel %vm1598, %v4073, %v4077
        %v4079 = vunpack.c.l.b16 %v3900
        %v4080 = vunpack.c.l.b16 %v3910
        %v4081 = vunpack.c.l.b16 %v3924
        %v4082 = vunpack.c.l.b16 %v3934
        %v4083 = vunpack.c.l.b16 %v3948
        %v4084 = vunpack.c.l.b16 %v3958
        %v4085 = vunpack.c.l.b16 %v3972
        %v4086 = vunpack.c.l.b16 %v3982
        %v4087 = vunpack.c.l.b16 %v3996
        %v4088 = vunpack.c.l.b16 %v4006
        %v4089 = vunpack.c.l.b16 %v4020
        %v4090 = vunpack.c.l.b16 %v4030
        %v4091 = vunpack.c.l.b16 %v4044
        %v4092 = vunpack.c.l.b16 %v4054
        %v4093 = vunpack.c.l.b16 %v4068
        %v4094 = vunpack.c.l.b16 %v4078
        %v4095 = vpack.c.b16 %v4080, %v4079
        %v4096 = vpack.c.b16 %v4082, %v4081
        %v4097 = vpack.c.b16 %v4084, %v4083
        %v4098 = vpack.c.b16 %v4086, %v4085
        %v4099 = vpack.c.b16 %v4088, %v4087
        %v4100 = vpack.c.b16 %v4090, %v4089
        %v4101 = vpack.c.b16 %v4092, %v4091
        %v4102 = vpack.c.b16 %v4094, %v4093
        %v4107 = vunpack.c.l.b16 %v3883
        %v4108 = vunpack.c.l.b16 %v3884
        %v4109 = vunpack.c.l.b16 %v3885
        %v4110 = vunpack.c.l.b16 %v3886
        %v4111 = vpack.c.b16 %v4108, %v4107
        %v4112 = vpack.c.b16 %v4110, %v4109
        %v4116 = vsel %vm3505, %v4095, 0
        %v4119 = vsel %vm3505, %v4096, 0
        %v4122 = vsel %vm3505, %v4097, 0
        %v4125 = vsel %vm3505, %v4098, 0
        %v4128 = vsel %vm3505, %v4099, 0
        %v4131 = vsel %vm3505, %v4100, 0
        %v4134 = vsel %vm3505, %v4101, 0
        %v4137 = vsel %vm3505, %v4102, 0
        %4139 = vmatprep.subr.bf16.mxu0 0
        %4140 = vmatpush1.bf16.msra.mxu0 0
        %4141 = vmatprep.subr.bf16.mxu0 0
        %4142 = vmatpush1.bf16.msra.mxu0 0
        %4143 = vmatprep.subr.bf16.mxu0 0
        %4144 = vmatpush1.bf16.msra.mxu0 0
        %4145 = vmatprep.subr.bf16.mxu0 0
        %4146 = vmatpush1.bf16.msra.mxu0 0
        %4147 = vmatprep.subr.bf16.mxu0 0
        %4148 = vmatpush1.bf16.msra.mxu0 0
        %4149 = vmatprep.subr.bf16.mxu0 0
        %4150 = vmatpush1.bf16.msra.mxu0 0
        %4151 = vmatprep.subr.bf16.mxu0 0
        %4152 = vmatpush1.bf16.msra.mxu0 %v4112
        %4153 = vmatprep.subr.bf16.mxu0 0
        %4154 = vmatpush1.bf16.msra.mxu0 %v4111
        %4155 = vmatprep.subr.bf16.mxu0 0
        %4156 = vmatpush2.bf16.msra.mxu0 0
        %4157 = vmatprep.subr.bf16.mxu0 0
        %4158 = vmatpush2.bf16.msra.mxu0 0
        %4159 = vmatprep.subr.bf16.mxu0 0
        %4160 = vmatpush2.bf16.msra.mxu0 0
        %4161 = vmatprep.subr.bf16.mxu0 0
        %4162 = vmatpush2.bf16.msra.mxu0 0
        %4163 = vmatprep.subr.bf16.mxu0 0
        %4164 = vmatpush2.bf16.msra.mxu0 0
        %4165 = vmatprep.subr.bf16.mxu0 0
        %4166 = vmatpush2.bf16.msra.mxu0 0
        %4167 = vmatprep.subr.bf16.mxu0 0
        %4168 = vmatpush2.bf16.msra.mxu0 0
        %4169 = vmatprep.subr.bf16.mxu0 0
        %4170 = vmatpush2.bf16.msra.mxu0 0
        %4171 = vmatprep.mubr.bf16.mxu0 0
        %4172 = vmatmul.mubr.bf16.gmra.mxu0 %v4116
        %v4173 = vpop.f32.mrf.mxu0
        %v4174 = vadd.f32 0.0, %v4173
        %v4175 = vpop.f32.mrf.mxu0
        %v4176 = vpop.f32.mrf.mxu0
        %v4177 = vadd.f32 0.0, %v4176
        %v4178 = vpop.f32.mrf.mxu0
        %4179 = vmatprep.mubr.bf16.mxu0 0
        %4180 = vmatmul.mubr.bf16.gmra.mxu0 %v4119
        %v4181 = vpop.f32.mrf.mxu0
        %v4182 = vadd.f32 0.0, %v4181
        %v4183 = vpop.f32.mrf.mxu0
        %v4184 = vpop.f32.mrf.mxu0
        %v4185 = vadd.f32 0.0, %v4184
        %v4186 = vpop.f32.mrf.mxu0
        %4187 = vmatprep.mubr.bf16.mxu0 0
        %4188 = vmatmul.mubr.bf16.gmra.mxu0 %v4122
        %v4189 = vpop.f32.mrf.mxu0
        %v4190 = vadd.f32 0.0, %v4189
        %v4191 = vpop.f32.mrf.mxu0
        %v4192 = vpop.f32.mrf.mxu0
        %v4193 = vadd.f32 0.0, %v4192
        %v4194 = vpop.f32.mrf.mxu0
        %4195 = vmatprep.mubr.bf16.mxu0 0
        %4196 = vmatmul.mubr.bf16.gmra.mxu0 %v4125
        %v4197 = vpop.f32.mrf.mxu0
        %v4198 = vadd.f32 0.0, %v4197
        %v4199 = vpop.f32.mrf.mxu0
        %v4200 = vpop.f32.mrf.mxu0
        %v4201 = vadd.f32 0.0, %v4200
        %v4202 = vpop.f32.mrf.mxu0
        %4203 = vmatprep.mubr.bf16.mxu0 0
        %4204 = vmatmul.mubr.bf16.gmra.mxu0 %v4128
        %v4205 = vpop.f32.mrf.mxu0
        %v4206 = vadd.f32 0.0, %v4205
        %v4207 = vpop.f32.mrf.mxu0
        %v4208 = vpop.f32.mrf.mxu0
        %v4209 = vadd.f32 0.0, %v4208
        %v4210 = vpop.f32.mrf.mxu0
        %4211 = vmatprep.mubr.bf16.mxu0 0
        %4212 = vmatmul.mubr.bf16.gmra.mxu0 %v4131
        %v4213 = vpop.f32.mrf.mxu0
        %v4214 = vadd.f32 0.0, %v4213
        %v4215 = vpop.f32.mrf.mxu0
        %v4216 = vpop.f32.mrf.mxu0
        %v4217 = vadd.f32 0.0, %v4216
        %v4218 = vpop.f32.mrf.mxu0
        %4219 = vmatprep.mubr.bf16.mxu0 0
        %4220 = vmatmul.mubr.bf16.gmra.mxu0 %v4134
        %v4221 = vpop.f32.mrf.mxu0
        %v4222 = vadd.f32 0.0, %v4221
        %v4223 = vpop.f32.mrf.mxu0
        %v4224 = vpop.f32.mrf.mxu0
        %v4225 = vadd.f32 0.0, %v4224
        %v4226 = vpop.f32.mrf.mxu0
        %4227 = vmatprep.mubr.bf16.mxu0 0
        %4228 = vmatmul.mubr.bf16.gmra.mxu0 %v4137
        %v4229 = vpop.f32.mrf.mxu0
        %v4230 = vadd.f32 0.0, %v4229
        %v4231 = vpop.f32.mrf.mxu0
        %v4232 = vpop.f32.mrf.mxu0
        %v4233 = vadd.f32 0.0, %v4232
        %v4234 = vpop.f32.mrf.mxu0
        %4235 = vdwg.mxu0
        %v4236 = vadd.f32 %v3866, %v4174
        %v4237 = vadd.f32 %v3867, %v4177
        %v4238 = vadd.f32 %v3868, %v4182
        %v4239 = vadd.f32 %v3869, %v4185
        %v4240 = vadd.f32 %v3870, %v4190
        %v4241 = vadd.f32 %v3871, %v4193
        %v4242 = vadd.f32 %v3872, %v4198
        %v4243 = vadd.f32 %v3873, %v4201
        %v4244 = vadd.f32 %v3874, %v4206
        %v4245 = vadd.f32 %v3875, %v4209
        %v4246 = vadd.f32 %v3876, %v4214
        %v4247 = vadd.f32 %v3877, %v4217
        %v4248 = vadd.f32 %v3878, %v4222
        %v4249 = vadd.f32 %v3879, %v4225
        %v4250 = vadd.f32 %v3880, %v4230
        %v4251 = vadd.f32 %v3881, %v4233
        %s4252 = scalar_lea.vmem %s5, 64
        %v4253 = vld [vmem:[%s4252] sm:$0xf]
        %v4254 = vld [vmem:[%s4252 + $0x4] sm:$0xf]
        %v4255 = vld [vmem:[%s4252 + $0x8] sm:$0xf]
        %v4256 = vld [vmem:[%s4252 + $0xc] sm:$0xf]
        %v4258 = vshrl.u32 %v3438, 16
        %v4260 = vrot.slane %v4258, 4
        %v4261 = vshll.u32 %v3438, 16
        %v4263 = vrot.slane %v4261, 5
        %v4264 = vor.u32 %v4260, %v4263
        %v4265 = vrot.slane %v4264, 4
        %v4267 = vshll.u32 %v3439, 16
        %v4269 = vrot.slane %v4267, 5
        %v4270 = vsel %vm1598, %v4265, %v4269
        %v4271 = vshrl.u32 %v3439, 16
        %v4273 = vrot.slane %v4271, 4
        %v4274 = vor.u32 %v4273, %v4269
        %v4275 = vrot.slane %v4274, 4
        %v4277 = vshll.u32 %v3440, 16
        %v4279 = vrot.slane %v4277, 5
        %v4280 = vsel %vm1598, %v4275, %v4279
        %v4281 = vunpack.c.l.b16 %v4270
        %v4282 = vunpack.c.l.b16 %v4280
        %v4283 = vpack.c.b16 %v4282, %v4281
        %v4288 = vunpack.c.l.b16 %v4253
        %v4289 = vunpack.c.l.b16 %v4254
        %v4290 = vunpack.c.l.b16 %v4255
        %v4291 = vunpack.c.l.b16 %v4256
        %v4292 = vpack.c.b16 %v4289, %v4288
        %v4293 = vpack.c.b16 %v4291, %v4290
        %v4297 = vsel %vm3505, %v4283, 0
        %4299 = vmatprep.subr.bf16.mxu0 0
        %4300 = vmatpush1.bf16.msra.mxu0 0
        %4301 = vmatprep.subr.bf16.mxu0 0
        %4302 = vmatpush1.bf16.msra.mxu0 0
        %4303 = vmatprep.subr.bf16.mxu0 0
        %4304 = vmatpush1.bf16.msra.mxu0 0
        %4305 = vmatprep.subr.bf16.mxu0 0
        %4306 = vmatpush1.bf16.msra.mxu0 0
        %4307 = vmatprep.subr.bf16.mxu0 0
        %4308 = vmatpush1.bf16.msra.mxu0 0
        %4309 = vmatprep.subr.bf16.mxu0 0
        %4310 = vmatpush1.bf16.msra.mxu0 0
        %4311 = vmatprep.subr.bf16.mxu0 0
        %4312 = vmatpush1.bf16.msra.mxu0 %v4293
        %4313 = vmatprep.subr.bf16.mxu0 0
        %4314 = vmatpush1.bf16.msra.mxu0 %v4292
        %4315 = vmatprep.subr.bf16.mxu0 0
        %4316 = vmatpush2.bf16.msra.mxu0 0
        %4317 = vmatprep.subr.bf16.mxu0 0
        %4318 = vmatpush2.bf16.msra.mxu0 0
        %4319 = vmatprep.subr.bf16.mxu0 0
        %4320 = vmatpush2.bf16.msra.mxu0 0
        %4321 = vmatprep.subr.bf16.mxu0 0
        %4322 = vmatpush2.bf16.msra.mxu0 0
        %4323 = vmatprep.subr.bf16.mxu0 0
        %4324 = vmatpush2.bf16.msra.mxu0 0
        %4325 = vmatprep.subr.bf16.mxu0 0
        %4326 = vmatpush2.bf16.msra.mxu0 0
        %4327 = vmatprep.subr.bf16.mxu0 0
        %4328 = vmatpush2.bf16.msra.mxu0 0
        %4329 = vmatprep.subr.bf16.mxu0 0
        %4330 = vmatpush2.bf16.msra.mxu0 0
        %4331 = vmatprep.mubr.bf16.mxu0 0
        %4332 = vmatmul.mubr.bf16.gmra.mxu0 %v4119
        %v4333 = vpop.f32.mrf.mxu0
        %v4334 = vadd.f32 0.0, %v4333
        %v4335 = vpop.f32.mrf.mxu0
        %v4336 = vpop.f32.mrf.mxu0
        %v4337 = vadd.f32 0.0, %v4336
        %v4338 = vpop.f32.mrf.mxu0
        %4339 = vmatprep.mubr.bf16.mxu0 0
        %4340 = vmatmul.mubr.bf16.gmra.mxu0 %v4122
        %v4341 = vpop.f32.mrf.mxu0
        %v4342 = vadd.f32 0.0, %v4341
        %v4343 = vpop.f32.mrf.mxu0
        %v4344 = vpop.f32.mrf.mxu0
        %v4345 = vadd.f32 0.0, %v4344
        %v4346 = vpop.f32.mrf.mxu0
        %4347 = vmatprep.mubr.bf16.mxu0 0
        %4348 = vmatmul.mubr.bf16.gmra.mxu0 %v4125
        %v4349 = vpop.f32.mrf.mxu0
        %v4350 = vadd.f32 0.0, %v4349
        %v4351 = vpop.f32.mrf.mxu0
        %v4352 = vpop.f32.mrf.mxu0
        %v4353 = vadd.f32 0.0, %v4352
        %v4354 = vpop.f32.mrf.mxu0
        %4355 = vmatprep.mubr.bf16.mxu0 0
        %4356 = vmatmul.mubr.bf16.gmra.mxu0 %v4128
        %v4357 = vpop.f32.mrf.mxu0
        %v4358 = vadd.f32 0.0, %v4357
        %v4359 = vpop.f32.mrf.mxu0
        %v4360 = vpop.f32.mrf.mxu0
        %v4361 = vadd.f32 0.0, %v4360
        %v4362 = vpop.f32.mrf.mxu0
        %4363 = vmatprep.mubr.bf16.mxu0 0
        %4364 = vmatmul.mubr.bf16.gmra.mxu0 %v4131
        %v4365 = vpop.f32.mrf.mxu0
        %v4366 = vadd.f32 0.0, %v4365
        %v4367 = vpop.f32.mrf.mxu0
        %v4368 = vpop.f32.mrf.mxu0
        %v4369 = vadd.f32 0.0, %v4368
        %v4370 = vpop.f32.mrf.mxu0
        %4371 = vmatprep.mubr.bf16.mxu0 0
        %4372 = vmatmul.mubr.bf16.gmra.mxu0 %v4134
        %v4373 = vpop.f32.mrf.mxu0
        %v4374 = vadd.f32 0.0, %v4373
        %v4375 = vpop.f32.mrf.mxu0
        %v4376 = vpop.f32.mrf.mxu0
        %v4377 = vadd.f32 0.0, %v4376
        %v4378 = vpop.f32.mrf.mxu0
        %4379 = vmatprep.mubr.bf16.mxu0 0
        %4380 = vmatmul.mubr.bf16.gmra.mxu0 %v4137
        %v4381 = vpop.f32.mrf.mxu0
        %v4382 = vadd.f32 0.0, %v4381
        %v4383 = vpop.f32.mrf.mxu0
        %v4384 = vpop.f32.mrf.mxu0
        %v4385 = vadd.f32 0.0, %v4384
        %v4386 = vpop.f32.mrf.mxu0
        %4387 = vmatprep.mubr.bf16.mxu0 0
        %4388 = vmatmul.mubr.bf16.gmra.mxu0 %v4297
        %v4389 = vpop.f32.mrf.mxu0
        %v4390 = vadd.f32 0.0, %v4389
        %v4391 = vpop.f32.mrf.mxu0
        %v4392 = vpop.f32.mrf.mxu0
        %v4393 = vadd.f32 0.0, %v4392
        %v4394 = vpop.f32.mrf.mxu0
        %4395 = vdwg.mxu0
        %v4396 = vadd.f32 %v4236, %v4334
        %v4397 = vadd.f32 %v4237, %v4337
        %v4398 = vadd.f32 %v4238, %v4342
        %v4399 = vadd.f32 %v4239, %v4345
        %v4400 = vadd.f32 %v4240, %v4350
        %v4401 = vadd.f32 %v4241, %v4353
        %v4402 = vadd.f32 %v4242, %v4358
        %v4403 = vadd.f32 %v4243, %v4361
        %v4404 = vadd.f32 %v4244, %v4366
        %v4405 = vadd.f32 %v4245, %v4369
        %v4406 = vadd.f32 %v4246, %v4374
        %v4407 = vadd.f32 %v4247, %v4377
        %v4408 = vadd.f32 %v4248, %v4382
        %v4409 = vadd.f32 %v4249, %v4385
        %v4410 = vadd.f32 %v4250, %v4390
        %v4411 = vadd.f32 %v4251, %v4393
        %s4412 = scalar_lea.vmem %s5, 112
        %v4413 = vld [vmem:[%s4412] sm:$0xf]
        %v4414 = vld [vmem:[%s4412 + $0x4] sm:$0xf]
        %v4415 = vld [vmem:[%s4412 + $0x8] sm:$0xf]
        %v4416 = vld [vmem:[%s4412 + $0xc] sm:$0xf]
        %v4418 = vshrl.u32 %v3441, 16
        %v4420 = vrot.slane %v4418, 4
        %v4421 = vshll.u32 %v3441, 16
        %v4423 = vrot.slane %v4421, 5
        %v4424 = vor.u32 %v4420, %v4423
        %v4425 = vrot.slane %v4424, 4
        %v4427 = vshll.u32 %v3442, 16
        %v4429 = vrot.slane %v4427, 5
        %v4430 = vsel %vm1598, %v4425, %v4429
        %v4431 = vshrl.u32 %v3442, 16
        %v4433 = vrot.slane %v4431, 4
        %v4434 = vor.u32 %v4433, %v4429
        %v4435 = vrot.slane %v4434, 4
        %v4437 = vshll.u32 %v3443, 16
        %v4439 = vrot.slane %v4437, 5
        %v4440 = vsel %vm1598, %v4435, %v4439
        %v4441 = vunpack.c.l.b16 %v4430
        %v4442 = vunpack.c.l.b16 %v4440
        %v4443 = vpack.c.b16 %v4442, %v4441
        %v4448 = vunpack.c.l.b16 %v4413
        %v4449 = vunpack.c.l.b16 %v4414
        %v4450 = vunpack.c.l.b16 %v4415
        %v4451 = vunpack.c.l.b16 %v4416
        %v4452 = vpack.c.b16 %v4449, %v4448
        %v4453 = vpack.c.b16 %v4451, %v4450
        %v4457 = vsel %vm3505, %v4443, 0
        %4459 = vmatprep.subr.bf16.mxu0 0
        %4460 = vmatpush1.bf16.msra.mxu0 0
        %4461 = vmatprep.subr.bf16.mxu0 0
        %4462 = vmatpush1.bf16.msra.mxu0 0
        %4463 = vmatprep.subr.bf16.mxu0 0
        %4464 = vmatpush1.bf16.msra.mxu0 0
        %4465 = vmatprep.subr.bf16.mxu0 0
        %4466 = vmatpush1.bf16.msra.mxu0 0
        %4467 = vmatprep.subr.bf16.mxu0 0
        %4468 = vmatpush1.bf16.msra.mxu0 0
        %4469 = vmatprep.subr.bf16.mxu0 0
        %4470 = vmatpush1.bf16.msra.mxu0 0
        %4471 = vmatprep.subr.bf16.mxu0 0
        %4472 = vmatpush1.bf16.msra.mxu0 %v4453
        %4473 = vmatprep.subr.bf16.mxu0 0
        %4474 = vmatpush1.bf16.msra.mxu0 %v4452
        %4475 = vmatprep.subr.bf16.mxu0 0
        %4476 = vmatpush2.bf16.msra.mxu0 0
        %4477 = vmatprep.subr.bf16.mxu0 0
        %4478 = vmatpush2.bf16.msra.mxu0 0
        %4479 = vmatprep.subr.bf16.mxu0 0
        %4480 = vmatpush2.bf16.msra.mxu0 0
        %4481 = vmatprep.subr.bf16.mxu0 0
        %4482 = vmatpush2.bf16.msra.mxu0 0
        %4483 = vmatprep.subr.bf16.mxu0 0
        %4484 = vmatpush2.bf16.msra.mxu0 0
        %4485 = vmatprep.subr.bf16.mxu0 0
        %4486 = vmatpush2.bf16.msra.mxu0 0
        %4487 = vmatprep.subr.bf16.mxu0 0
        %4488 = vmatpush2.bf16.msra.mxu0 0
        %4489 = vmatprep.subr.bf16.mxu0 0
        %4490 = vmatpush2.bf16.msra.mxu0 0
        %4491 = vmatprep.mubr.bf16.mxu0 0
        %4492 = vmatmul.mubr.bf16.gmra.mxu0 %v4122
        %v4493 = vpop.f32.mrf.mxu0
        %v4494 = vadd.f32 0.0, %v4493
        %v4495 = vpop.f32.mrf.mxu0
        %v4496 = vpop.f32.mrf.mxu0
        %v4497 = vadd.f32 0.0, %v4496
        %v4498 = vpop.f32.mrf.mxu0
        %4499 = vmatprep.mubr.bf16.mxu0 0
        %4500 = vmatmul.mubr.bf16.gmra.mxu0 %v4125
        %v4501 = vpop.f32.mrf.mxu0
        %v4502 = vadd.f32 0.0, %v4501
        %v4503 = vpop.f32.mrf.mxu0
        %v4504 = vpop.f32.mrf.mxu0
        %v4505 = vadd.f32 0.0, %v4504
        %v4506 = vpop.f32.mrf.mxu0
        %4507 = vmatprep.mubr.bf16.mxu0 0
        %4508 = vmatmul.mubr.bf16.gmra.mxu0 %v4128
        %v4509 = vpop.f32.mrf.mxu0
        %v4510 = vadd.f32 0.0, %v4509
        %v4511 = vpop.f32.mrf.mxu0
        %v4512 = vpop.f32.mrf.mxu0
        %v4513 = vadd.f32 0.0, %v4512
        %v4514 = vpop.f32.mrf.mxu0
        %4515 = vmatprep.mubr.bf16.mxu0 0
        %4516 = vmatmul.mubr.bf16.gmra.mxu0 %v4131
        %v4517 = vpop.f32.mrf.mxu0
        %v4518 = vadd.f32 0.0, %v4517
        %v4519 = vpop.f32.mrf.mxu0
        %v4520 = vpop.f32.mrf.mxu0
        %v4521 = vadd.f32 0.0, %v4520
        %v4522 = vpop.f32.mrf.mxu0
        %4523 = vmatprep.mubr.bf16.mxu0 0
        %4524 = vmatmul.mubr.bf16.gmra.mxu0 %v4134
        %v4525 = vpop.f32.mrf.mxu0
        %v4526 = vadd.f32 0.0, %v4525
        %v4527 = vpop.f32.mrf.mxu0
        %v4528 = vpop.f32.mrf.mxu0
        %v4529 = vadd.f32 0.0, %v4528
        %v4530 = vpop.f32.mrf.mxu0
        %4531 = vmatprep.mubr.bf16.mxu0 0
        %4532 = vmatmul.mubr.bf16.gmra.mxu0 %v4137
        %v4533 = vpop.f32.mrf.mxu0
        %v4534 = vadd.f32 0.0, %v4533
        %v4535 = vpop.f32.mrf.mxu0
        %v4536 = vpop.f32.mrf.mxu0
        %v4537 = vadd.f32 0.0, %v4536
        %v4538 = vpop.f32.mrf.mxu0
        %4539 = vmatprep.mubr.bf16.mxu0 0
        %4540 = vmatmul.mubr.bf16.gmra.mxu0 %v4297
        %v4541 = vpop.f32.mrf.mxu0
        %v4542 = vadd.f32 0.0, %v4541
        %v4543 = vpop.f32.mrf.mxu0
        %v4544 = vpop.f32.mrf.mxu0
        %v4545 = vadd.f32 0.0, %v4544
        %v4546 = vpop.f32.mrf.mxu0
        %4547 = vmatprep.mubr.bf16.mxu0 0
        %4548 = vmatmul.mubr.bf16.gmra.mxu0 %v4457
        %v4549 = vpop.f32.mrf.mxu0
        %v4550 = vadd.f32 0.0, %v4549
        %v4551 = vpop.f32.mrf.mxu0
        %v4552 = vpop.f32.mrf.mxu0
        %v4553 = vadd.f32 0.0, %v4552
        %v4554 = vpop.f32.mrf.mxu0
        %4555 = vdwg.mxu0
        %v4556 = vadd.f32 %v4396, %v4494
        %v4557 = vadd.f32 %v4397, %v4497
        %v4558 = vadd.f32 %v4398, %v4502
        %v4559 = vadd.f32 %v4399, %v4505
        %v4560 = vadd.f32 %v4400, %v4510
        %v4561 = vadd.f32 %v4401, %v4513
        %v4562 = vadd.f32 %v4402, %v4518
        %v4563 = vadd.f32 %v4403, %v4521
        %v4564 = vadd.f32 %v4404, %v4526
        %v4565 = vadd.f32 %v4405, %v4529
        %v4566 = vadd.f32 %v4406, %v4534
        %v4567 = vadd.f32 %v4407, %v4537
        %v4568 = vadd.f32 %v4408, %v4542
        %v4569 = vadd.f32 %v4409, %v4545
        %v4570 = vadd.f32 %v4410, %v4550
        %v4571 = vadd.f32 %v4411, %v4553
        %s4572 = scalar_lea.vmem %s5, 32
        %v4573 = vld [vmem:[%s4572] sm:$0xf]
        %v4574 = vld [vmem:[%s4572 + $0x4] sm:$0xf]
        %v4575 = vld [vmem:[%s4572 + $0x8] sm:$0xf]
        %v4576 = vld [vmem:[%s4572 + $0xc] sm:$0xf]
        %v4585 = vrot.slane %v3414, 5
        %v4586 = vrot.slane %v4585, 4
        %v4587 = vrot.slane %v3415, 5
        %v4588 = vsel %vm2385, %v4586, %v4587
        %v4589 = vrot.slane %v4587, 4
        %v4590 = vrot.slane %v3416, 5
        %v4591 = vsel %vm2385, %v4589, %v4590
        %v4592 = vrot.slane %v3417, 5
        %v4593 = vrot.slane %v4592, 4
        %v4594 = vrot.slane %v3418, 5
        %v4595 = vsel %vm2385, %v4593, %v4594
        %v4596 = vrot.slane %v4594, 4
        %v4597 = vrot.slane %v3419, 5
        %v4598 = vsel %vm2385, %v4596, %v4597
        %v4599 = vrot.slane %v3420, 5
        %v4600 = vrot.slane %v4599, 4
        %v4601 = vrot.slane %v3421, 5
        %v4602 = vsel %vm2385, %v4600, %v4601
        %v4603 = vrot.slane %v4601, 4
        %v4604 = vrot.slane %v3422, 5
        %v4605 = vsel %vm2385, %v4603, %v4604
        %v4606 = vrot.slane %v3423, 5
        %v4607 = vrot.slane %v4606, 4
        %v4608 = vrot.slane %v3424, 5
        %v4609 = vsel %vm2385, %v4607, %v4608
        %v4610 = vrot.slane %v4608, 4
        %v4611 = vrot.slane %v3425, 5
        %v4612 = vsel %vm2385, %v4610, %v4611
        %v4613 = vrot.slane %v3426, 5
        %v4614 = vrot.slane %v4613, 4
        %v4615 = vrot.slane %v3427, 5
        %v4616 = vsel %vm2385, %v4614, %v4615
        %v4617 = vrot.slane %v4615, 4
        %v4618 = vrot.slane %v3428, 5
        %v4619 = vsel %vm2385, %v4617, %v4618
        %v4620 = vrot.slane %v3429, 5
        %v4621 = vrot.slane %v4620, 4
        %v4622 = vrot.slane %v3430, 5
        %v4623 = vsel %vm2385, %v4621, %v4622
        %v4624 = vrot.slane %v4622, 4
        %v4625 = vrot.slane %v3431, 5
        %v4626 = vsel %vm2385, %v4624, %v4625
        %v4627 = vrot.slane %v3432, 5
        %v4628 = vrot.slane %v4627, 4
        %v4629 = vrot.slane %v3433, 5
        %v4630 = vsel %vm2385, %v4628, %v4629
        %v4631 = vrot.slane %v4629, 4
        %v4632 = vrot.slane %v3434, 5
        %v4633 = vsel %vm2385, %v4631, %v4632
        %v4634 = vrot.slane %v3435, 5
        %v4635 = vrot.slane %v4634, 4
        %v4636 = vrot.slane %v3436, 5
        %v4637 = vsel %vm2385, %v4635, %v4636
        %v4638 = vrot.slane %v4636, 4
        %v4639 = vrot.slane %v3437, 5
        %v4640 = vsel %vm2385, %v4638, %v4639
        %v4641 = vunpack.c.l.b16 %v4588
        %v4642 = vunpack.c.l.b16 %v4591
        %v4643 = vunpack.c.l.b16 %v4595
        %v4644 = vunpack.c.l.b16 %v4598
        %v4645 = vunpack.c.l.b16 %v4602
        %v4646 = vunpack.c.l.b16 %v4605
        %v4647 = vunpack.c.l.b16 %v4609
        %v4648 = vunpack.c.l.b16 %v4612
        %v4649 = vunpack.c.l.b16 %v4616
        %v4650 = vunpack.c.l.b16 %v4619
        %v4651 = vunpack.c.l.b16 %v4623
        %v4652 = vunpack.c.l.b16 %v4626
        %v4653 = vunpack.c.l.b16 %v4630
        %v4654 = vunpack.c.l.b16 %v4633
        %v4655 = vunpack.c.l.b16 %v4637
        %v4656 = vunpack.c.l.b16 %v4640
        %v4657 = vpack.c.b16 %v4642, %v4641
        %v4658 = vpack.c.b16 %v4644, %v4643
        %v4659 = vpack.c.b16 %v4646, %v4645
        %v4660 = vpack.c.b16 %v4648, %v4647
        %v4661 = vpack.c.b16 %v4650, %v4649
        %v4662 = vpack.c.b16 %v4652, %v4651
        %v4663 = vpack.c.b16 %v4654, %v4653
        %v4664 = vpack.c.b16 %v4656, %v4655
        %v4669 = vunpack.c.l.b16 %v4573
        %v4670 = vunpack.c.l.b16 %v4574
        %v4671 = vunpack.c.l.b16 %v4575
        %v4672 = vunpack.c.l.b16 %v4576
        %v4673 = vpack.c.b16 %v4670, %v4669
        %v4674 = vpack.c.b16 %v4672, %v4671
        %v4678 = vsel %vm3505, %v4657, 0
        %v4681 = vsel %vm3505, %v4658, 0
        %v4684 = vsel %vm3505, %v4659, 0
        %v4687 = vsel %vm3505, %v4660, 0
        %v4690 = vsel %vm3505, %v4661, 0
        %v4693 = vsel %vm3505, %v4662, 0
        %v4696 = vsel %vm3505, %v4663, 0
        %v4699 = vsel %vm3505, %v4664, 0
        %4701 = vmatprep.subr.bf16.mxu0 0
        %4702 = vmatpush1.bf16.msra.mxu0 0
        %4703 = vmatprep.subr.bf16.mxu0 0
        %4704 = vmatpush1.bf16.msra.mxu0 0
        %4705 = vmatprep.subr.bf16.mxu0 0
        %4706 = vmatpush1.bf16.msra.mxu0 0
        %4707 = vmatprep.subr.bf16.mxu0 0
        %4708 = vmatpush1.bf16.msra.mxu0 0
        %4709 = vmatprep.subr.bf16.mxu0 0
        %4710 = vmatpush1.bf16.msra.mxu0 0
        %4711 = vmatprep.subr.bf16.mxu0 0
        %4712 = vmatpush1.bf16.msra.mxu0 0
        %4713 = vmatprep.subr.bf16.mxu0 0
        %4714 = vmatpush1.bf16.msra.mxu0 %v4674
        %4715 = vmatprep.subr.bf16.mxu0 0
        %4716 = vmatpush1.bf16.msra.mxu0 %v4673
        %4717 = vmatprep.subr.bf16.mxu0 0
        %4718 = vmatpush2.bf16.msra.mxu0 0
        %4719 = vmatprep.subr.bf16.mxu0 0
        %4720 = vmatpush2.bf16.msra.mxu0 0
        %4721 = vmatprep.subr.bf16.mxu0 0
        %4722 = vmatpush2.bf16.msra.mxu0 0
        %4723 = vmatprep.subr.bf16.mxu0 0
        %4724 = vmatpush2.bf16.msra.mxu0 0
        %4725 = vmatprep.subr.bf16.mxu0 0
        %4726 = vmatpush2.bf16.msra.mxu0 0
        %4727 = vmatprep.subr.bf16.mxu0 0
        %4728 = vmatpush2.bf16.msra.mxu0 0
        %4729 = vmatprep.subr.bf16.mxu0 0
        %4730 = vmatpush2.bf16.msra.mxu0 0
        %4731 = vmatprep.subr.bf16.mxu0 0
        %4732 = vmatpush2.bf16.msra.mxu0 0
        %4733 = vmatprep.mubr.bf16.mxu0 0
        %4734 = vmatmul.mubr.bf16.gmra.mxu0 %v4678
        %v4735 = vpop.f32.mrf.mxu0
        %v4736 = vadd.f32 0.0, %v4735
        %v4737 = vpop.f32.mrf.mxu0
        %v4738 = vpop.f32.mrf.mxu0
        %v4739 = vadd.f32 0.0, %v4738
        %v4740 = vpop.f32.mrf.mxu0
        %4741 = vmatprep.mubr.bf16.mxu0 0
        %4742 = vmatmul.mubr.bf16.gmra.mxu0 %v4681
        %v4743 = vpop.f32.mrf.mxu0
        %v4744 = vadd.f32 0.0, %v4743
        %v4745 = vpop.f32.mrf.mxu0
        %v4746 = vpop.f32.mrf.mxu0
        %v4747 = vadd.f32 0.0, %v4746
        %v4748 = vpop.f32.mrf.mxu0
        %4749 = vmatprep.mubr.bf16.mxu0 0
        %4750 = vmatmul.mubr.bf16.gmra.mxu0 %v4684
        %v4751 = vpop.f32.mrf.mxu0
        %v4752 = vadd.f32 0.0, %v4751
        %v4753 = vpop.f32.mrf.mxu0
        %v4754 = vpop.f32.mrf.mxu0
        %v4755 = vadd.f32 0.0, %v4754
        %v4756 = vpop.f32.mrf.mxu0
        %4757 = vmatprep.mubr.bf16.mxu0 0
        %4758 = vmatmul.mubr.bf16.gmra.mxu0 %v4687
        %v4759 = vpop.f32.mrf.mxu0
        %v4760 = vadd.f32 0.0, %v4759
        %v4761 = vpop.f32.mrf.mxu0
        %v4762 = vpop.f32.mrf.mxu0
        %v4763 = vadd.f32 0.0, %v4762
        %v4764 = vpop.f32.mrf.mxu0
        %4765 = vmatprep.mubr.bf16.mxu0 0
        %4766 = vmatmul.mubr.bf16.gmra.mxu0 %v4690
        %v4767 = vpop.f32.mrf.mxu0
        %v4768 = vadd.f32 0.0, %v4767
        %v4769 = vpop.f32.mrf.mxu0
        %v4770 = vpop.f32.mrf.mxu0
        %v4771 = vadd.f32 0.0, %v4770
        %v4772 = vpop.f32.mrf.mxu0
        %4773 = vmatprep.mubr.bf16.mxu0 0
        %4774 = vmatmul.mubr.bf16.gmra.mxu0 %v4693
        %v4775 = vpop.f32.mrf.mxu0
        %v4776 = vadd.f32 0.0, %v4775
        %v4777 = vpop.f32.mrf.mxu0
        %v4778 = vpop.f32.mrf.mxu0
        %v4779 = vadd.f32 0.0, %v4778
        %v4780 = vpop.f32.mrf.mxu0
        %4781 = vmatprep.mubr.bf16.mxu0 0
        %4782 = vmatmul.mubr.bf16.gmra.mxu0 %v4696
        %v4783 = vpop.f32.mrf.mxu0
        %v4784 = vadd.f32 0.0, %v4783
        %v4785 = vpop.f32.mrf.mxu0
        %v4786 = vpop.f32.mrf.mxu0
        %v4787 = vadd.f32 0.0, %v4786
        %v4788 = vpop.f32.mrf.mxu0
        %4789 = vmatprep.mubr.bf16.mxu0 0
        %4790 = vmatmul.mubr.bf16.gmra.mxu0 %v4699
        %v4791 = vpop.f32.mrf.mxu0
        %v4792 = vadd.f32 0.0, %v4791
        %v4793 = vpop.f32.mrf.mxu0
        %v4794 = vpop.f32.mrf.mxu0
        %v4795 = vadd.f32 0.0, %v4794
        %v4796 = vpop.f32.mrf.mxu0
        %4797 = vdwg.mxu0
        %v4798 = vadd.f32 %v4556, %v4736
        %v4799 = vadd.f32 %v4557, %v4739
        %v4800 = vadd.f32 %v4558, %v4744
        %v4801 = vadd.f32 %v4559, %v4747
        %v4802 = vadd.f32 %v4560, %v4752
        %v4803 = vadd.f32 %v4561, %v4755
        %v4804 = vadd.f32 %v4562, %v4760
        %v4805 = vadd.f32 %v4563, %v4763
        %v4806 = vadd.f32 %v4564, %v4768
        %v4807 = vadd.f32 %v4565, %v4771
        %v4808 = vadd.f32 %v4566, %v4776
        %v4809 = vadd.f32 %v4567, %v4779
        %v4810 = vadd.f32 %v4568, %v4784
        %v4811 = vadd.f32 %v4569, %v4787
        %v4812 = vadd.f32 %v4570, %v4792
        %v4813 = vadd.f32 %v4571, %v4795
        %s4814 = scalar_lea.vmem %s5, 80
        %v4815 = vld [vmem:[%s4814] sm:$0xf]
        %v4816 = vld [vmem:[%s4814 + $0x4] sm:$0xf]
        %v4817 = vld [vmem:[%s4814 + $0x8] sm:$0xf]
        %v4818 = vld [vmem:[%s4814 + $0xc] sm:$0xf]
        %v4820 = vrot.slane %v3438, 5
        %v4821 = vrot.slane %v4820, 4
        %v4822 = vrot.slane %v3439, 5
        %v4823 = vsel %vm2385, %v4821, %v4822
        %v4824 = vrot.slane %v4822, 4
        %v4825 = vrot.slane %v3440, 5
        %v4826 = vsel %vm2385, %v4824, %v4825
        %v4827 = vunpack.c.l.b16 %v4823
        %v4828 = vunpack.c.l.b16 %v4826
        %v4829 = vpack.c.b16 %v4828, %v4827
        %v4834 = vunpack.c.l.b16 %v4815
        %v4835 = vunpack.c.l.b16 %v4816
        %v4836 = vunpack.c.l.b16 %v4817
        %v4837 = vunpack.c.l.b16 %v4818
        %v4838 = vpack.c.b16 %v4835, %v4834
        %v4839 = vpack.c.b16 %v4837, %v4836
        %v4843 = vsel %vm3505, %v4829, 0
        %4845 = vmatprep.subr.bf16.mxu0 0
        %4846 = vmatpush1.bf16.msra.mxu0 0
        %4847 = vmatprep.subr.bf16.mxu0 0
        %4848 = vmatpush1.bf16.msra.mxu0 0
        %4849 = vmatprep.subr.bf16.mxu0 0
        %4850 = vmatpush1.bf16.msra.mxu0 0
        %4851 = vmatprep.subr.bf16.mxu0 0
        %4852 = vmatpush1.bf16.msra.mxu0 0
        %4853 = vmatprep.subr.bf16.mxu0 0
        %4854 = vmatpush1.bf16.msra.mxu0 0
        %4855 = vmatprep.subr.bf16.mxu0 0
        %4856 = vmatpush1.bf16.msra.mxu0 0
        %4857 = vmatprep.subr.bf16.mxu0 0
        %4858 = vmatpush1.bf16.msra.mxu0 %v4839
        %4859 = vmatprep.subr.bf16.mxu0 0
        %4860 = vmatpush1.bf16.msra.mxu0 %v4838
        %4861 = vmatprep.subr.bf16.mxu0 0
        %4862 = vmatpush2.bf16.msra.mxu0 0
        %4863 = vmatprep.subr.bf16.mxu0 0
        %4864 = vmatpush2.bf16.msra.mxu0 0
        %4865 = vmatprep.subr.bf16.mxu0 0
        %4866 = vmatpush2.bf16.msra.mxu0 0
        %4867 = vmatprep.subr.bf16.mxu0 0
        %4868 = vmatpush2.bf16.msra.mxu0 0
        %4869 = vmatprep.subr.bf16.mxu0 0
        %4870 = vmatpush2.bf16.msra.mxu0 0
        %4871 = vmatprep.subr.bf16.mxu0 0
        %4872 = vmatpush2.bf16.msra.mxu0 0
        %4873 = vmatprep.subr.bf16.mxu0 0
        %4874 = vmatpush2.bf16.msra.mxu0 0
        %4875 = vmatprep.subr.bf16.mxu0 0
        %4876 = vmatpush2.bf16.msra.mxu0 0
        %4877 = vmatprep.mubr.bf16.mxu0 0
        %4878 = vmatmul.mubr.bf16.gmra.mxu0 %v4681
        %v4879 = vpop.f32.mrf.mxu0
        %v4880 = vadd.f32 0.0, %v4879
        %v4881 = vpop.f32.mrf.mxu0
        %v4882 = vpop.f32.mrf.mxu0
        %v4883 = vadd.f32 0.0, %v4882
        %v4884 = vpop.f32.mrf.mxu0
        %4885 = vmatprep.mubr.bf16.mxu0 0
        %4886 = vmatmul.mubr.bf16.gmra.mxu0 %v4684
        %v4887 = vpop.f32.mrf.mxu0
        %v4888 = vadd.f32 0.0, %v4887
        %v4889 = vpop.f32.mrf.mxu0
        %v4890 = vpop.f32.mrf.mxu0
        %v4891 = vadd.f32 0.0, %v4890
        %v4892 = vpop.f32.mrf.mxu0
        %4893 = vmatprep.mubr.bf16.mxu0 0
        %4894 = vmatmul.mubr.bf16.gmra.mxu0 %v4687
        %v4895 = vpop.f32.mrf.mxu0
        %v4896 = vadd.f32 0.0, %v4895
        %v4897 = vpop.f32.mrf.mxu0
        %v4898 = vpop.f32.mrf.mxu0
        %v4899 = vadd.f32 0.0, %v4898
        %v4900 = vpop.f32.mrf.mxu0
        %4901 = vmatprep.mubr.bf16.mxu0 0
        %4902 = vmatmul.mubr.bf16.gmra.mxu0 %v4690
        %v4903 = vpop.f32.mrf.mxu0
        %v4904 = vadd.f32 0.0, %v4903
        %v4905 = vpop.f32.mrf.mxu0
        %v4906 = vpop.f32.mrf.mxu0
        %v4907 = vadd.f32 0.0, %v4906
        %v4908 = vpop.f32.mrf.mxu0
        %4909 = vmatprep.mubr.bf16.mxu0 0
        %4910 = vmatmul.mubr.bf16.gmra.mxu0 %v4693
        %v4911 = vpop.f32.mrf.mxu0
        %v4912 = vadd.f32 0.0, %v4911
        %v4913 = vpop.f32.mrf.mxu0
        %v4914 = vpop.f32.mrf.mxu0
        %v4915 = vadd.f32 0.0, %v4914
        %v4916 = vpop.f32.mrf.mxu0
        %4917 = vmatprep.mubr.bf16.mxu0 0
        %4918 = vmatmul.mubr.bf16.gmra.mxu0 %v4696
        %v4919 = vpop.f32.mrf.mxu0
        %v4920 = vadd.f32 0.0, %v4919
        %v4921 = vpop.f32.mrf.mxu0
        %v4922 = vpop.f32.mrf.mxu0
        %v4923 = vadd.f32 0.0, %v4922
        %v4924 = vpop.f32.mrf.mxu0
        %4925 = vmatprep.mubr.bf16.mxu0 0
        %4926 = vmatmul.mubr.bf16.gmra.mxu0 %v4699
        %v4927 = vpop.f32.mrf.mxu0
        %v4928 = vadd.f32 0.0, %v4927
        %v4929 = vpop.f32.mrf.mxu0
        %v4930 = vpop.f32.mrf.mxu0
        %v4931 = vadd.f32 0.0, %v4930
        %v4932 = vpop.f32.mrf.mxu0
        %4933 = vmatprep.mubr.bf16.mxu0 0
        %4934 = vmatmul.mubr.bf16.gmra.mxu0 %v4843
        %v4935 = vpop.f32.mrf.mxu0
        %v4936 = vadd.f32 0.0, %v4935
        %v4937 = vpop.f32.mrf.mxu0
        %v4938 = vpop.f32.mrf.mxu0
        %v4939 = vadd.f32 0.0, %v4938
        %v4940 = vpop.f32.mrf.mxu0
        %4941 = vdwg.mxu0
        %v4942 = vadd.f32 %v4798, %v4880
        %v4943 = vadd.f32 %v4799, %v4883
        %v4944 = vadd.f32 %v4800, %v4888
        %v4945 = vadd.f32 %v4801, %v4891
        %v4946 = vadd.f32 %v4802, %v4896
        %v4947 = vadd.f32 %v4803, %v4899
        %v4948 = vadd.f32 %v4804, %v4904
        %v4949 = vadd.f32 %v4805, %v4907
        %v4950 = vadd.f32 %v4806, %v4912
        %v4951 = vadd.f32 %v4807, %v4915
        %v4952 = vadd.f32 %v4808, %v4920
        %v4953 = vadd.f32 %v4809, %v4923
        %v4954 = vadd.f32 %v4810, %v4928
        %v4955 = vadd.f32 %v4811, %v4931
        %v4956 = vadd.f32 %v4812, %v4936
        %v4957 = vadd.f32 %v4813, %v4939
        %s4958 = scalar_lea.vmem %s5, 128
        %v4959 = vld [vmem:[%s4958] sm:$0xf]
        %v4960 = vld [vmem:[%s4958 + $0x4] sm:$0xf]
        %v4961 = vld [vmem:[%s4958 + $0x8] sm:$0xf]
        %v4962 = vld [vmem:[%s4958 + $0xc] sm:$0xf]
        %v4964 = vrot.slane %v3441, 5
        %v4965 = vrot.slane %v4964, 4
        %v4966 = vrot.slane %v3442, 5
        %v4967 = vsel %vm2385, %v4965, %v4966
        %v4968 = vrot.slane %v4966, 4
        %v4969 = vrot.slane %v3443, 5
        %v4970 = vsel %vm2385, %v4968, %v4969
        %v4971 = vunpack.c.l.b16 %v4967
        %v4972 = vunpack.c.l.b16 %v4970
        %v4973 = vpack.c.b16 %v4972, %v4971
        %v4978 = vunpack.c.l.b16 %v4959
        %v4979 = vunpack.c.l.b16 %v4960
        %v4980 = vunpack.c.l.b16 %v4961
        %v4981 = vunpack.c.l.b16 %v4962
        %v4982 = vpack.c.b16 %v4979, %v4978
        %v4983 = vpack.c.b16 %v4981, %v4980
        %v4987 = vsel %vm3505, %v4973, 0
        %4989 = vmatprep.subr.bf16.mxu0 0
        %4990 = vmatpush1.bf16.msra.mxu0 0
        %4991 = vmatprep.subr.bf16.mxu0 0
        %4992 = vmatpush1.bf16.msra.mxu0 0
        %4993 = vmatprep.subr.bf16.mxu0 0
        %4994 = vmatpush1.bf16.msra.mxu0 0
        %4995 = vmatprep.subr.bf16.mxu0 0
        %4996 = vmatpush1.bf16.msra.mxu0 0
        %4997 = vmatprep.subr.bf16.mxu0 0
        %4998 = vmatpush1.bf16.msra.mxu0 0
        %4999 = vmatprep.subr.bf16.mxu0 0
        %5000 = vmatpush1.bf16.msra.mxu0 0
        %5001 = vmatprep.subr.bf16.mxu0 0
        %5002 = vmatpush1.bf16.msra.mxu0 %v4983
        %5003 = vmatprep.subr.bf16.mxu0 0
        %5004 = vmatpush1.bf16.msra.mxu0 %v4982
        %5005 = vmatprep.subr.bf16.mxu0 0
        %5006 = vmatpush2.bf16.msra.mxu0 0
        %5007 = vmatprep.subr.bf16.mxu0 0
        %5008 = vmatpush2.bf16.msra.mxu0 0
        %5009 = vmatprep.subr.bf16.mxu0 0
        %5010 = vmatpush2.bf16.msra.mxu0 0
        %5011 = vmatprep.subr.bf16.mxu0 0
        %5012 = vmatpush2.bf16.msra.mxu0 0
        %5013 = vmatprep.subr.bf16.mxu0 0
        %5014 = vmatpush2.bf16.msra.mxu0 0
        %5015 = vmatprep.subr.bf16.mxu0 0
        %5016 = vmatpush2.bf16.msra.mxu0 0
        %5017 = vmatprep.subr.bf16.mxu0 0
        %5018 = vmatpush2.bf16.msra.mxu0 0
        %5019 = vmatprep.subr.bf16.mxu0 0
        %5020 = vmatpush2.bf16.msra.mxu0 0
        %5021 = vmatprep.mubr.bf16.mxu0 0
        %5022 = vmatmul.mubr.bf16.gmra.mxu0 %v4684
        %v5023 = vpop.f32.mrf.mxu0
        %v5024 = vadd.f32 0.0, %v5023
        %v5025 = vpop.f32.mrf.mxu0
        %v5026 = vpop.f32.mrf.mxu0
        %v5027 = vadd.f32 0.0, %v5026
        %v5028 = vpop.f32.mrf.mxu0
        %5029 = vmatprep.mubr.bf16.mxu0 0
        %5030 = vmatmul.mubr.bf16.gmra.mxu0 %v4687
        %v5031 = vpop.f32.mrf.mxu0
        %v5032 = vadd.f32 0.0, %v5031
        %v5033 = vpop.f32.mrf.mxu0
        %v5034 = vpop.f32.mrf.mxu0
        %v5035 = vadd.f32 0.0, %v5034
        %v5036 = vpop.f32.mrf.mxu0
        %5037 = vmatprep.mubr.bf16.mxu0 0
        %5038 = vmatmul.mubr.bf16.gmra.mxu0 %v4690
        %v5039 = vpop.f32.mrf.mxu0
        %v5040 = vadd.f32 0.0, %v5039
        %v5041 = vpop.f32.mrf.mxu0
        %v5042 = vpop.f32.mrf.mxu0
        %v5043 = vadd.f32 0.0, %v5042
        %v5044 = vpop.f32.mrf.mxu0
        %5045 = vmatprep.mubr.bf16.mxu0 0
        %5046 = vmatmul.mubr.bf16.gmra.mxu0 %v4693
        %v5047 = vpop.f32.mrf.mxu0
        %v5048 = vadd.f32 0.0, %v5047
        %v5049 = vpop.f32.mrf.mxu0
        %v5050 = vpop.f32.mrf.mxu0
        %v5051 = vadd.f32 0.0, %v5050
        %v5052 = vpop.f32.mrf.mxu0
        %5053 = vmatprep.mubr.bf16.mxu0 0
        %5054 = vmatmul.mubr.bf16.gmra.mxu0 %v4696
        %v5055 = vpop.f32.mrf.mxu0
        %v5056 = vadd.f32 0.0, %v5055
        %v5057 = vpop.f32.mrf.mxu0
        %v5058 = vpop.f32.mrf.mxu0
        %v5059 = vadd.f32 0.0, %v5058
        %v5060 = vpop.f32.mrf.mxu0
        %5061 = vmatprep.mubr.bf16.mxu0 0
        %5062 = vmatmul.mubr.bf16.gmra.mxu0 %v4699
        %v5063 = vpop.f32.mrf.mxu0
        %v5064 = vadd.f32 0.0, %v5063
        %v5065 = vpop.f32.mrf.mxu0
        %v5066 = vpop.f32.mrf.mxu0
        %v5067 = vadd.f32 0.0, %v5066
        %v5068 = vpop.f32.mrf.mxu0
        %5069 = vmatprep.mubr.bf16.mxu0 0
        %5070 = vmatmul.mubr.bf16.gmra.mxu0 %v4843
        %v5071 = vpop.f32.mrf.mxu0
        %v5072 = vadd.f32 0.0, %v5071
        %v5073 = vpop.f32.mrf.mxu0
        %v5074 = vpop.f32.mrf.mxu0
        %v5075 = vadd.f32 0.0, %v5074
        %v5076 = vpop.f32.mrf.mxu0
        %5077 = vmatprep.mubr.bf16.mxu0 0
        %5078 = vmatmul.mubr.bf16.gmra.mxu0 %v4987
        %v5079 = vpop.f32.mrf.mxu0
        %v5080 = vadd.f32 0.0, %v5079
        %v5081 = vpop.f32.mrf.mxu0
        %v5082 = vpop.f32.mrf.mxu0
        %v5083 = vadd.f32 0.0, %v5082
        %v5084 = vpop.f32.mrf.mxu0
        %5085 = vdwg.mxu0
        %v5086 = vadd.f32 %v4942, %v5024
        %v5087 = vadd.f32 %v4943, %v5027
        %v5088 = vadd.f32 %v4944, %v5032
        %v5089 = vadd.f32 %v4945, %v5035
        %v5090 = vadd.f32 %v4946, %v5040
        %v5091 = vadd.f32 %v4947, %v5043
        %v5092 = vadd.f32 %v4948, %v5048
        %v5093 = vadd.f32 %v4949, %v5051
        %v5094 = vadd.f32 %v4950, %v5056
        %v5095 = vadd.f32 %v4951, %v5059
        %v5096 = vadd.f32 %v4952, %v5064
        %v5097 = vadd.f32 %v4953, %v5067
        %v5098 = vadd.f32 %v4954, %v5072
        %v5099 = vadd.f32 %v4955, %v5075
        %v5100 = vadd.f32 %v4956, %v5080
        %v5101 = vadd.f32 %v4957, %v5083
        %v5102 = vld [vmem:[%s6] sm:$0x1]
        %v5104 = vlaneseq
        %v5105 = vshrl.u32 %v5104, 7
        %v5106 = vsub.s32 0, %v5105
        %v5107 = vrot.slane %v5102, %v5106
        %v5109 = vadd.f32 %v5086, %v5107
        %v5110 = vadd.f32 %v5087, %v5107
        %v5111 = vadd.f32 %v5088, %v5107
        %v5112 = vadd.f32 %v5089, %v5107
        %v5113 = vadd.f32 %v5090, %v5107
        %v5114 = vadd.f32 %v5091, %v5107
        %v5115 = vadd.f32 %v5092, %v5107
        %v5116 = vadd.f32 %v5093, %v5107
        %v5117 = vadd.f32 %v5094, %v5107
        %v5118 = vadd.f32 %v5095, %v5107
        %v5119 = vadd.f32 %v5096, %v5107
        %v5120 = vadd.f32 %v5097, %v5107
        %v5121 = vadd.f32 %v5098, %v5107
        %v5122 = vadd.f32 %v5099, %v5107
        %v5123 = vadd.f32 %v5100, %v5107
        %v5124 = vadd.f32 %v5101, %v5107
        %v5125 = vmax.f32 %v5109, 0.0
        %v5126 = vmax.f32 %v5110, 0.0
        %v5127 = vmax.f32 %v5111, 0.0
        %v5128 = vmax.f32 %v5112, 0.0
        %v5129 = vmax.f32 %v5113, 0.0
        %v5130 = vmax.f32 %v5114, 0.0
        %v5131 = vmax.f32 %v5115, 0.0
        %v5132 = vmax.f32 %v5116, 0.0
        %v5133 = vmax.f32 %v5117, 0.0
        %v5134 = vmax.f32 %v5118, 0.0
        %v5135 = vmax.f32 %v5119, 0.0
        %v5136 = vmax.f32 %v5120, 0.0
        %v5137 = vmax.f32 %v5121, 0.0
        %v5138 = vmax.f32 %v5122, 0.0
        %v5139 = vmax.f32 %v5123, 0.0
        %v5140 = vmax.f32 %v5124, 0.0
        %v5141 = vld [vmem:[%s7] sm:$0x3]
        %v5143 = vsel %vm3505, %v5141, 0
        %v5146 = vsel %vm3505, %v5125, 0
        %v5149 = vsel %vm3505, %v5126, 0
        %v5152 = vsel %vm3505, %v5127, 0
        %v5155 = vsel %vm3505, %v5128, 0
        %v5158 = vsel %vm3505, %v5129, 0
        %v5161 = vsel %vm3505, %v5130, 0
        %v5164 = vsel %vm3505, %v5131, 0
        %v5167 = vsel %vm3505, %v5132, 0
        %v5170 = vsel %vm3505, %v5133, 0
        %v5173 = vsel %vm3505, %v5134, 0
        %v5176 = vsel %vm3505, %v5135, 0
        %v5179 = vsel %vm3505, %v5136, 0
        %v5182 = vsel %vm3505, %v5137, 0
        %v5185 = vsel %vm3505, %v5138, 0
        %v5188 = vsel %vm3505, %v5139, 0
        %v5191 = vsel %vm3505, %v5140, 0
        %5193 = vmatprep.subr.mxu0 0.0
        %5194 = vmatpush1.xpose.msra.mxu0 %v5191
        %5195 = vmatprep.subr.mxu0 0.0
        %5196 = vmatpush1.xpose.msra.mxu0 %v5188
        %5197 = vmatprep.subr.mxu0 0.0
        %5198 = vmatpush1.xpose.msra.mxu0 %v5185
        %5199 = vmatprep.subr.mxu0 0.0
        %5200 = vmatpush1.xpose.msra.mxu0 %v5182
        %5201 = vmatprep.subr.mxu0 0.0
        %5202 = vmatpush1.xpose.msra.mxu0 %v5179
        %5203 = vmatprep.subr.mxu0 0.0
        %5204 = vmatpush1.xpose.msra.mxu0 %v5176
        %5205 = vmatprep.subr.mxu0 0.0
        %5206 = vmatpush1.xpose.msra.mxu0 %v5173
        %5207 = vmatprep.subr.mxu0 0.0
        %5208 = vmatpush1.xpose.msra.mxu0 %v5170
        %5209 = vmatprep.subr.mxu0 0.0
        %5210 = vmatpush1.xpose.msra.mxu0 %v5167
        %5211 = vmatprep.subr.mxu0 0.0
        %5212 = vmatpush1.xpose.msra.mxu0 %v5164
        %5213 = vmatprep.subr.mxu0 0.0
        %5214 = vmatpush1.xpose.msra.mxu0 %v5161
        %5215 = vmatprep.subr.mxu0 0.0
        %5216 = vmatpush1.xpose.msra.mxu0 %v5158
        %5217 = vmatprep.subr.mxu0 0.0
        %5218 = vmatpush1.xpose.msra.mxu0 %v5155
        %5219 = vmatprep.subr.mxu0 0.0
        %5220 = vmatpush1.xpose.msra.mxu0 %v5152
        %5221 = vmatprep.subr.mxu0 0.0
        %5222 = vmatpush1.xpose.msra.mxu0 %v5149
        %5223 = vmatprep.subr.mxu0 0.0
        %5224 = vmatpush1.xpose.msra.mxu0 %v5146
        %5225 = vmatprep.subr.mxu0 0.0
        %5226 = vmatpush2.xpose.msra.mxu0 0.0
        %5227 = vmatprep.subr.mxu0 0.0
        %5228 = vmatpush2.xpose.msra.mxu0 0.0
        %5229 = vmatprep.subr.mxu0 0.0
        %5230 = vmatpush2.xpose.msra.mxu0 0.0
        %5231 = vmatprep.subr.mxu0 0.0
        %5232 = vmatpush2.xpose.msra.mxu0 0.0
        %5233 = vmatprep.subr.mxu0 0.0
        %5234 = vmatpush2.xpose.msra.mxu0 0.0
        %5235 = vmatprep.subr.mxu0 0.0
        %5236 = vmatpush2.xpose.msra.mxu0 0.0
        %5237 = vmatprep.subr.mxu0 0.0
        %5238 = vmatpush2.xpose.msra.mxu0 0.0
        %5239 = vmatprep.subr.mxu0 0.0
        %5240 = vmatpush2.xpose.msra.mxu0 0.0
        %5241 = vmatprep.subr.mxu0 0.0
        %5242 = vmatpush2.xpose.msra.mxu0 0.0
        %5243 = vmatprep.subr.mxu0 0.0
        %5244 = vmatpush2.xpose.msra.mxu0 0.0
        %5245 = vmatprep.subr.mxu0 0.0
        %5246 = vmatpush2.xpose.msra.mxu0 0.0
        %5247 = vmatprep.subr.mxu0 0.0
        %5248 = vmatpush2.xpose.msra.mxu0 0.0
        %5249 = vmatprep.subr.mxu0 0.0
        %5250 = vmatpush2.xpose.msra.mxu0 0.0
        %5251 = vmatprep.subr.mxu0 0.0
        %5252 = vmatpush2.xpose.msra.mxu0 0.0
        %5253 = vmatprep.subr.mxu0 0.0
        %5254 = vmatpush2.xpose.msra.mxu0 0.0
        %5255 = vmatprep.subr.mxu0 0.0
        %5256 = vmatpush2.xpose.msra.mxu0 0.0
        %5257 = vmatprep.mubr.f32.mxu0 0.0
        %5258 = vmatmul.mubr.f32.gmra.mxu0 %v5143
        %v5259 = vpop.f32.mrf.mxu0
        %v5260 = vadd.f32 0.0, %v5259
        %v5261 = vpop.f32.mrf.mxu0
        %5262 = vdwg.mxu0
        %s5263 = sld [smem:[#allocation4]]
        %v5264 = vstv %s5263
        %v5265 = vadd.f32 %v5260, %v5264
        %5266 = vst [vmem:[%s559] sm:$0x1] %v5265
        %v5267 = vxor.u32 %v5265, 2147483648
        %v5268 = vmul.f32 %v5267, 1.442695
        %v5269 = vpow.pop %v5268
        %v5270 = vadd.f32 %v5269, 1.0
        %v5271 = vrcp.pop %v5270
        %v5272 = vmul.f32 1.0, %v5271
        %5273 = vst [vmem:[%s559 + $0x2] sm:$0x1] %v5272
        %s5274 = sld [smem:[#allocation6]]
        %v5275 = vstv %s5274
        %vm5276 = vcmp.gt.f32.partialorder %v5265, %v5275
        %v5277 = vsel %vm5276, 1, 0
        %v5278 = vcvt.s32.f32 %v5277
        %5279 = vst [vmem:[%s559 + $0x4] sm:$0x1] %v5278
        %s5280 = sld [smem:[#allocation4 + $0x1]]
        %v5281 = vstv %s5280
        %v5282 = vadd.f32 %v5260, %v5281
        %5283 = vst [vmem:[%s559] sm:$0x2] %v5282
        %v5284 = vxor.u32 %v5282, 2147483648
        %v5285 = vmul.f32 %v5284, 1.442695
        %v5286 = vpow.pop %v5285
        %v5287 = vadd.f32 %v5286, 1.0
        %v5288 = vrcp.pop %v5287
        %v5289 = vmul.f32 1.0, %v5288
        %5290 = vst [vmem:[%s559 + $0x2] sm:$0x2] %v5289
        %s5291 = sld [smem:[#allocation6 + $0x1]]
        %v5292 = vstv %s5291
        %vm5293 = vcmp.gt.f32.partialorder %v5282, %v5292
        %v5294 = vsel %vm5293, 1, 0
        %v5295 = vcvt.s32.f32 %v5294
        %5296 = vst [vmem:[%s559 + $0x4] sm:$0x2] %v5295
        %p5297 = scmp.lt.s32.totalorder %s27, 1
        %s5298 = scalar_select %p5297, %s27, 1
        %p5299 = scmp.lt.s32.totalorder %s28, 1
        %s5300 = scalar_select %p5299, %s28, 1
        %s5301 = smul.addr %s5298, 2
        %s5302 = sadd.s32 %s5300, %s5301
        %s5303 = smul.addr %s5302, 8
        %s5304 = scalar_lea.vmem %s10, %s5303
        // Predicated region
        $region85: #{tpu_custom_call.1} parent=59 // pred_check
          %p5305 = pneg %p302
        $region86: #{tpu_custom_call.1} parent=59 // pred_check_branch
          %5307 = sbr.rel (%p5305) target = $region88
        $region87: #{tpu_custom_call.1} parent=59 // pred_region
          _
        $region88: #{tpu_custom_call.1} parent=59 // pred_fallthru
          _
      $region60: #{tpu_custom_call.1} parent=5 // pred_fallthru
        _
      %p5308 = scmp.le.s32.totalorder 2, %s18
      // Predicated region
      $region89: #{tpu_custom_call.1} parent=5 // pred_check
        %p5309 = pneg %p5308
      $region90: #{tpu_custom_call.1} parent=5 // pred_check_branch
        %5311 = sbr.rel (%p5309) target = $region92
      $region91: #{tpu_custom_call.1} parent=5 // pred_region
        %s5312 = ssub.s32 %s18, 2
        // Predicated region
        $region93: #{tpu_custom_call.1} parent=91 // pred_check
          %p5313 = pneg %p308
        $region94: #{tpu_custom_call.1} parent=91 // pred_check_branch
          %5315 = sbr.rel (%p5313) target = $region96
        $region95: #{tpu_custom_call.1} parent=91 // pred_region
          %p5316 = scmp.lt.s32.totalorder %s29, 1
          %s5317 = scalar_select %p5316, %s29, 1
          %p5318 = scmp.lt.s32.totalorder %s30, 1
          %s5319 = scalar_select %p5318, %s30, 1
          %s5320 = smul.addr %s5317, 2
          %s5321 = sadd.s32 %s5319, %s5320
          %s5322 = smul.addr %s5321, 8
          %s5323 = scalar_lea.vmem %s10, %s5322
        $region96: #{tpu_custom_call.1} parent=91 // pred_fallthru
          _
      $region92: #{tpu_custom_call.1} parent=5 // pred_fallthru
        _
    $region6: #{tpu_custom_call.1} parent=1 // loop_footer
      %s22 = sadd.s32 1, %s18
    $region7: #{tpu_custom_call.1} parent=1 // loop_footer_branch
      %17 = sbr.rel target = $region3
    $region8: #{tpu_custom_call.1} parent=1 // loop_exit
      _
    %5324 = vsyncpa [#allocation5], 1
    %s5325 = scalar_lea.sflag [#allocation5], 1
    %5326 = vsyncpa %s5325, 1
    %5327 = vsyncpa [#allocation7], 1

</llo_original>
